<compile_context>
chip_gen: v7x
topology: tpu7x:2x2x1
jax: 0.10.0
libtpu: 0.0.40
codegen_flags: <defaults>
</compile_context>

<pallas_src>
import math
import jax
import jax.numpy as jnp
from jax import lax
from jax.experimental import pallas as pl
from jax.experimental.pallas import tpu as pltpu

EMBED = 512
NUM_HEADS = 4
HEAD_DIM = EMBED // NUM_HEADS          # 128 -> lane aligned
MLP_DIM = 128
B_TILE_MAX = 512                       # amortizes the ~0.35us per-grid-step overhead


def cross_attention_kernel(x_ref, scc_ref, vc_ref,
                           ws_ref, bs_ref, wv_ref, bv_ref,
                           wo_ref, bo_ref, w1_ref, b1_ref, w2t_ref, b2_ref,
                           out_ref):
    bt = x_ref.shape[1]
    # (2, bt, 512) bf16 -> (2*bt, 512): leading-dim merge is layout-free, so both
    # projections below are single large MXU matmuls over visual+textual rows.
    vt = x_ref[...].reshape(2 * bt, EMBED)

    # CLS-query attention scores against the visual/textual keys.  The wk
    # projection, the q_cls*k elementwise product, the per-head reduction and the
    # 1/sqrt(head_dim) scale were all folded into w_score / b_score in the wrapper,
    # so each head's scaled score arrives broadcast across that head's 128-lane
    # segment -> lane-dense softmax with no per-head slicing or cross-lane reduces.
    s_vt = jnp.dot(vt, ws_ref[...], preferred_element_type=jnp.float32) + bs_ref[...]
    v_vt = jnp.dot(vt, wv_ref[...], preferred_element_type=jnp.float32) + bv_ref[...]
    s_v, s_t = s_vt[:bt, :], s_vt[bt:, :]
    v_v, v_t = v_vt[:bt, :], v_vt[bt:, :]
    s_c = scc_ref[...]                                   # cls->cls score (batch-invariant)

    # Per-head softmax over the 3 keys, then the weighted sum of V.
    m = jnp.maximum(jnp.maximum(s_v, s_t), s_c)
    e_c = jnp.exp(s_c - m)
    e_v = jnp.exp(s_v - m)
    e_t = jnp.exp(s_t - m)
    inv = pl.reciprocal(e_c + e_v + e_t, approx=True)
    attn = ((e_c * inv) * vc_ref[...]
            + (e_v * inv) * v_v
            + (e_t * inv) * v_t)                         # (bt, 512)

    # Attention output projection (CLS token only — the other token outputs are
    # unused downstream for num_attention_layers == 1) + MLP head.
    x = jnp.dot(attn.astype(jnp.bfloat16), wo_ref[...],
                preferred_element_type=jnp.float32) + bo_ref[...]
    h1 = jnp.tanh(jnp.dot(x.astype(jnp.bfloat16), w1_ref[...],
                          preferred_element_type=jnp.float32) + b1_ref[...])
    # Contract h1's lane axis against w2^T so the MXU result is already a
    # lane-dense (1, bt) row -> unmasked vector stores / dense output DMA.
    y = lax.dot_general(w2t_ref[...], h1,
                        dimension_numbers=(((1,), (1,)), ((), ())),
                        preferred_element_type=jnp.float32) + b2_ref[...]
    out_ref[...] = jax.nn.sigmoid(y)                     # (1, bt)


def _round_up(x, m):
    return ((x + m - 1) // m) * m


def cross_attention_forward(visual, textual, params, b_tile=None):
    n = visual.shape[0]
    scale = 1.0 / math.sqrt(HEAD_DIM)

    # ---- batch tile: clamp to the real batch; >=2 grid steps when large -------
    if b_tile is None:
        nr = _round_up(n, 16)
        if nr <= 256:
            b_tile = nr                     # single step; tiny batches not padded out
        else:
            # multiple of 128 (keeps the lane-dense output block aligned) and
            # >=2 steps so both v7x TensorCores get work; capped at 512.
            b_tile = min(B_TILE_MAX, _round_up(nr // 2, 128))
    n_pad = _round_up(n, b_tile)

    # ---- hoisted batch-invariant CLS work + W_score fold (tiny, runs once) ----
    cls = params["cls_vec"]                                    # (1, 512)
    q_cls = cls @ params["wq"] + params["bq"]                  # (1, 512)
    k_cls = cls @ params["wk"] + params["bk"]
    v_cls = cls @ params["wv"] + params["bv"]
    # block-diagonal head-segment-sum matrix, 1/sqrt(head_dim) folded in
    seg_ids = jnp.arange(EMBED) // HEAD_DIM
    seg = (seg_ids[:, None] == seg_ids[None, :]).astype(jnp.float32) * scale
    # cls->cls score, pre-broadcast across each head's 128-lane segment
    s_cc = (q_cls * k_cls) @ seg                               # (1, 512)
    # fold the CLS query into the key projection: score = vt @ w_score + b_score
    w_score = ((params["wk"] * q_cls) @ seg).astype(jnp.bfloat16)   # (512, 512)
    b_score = (params["bk"] * q_cls) @ seg                          # (1, 512) f32

    # weights DMA'd in bf16 (halves HBM/VMEM traffic; f32 accumulate in-kernel)
    wv = params["wv"].astype(jnp.bfloat16)
    wo = params["wo"].astype(jnp.bfloat16)
    w1 = params["w1"].astype(jnp.bfloat16)
    w2t = params["w2"].T                                       # (1, 128) f32

    # stack visual+textual into one bf16 slab; pad batch to the tile
    x = jnp.stack([visual, textual], axis=0).astype(jnp.bfloat16)   # (2, N, 512)
    if n_pad != n:
        x = jnp.pad(x, ((0, 0), (0, n_pad - n), (0, 0)))

    def full_spec(shape):
        nd = len(shape)
        return pl.BlockSpec(shape, lambda i, nd=nd: (0,) * nd)

    in_specs = [
        pl.BlockSpec((2, b_tile, EMBED), lambda i: (0, i, 0)),  # stacked vis/txt (bf16)
        full_spec((1, EMBED)),                                  # s_cc (cls->cls, broadcast)
        full_spec((1, EMBED)),                                  # v_cls
        full_spec((EMBED, EMBED)),                              # w_score (bf16)
        full_spec((1, EMBED)),                                  # b_score
        full_spec((EMBED, EMBED)),                              # wv (bf16)
        full_spec((1, EMBED)),                                  # bv
        full_spec((EMBED, EMBED)),                              # wo (bf16)
        full_spec((1, EMBED)),                                  # bo
        full_spec((EMBED, MLP_DIM)),                            # w1 (bf16)
        full_spec((1, MLP_DIM)),                                # b1
        full_spec((1, MLP_DIM)),                                # w2^T
        full_spec((1, 1)),                                      # b2
    ]

    out = pl.pallas_call(
        cross_attention_kernel,
        out_shape=jax.ShapeDtypeStruct((1, n_pad), jnp.float32),
        grid_spec=pltpu.PrefetchScalarGridSpec(
            num_scalar_prefetch=0,
            grid=(n_pad // b_tile,),
            in_specs=in_specs,
            out_specs=pl.BlockSpec((1, b_tile), lambda i: (0, i)),
        ),
        compiler_params=pltpu.CompilerParams(
            dimension_semantics=("parallel",),
            # ~16 MiB actually needed at b_tile=512; stay well under v7x's
            # 64 MiB physical VMEM so the compiler keeps pipelining headroom.
            vmem_limit_bytes=32 * 1024 * 1024,
        ),
    )(x, s_cc, v_cls, w_score, b_score, wv, params["bv"],
      wo, params["bo"], w1, params["b1"], w2t, params["b2"])
    return out[0, :n]                                          # (N,)  == .squeeze(1)


def reference_forward(visual, textual, params):
    """Pure-JAX reference (mirrors the PyTorch forward, full 3-token attention)."""
    n = visual.shape[0]
    cls = jnp.broadcast_to(params["cls_vec"], (n, EMBED))
    x = jnp.stack([cls, visual, textual], axis=1)              # (N, 3, 512)
    q = x @ params["wq"] + params["bq"]
    k = x @ params["wk"] + params["bk"]
    v = x @ params["wv"] + params["bv"]
    qh = q.reshape(n, 3, NUM_HEADS, HEAD_DIM)
    kh = k.reshape(n, 3, NUM_HEADS, HEAD_DIM)
    vh = v.reshape(n, 3, NUM_HEADS, HEAD_DIM)
    s = jnp.einsum("nihd,njhd->nhij", qh, kh) / math.sqrt(HEAD_DIM)
    p = jax.nn.softmax(s, axis=-1)
    o = jnp.einsum("nhij,njhd->nihd", p, vh).reshape(n, 3, EMBED)
    x = o @ params["wo"] + params["bo"]
    cls_out = x[:, 0]
    h1 = jnp.tanh(cls_out @ params["w1"] + params["b1"])
    y = h1 @ params["w2"] + params["b2"]
    return jax.nn.sigmoid(y)[:, 0]


def make_params(key):
    """Deterministic synthetic parameters (shapes match the nn.Module, 1 layer)."""
    ks = jax.random.split(key, 16)
    scale = 0.05
    # cls_linear: Linear(1, 512) -> cls = W[:, 0] + b  (input is an all-ones column)
    cls_w = scale * jax.random.normal(ks[0], (EMBED, 1), jnp.float32)
    cls_b = scale * jax.random.normal(ks[1], (EMBED,), jnp.float32)
    cls_vec = (cls_w[:, 0] + cls_b).reshape(1, EMBED)
    return dict(
        cls_vec=cls_vec,
        wq=scale * jax.random.normal(ks[2], (EMBED, EMBED), jnp.float32),
        wk=scale * jax.random.normal(ks[3], (EMBED, EMBED), jnp.float32),
        wv=scale * jax.random.normal(ks[4], (EMBED, EMBED), jnp.float32),
        bq=scale * jax.random.normal(ks[5], (1, EMBED), jnp.float32),
        bk=scale * jax.random.normal(ks[6], (1, EMBED), jnp.float32),
        bv=scale * jax.random.normal(ks[7], (1, EMBED), jnp.float32),
        wo=scale * jax.random.normal(ks[8], (EMBED, EMBED), jnp.float32),
        bo=scale * jax.random.normal(ks[9], (1, EMBED), jnp.float32),
        w1=scale * jax.random.normal(ks[10], (EMBED, MLP_DIM), jnp.float32),
        b1=scale * jax.random.normal(ks[11], (1, MLP_DIM), jnp.float32),
        w2=scale * jax.random.normal(ks[12], (MLP_DIM, 1), jnp.float32),
        b2=scale * jax.random.normal(ks[13], (1, 1), jnp.float32),
    )


if __name__ == "__main__":
    key = jax.random.PRNGKey(0)
    k_vis, k_txt, k_par = jax.random.split(key, 3)

    N = 16  # batch of (visual, textual) embedding pairs
    visual = jax.random.normal(k_vis, (N, EMBED), jnp.float32)
    textual = jax.random.normal(k_txt, (N, EMBED), jnp.float32)
    params = make_params(k_par)

    out = jax.block_until_ready(cross_attention_forward(visual, textual, params))
    ref = jax.block_until_ready(reference_forward(visual, textual, params))

    assert out.shape == (N,)
    assert bool(jnp.all(jnp.isfinite(out)))
    assert jnp.allclose(out, ref, atol=5e-2, rtol=5e-2), (out, ref)

    print("KERNEL_OK")
</pallas_src>

<mosaic_0001>
module attributes {stable_mosaic.version = 11 : i64} {
  func.func @cross_attention_kernel(%arg0: i32, %arg1: memref<2x16x512xbf16, #tpu.memory_space<vmem>>, %arg2: memref<1x512xf32, #tpu.memory_space<vmem>>, %arg3: memref<1x512xf32, #tpu.memory_space<vmem>>, %arg4: memref<512x512xbf16, #tpu.memory_space<vmem>>, %arg5: memref<1x512xf32, #tpu.memory_space<vmem>>, %arg6: memref<512x512xbf16, #tpu.memory_space<vmem>>, %arg7: memref<1x512xf32, #tpu.memory_space<vmem>>, %arg8: memref<512x512xbf16, #tpu.memory_space<vmem>>, %arg9: memref<1x512xf32, #tpu.memory_space<vmem>>, %arg10: memref<512x128xbf16, #tpu.memory_space<vmem>>, %arg11: memref<1x128xf32, #tpu.memory_space<vmem>>, %arg12: memref<1x128xf32, #tpu.memory_space<vmem>>, %arg13: memref<1x1xf32, #tpu.memory_space<vmem>>, %arg14: memref<1x16xf32, #tpu.memory_space<vmem>>) attributes {dimension_semantics = [#tpu.dimension_semantics<parallel>], iteration_bounds = array<i64: 1>, scalar_prefetch = 0 : i64, scratch_operands = 0 : i64, tpu.core_type = #tpu.core_type<tc>, window_params = [{transform_indices = @transform_0, window_bounds = array<i64: 2, 16, 512>}, {pipeline_mode = #tpu.pipeline_mode<synchronous>, transform_indices = @transform_1, window_bounds = array<i64: 1, 512>}, {pipeline_mode = #tpu.pipeline_mode<synchronous>, transform_indices = @transform_2, window_bounds = array<i64: 1, 512>}, {pipeline_mode = #tpu.pipeline_mode<synchronous>, transform_indices = @transform_3, window_bounds = array<i64: 512, 512>}, {pipeline_mode = #tpu.pipeline_mode<synchronous>, transform_indices = @transform_4, window_bounds = array<i64: 1, 512>}, {pipeline_mode = #tpu.pipeline_mode<synchronous>, transform_indices = @transform_5, window_bounds = array<i64: 512, 512>}, {pipeline_mode = #tpu.pipeline_mode<synchronous>, transform_indices = @transform_6, window_bounds = array<i64: 1, 512>}, {pipeline_mode = #tpu.pipeline_mode<synchronous>, transform_indices = @transform_7, window_bounds = array<i64: 512, 512>}, {pipeline_mode = #tpu.pipeline_mode<synchronous>, transform_indices = @transform_8, window_bounds = array<i64: 1, 512>}, {pipeline_mode = #tpu.pipeline_mode<synchronous>, transform_indices = @transform_9, window_bounds = array<i64: 512, 128>}, {pipeline_mode = #tpu.pipeline_mode<synchronous>, transform_indices = @transform_10, window_bounds = array<i64: 1, 128>}, {pipeline_mode = #tpu.pipeline_mode<synchronous>, transform_indices = @transform_11, window_bounds = array<i64: 1, 128>}, {pipeline_mode = #tpu.pipeline_mode<synchronous>, transform_indices = @transform_12, window_bounds = array<i64: 1, 1>}, {transform_indices = @transform_13, window_bounds = array<i64: 1, 16>}]} {
    %c0 = arith.constant 0 : index
    %c0_0 = arith.constant 0 : index
    %c0_1 = arith.constant 0 : index
    %0 = vector.load %arg1[%c0, %c0_0, %c0_1] : memref<2x16x512xbf16, #tpu.memory_space<vmem>>, vector<2x16x512xbf16>
    %1 = vector.shape_cast %0 : vector<2x16x512xbf16> to vector<32x512xbf16>
    %c0_2 = arith.constant 0 : index
    %c0_3 = arith.constant 0 : index
    %2 = vector.load %arg4[%c0_2, %c0_3] : memref<512x512xbf16, #tpu.memory_space<vmem>>, vector<512x512xbf16>
    %cst = arith.constant dense<0.000000e+00> : vector<32x512xf32>
    %3 = tpu.matmul %1, %2, %cst {dimension_numbers = #tpu.dot_dimension_numbers<[1], [0], [0], [1], [0, 0, 1, 1], [], []>} : vector<32x512xbf16>, vector<512x512xbf16>, vector<32x512xf32> -> vector<32x512xf32>
    %c0_4 = arith.constant 0 : index
    %c0_5 = arith.constant 0 : index
    %4 = vector.load %arg5[%c0_4, %c0_5] : memref<1x512xf32, #tpu.memory_space<vmem>>, vector<1x512xf32>
    %5 = vector.broadcast %4 : vector<1x512xf32> to vector<32x512xf32>
    %6 = arith.addf %3, %5 : vector<32x512xf32>
    %c0_6 = arith.constant 0 : index
    %c0_7 = arith.constant 0 : index
    %7 = vector.load %arg6[%c0_6, %c0_7] : memref<512x512xbf16, #tpu.memory_space<vmem>>, vector<512x512xbf16>
    %cst_8 = arith.constant dense<0.000000e+00> : vector<32x512xf32>
    %8 = tpu.matmul %1, %7, %cst_8 {dimension_numbers = #tpu.dot_dimension_numbers<[1], [0], [0], [1], [0, 0, 1, 1], [], []>} : vector<32x512xbf16>, vector<512x512xbf16>, vector<32x512xf32> -> vector<32x512xf32>
    %c0_9 = arith.constant 0 : index
    %c0_10 = arith.constant 0 : index
    %9 = vector.load %arg7[%c0_9, %c0_10] : memref<1x512xf32, #tpu.memory_space<vmem>>, vector<1x512xf32>
    %10 = vector.broadcast %9 : vector<1x512xf32> to vector<32x512xf32>
    %11 = arith.addf %8, %10 : vector<32x512xf32>
    %12 = vector.extract_strided_slice %6 {offsets = [0, 0], sizes = [16, 512], strides = [1, 1]} : vector<32x512xf32> to vector<16x512xf32>
    %13 = vector.extract_strided_slice %6 {offsets = [16, 0], sizes = [16, 512], strides = [1, 1]} : vector<32x512xf32> to vector<16x512xf32>
    %14 = vector.extract_strided_slice %11 {offsets = [0, 0], sizes = [16, 512], strides = [1, 1]} : vector<32x512xf32> to vector<16x512xf32>
    %15 = vector.extract_strided_slice %11 {offsets = [16, 0], sizes = [16, 512], strides = [1, 1]} : vector<32x512xf32> to vector<16x512xf32>
    %c0_11 = arith.constant 0 : index
    %c0_12 = arith.constant 0 : index
    %16 = vector.load %arg2[%c0_11, %c0_12] : memref<1x512xf32, #tpu.memory_space<vmem>>, vector<1x512xf32>
    %17 = arith.maximumf %12, %13 : vector<16x512xf32>
    %18 = vector.broadcast %16 : vector<1x512xf32> to vector<16x512xf32>
    %19 = arith.maximumf %17, %18 : vector<16x512xf32>
    %20 = vector.broadcast %16 : vector<1x512xf32> to vector<16x512xf32>
    %21 = arith.subf %20, %19 : vector<16x512xf32>
    %22 = math.exp %21 : vector<16x512xf32>
    %23 = arith.subf %12, %19 : vector<16x512xf32>
    %24 = math.exp %23 : vector<16x512xf32>
    %25 = arith.subf %13, %19 : vector<16x512xf32>
    %26 = math.exp %25 : vector<16x512xf32>
    %27 = arith.addf %22, %24 : vector<16x512xf32>
    %28 = arith.addf %27, %26 : vector<16x512xf32>
    %29 = tpu.reciprocal %28 {approx = true} : vector<16x512xf32> -> vector<16x512xf32>
    %30 = arith.mulf %22, %29 : vector<16x512xf32>
    %c0_13 = arith.constant 0 : index
    %c0_14 = arith.constant 0 : index
    %31 = vector.load %arg3[%c0_13, %c0_14] : memref<1x512xf32, #tpu.memory_space<vmem>>, vector<1x512xf32>
    %32 = vector.broadcast %31 : vector<1x512xf32> to vector<16x512xf32>
    %33 = arith.mulf %30, %32 : vector<16x512xf32>
    %34 = arith.mulf %24, %29 : vector<16x512xf32>
    %35 = arith.mulf %34, %14 : vector<16x512xf32>
    %36 = arith.addf %33, %35 : vector<16x512xf32>
    %37 = arith.mulf %26, %29 : vector<16x512xf32>
    %38 = arith.mulf %37, %15 : vector<16x512xf32>
    %39 = arith.addf %36, %38 : vector<16x512xf32>
    %40 = arith.truncf %39 : vector<16x512xf32> to vector<16x512xbf16>
    %c0_15 = arith.constant 0 : index
    %c0_16 = arith.constant 0 : index
    %41 = vector.load %arg8[%c0_15, %c0_16] : memref<512x512xbf16, #tpu.memory_space<vmem>>, vector<512x512xbf16>
    %cst_17 = arith.constant dense<0.000000e+00> : vector<16x512xf32>
    %42 = tpu.matmul %40, %41, %cst_17 {dimension_numbers = #tpu.dot_dimension_numbers<[1], [0], [0], [1], [0, 0, 1, 1], [], []>} : vector<16x512xbf16>, vector<512x512xbf16>, vector<16x512xf32> -> vector<16x512xf32>
    %c0_18 = arith.constant 0 : index
    %c0_19 = arith.constant 0 : index
    %43 = vector.load %arg9[%c0_18, %c0_19] : memref<1x512xf32, #tpu.memory_space<vmem>>, vector<1x512xf32>
    %44 = vector.broadcast %43 : vector<1x512xf32> to vector<16x512xf32>
    %45 = arith.addf %42, %44 : vector<16x512xf32>
    %46 = arith.truncf %45 : vector<16x512xf32> to vector<16x512xbf16>
    %c0_20 = arith.constant 0 : index
    %c0_21 = arith.constant 0 : index
    %47 = vector.load %arg10[%c0_20, %c0_21] : memref<512x128xbf16, #tpu.memory_space<vmem>>, vector<512x128xbf16>
    %cst_22 = arith.constant dense<0.000000e+00> : vector<16x128xf32>
    %48 = tpu.matmul %46, %47, %cst_22 {dimension_numbers = #tpu.dot_dimension_numbers<[1], [0], [0], [1], [0, 0, 1, 1], [], []>} : vector<16x512xbf16>, vector<512x128xbf16>, vector<16x128xf32> -> vector<16x128xf32>
    %c0_23 = arith.constant 0 : index
    %c0_24 = arith.constant 0 : index
    %49 = vector.load %arg11[%c0_23, %c0_24] : memref<1x128xf32, #tpu.memory_space<vmem>>, vector<1x128xf32>
    %50 = vector.broadcast %49 : vector<1x128xf32> to vector<16x128xf32>
    %51 = arith.addf %48, %50 : vector<16x128xf32>
    %52 = math.tanh %51 : vector<16x128xf32>
    %c0_25 = arith.constant 0 : index
    %c0_26 = arith.constant 0 : index
    %53 = vector.load %arg12[%c0_25, %c0_26] : memref<1x128xf32, #tpu.memory_space<vmem>>, vector<1x128xf32>
    %cst_27 = arith.constant dense<0.000000e+00> : vector<1x16xf32>
    %54 = tpu.matmul %53, %52, %cst_27 {dimension_numbers = #tpu.dot_dimension_numbers<[1], [1], [0], [0], [0, 0, 1, 0], [], []>} : vector<1x128xf32>, vector<16x128xf32>, vector<1x16xf32> -> vector<1x16xf32>
    %c0_28 = arith.constant 0 : index
    %c0_29 = arith.constant 0 : index
    %55 = vector.load %arg13[%c0_28, %c0_29] : memref<1x1xf32, #tpu.memory_space<vmem>>, vector<1x1xf32>
    %56 = vector.broadcast %55 : vector<1x1xf32> to vector<1x16xf32>
    %57 = arith.addf %54, %56 : vector<1x16xf32>
    %58 = arith.negf %57 : vector<1x16xf32>
    %59 = math.exp %58 : vector<1x16xf32>
    %cst_30 = arith.constant 1.000000e+00 : f32
    %60 = vector.broadcast %cst_30 : f32 to vector<1x16xf32>
    %61 = arith.addf %60, %59 : vector<1x16xf32>
    %62 = arith.divf %60, %61 : vector<1x16xf32>
    %c0_31 = arith.constant 0 : index
    %c0_32 = arith.constant 0 : index
    %63 = vector.load %arg14[%c0_31, %c0_32] : memref<1x16xf32, #tpu.memory_space<vmem>>, vector<1x16xf32>
    tpu.vector_store %arg14[%c0_31, %c0_32], %62 {strides = array<i32>} : memref<1x16xf32, #tpu.memory_space<vmem>>, vector<1x16xf32>,
    return
  }
  func.func @transform_0(%arg0: i32) -> (i32, i32, i32) {
    %c0_i32 = arith.constant 0 : i32
    %c0_i32_0 = arith.constant 0 : i32
    %c0_i32_1 = arith.constant 0 : i32
    return %c0_i32, %arg0, %c0_i32_0 : i32, i32, i32
  }
  func.func @transform_1(%arg0: i32) -> (i32, i32) {
    %c0_i32 = arith.constant 0 : i32
    %c0_i32_0 = arith.constant 0 : i32
    %c0_i32_1 = arith.constant 0 : i32
    return %c0_i32, %c0_i32_0 : i32, i32
  }
  func.func @transform_2(%arg0: i32) -> (i32, i32) {
    %c0_i32 = arith.constant 0 : i32
    %c0_i32_0 = arith.constant 0 : i32
    %c0_i32_1 = arith.constant 0 : i32
    return %c0_i32, %c0_i32_0 : i32, i32
  }
  func.func @transform_3(%arg0: i32) -> (i32, i32) {
    %c0_i32 = arith.constant 0 : i32
    %c0_i32_0 = arith.constant 0 : i32
    %c0_i32_1 = arith.constant 0 : i32
    return %c0_i32, %c0_i32_0 : i32, i32
  }
  func.func @transform_4(%arg0: i32) -> (i32, i32) {
    %c0_i32 = arith.constant 0 : i32
    %c0_i32_0 = arith.constant 0 : i32
    %c0_i32_1 = arith.constant 0 : i32
    return %c0_i32, %c0_i32_0 : i32, i32
  }
  func.func @transform_5(%arg0: i32) -> (i32, i32) {
    %c0_i32 = arith.constant 0 : i32
    %c0_i32_0 = arith.constant 0 : i32
    %c0_i32_1 = arith.constant 0 : i32
    return %c0_i32, %c0_i32_0 : i32, i32
  }
  func.func @transform_6(%arg0: i32) -> (i32, i32) {
    %c0_i32 = arith.constant 0 : i32
    %c0_i32_0 = arith.constant 0 : i32
    %c0_i32_1 = arith.constant 0 : i32
    return %c0_i32, %c0_i32_0 : i32, i32
  }
  func.func @transform_7(%arg0: i32) -> (i32, i32) {
    %c0_i32 = arith.constant 0 : i32
    %c0_i32_0 = arith.constant 0 : i32
    %c0_i32_1 = arith.constant 0 : i32
    return %c0_i32, %c0_i32_0 : i32, i32
  }
  func.func @transform_8(%arg0: i32) -> (i32, i32) {
    %c0_i32 = arith.constant 0 : i32
    %c0_i32_0 = arith.constant 0 : i32
    %c0_i32_1 = arith.constant 0 : i32
    return %c0_i32, %c0_i32_0 : i32, i32
  }
  func.func @transform_9(%arg0: i32) -> (i32, i32) {
    %c0_i32 = arith.constant 0 : i32
    %c0_i32_0 = arith.constant 0 : i32
    %c0_i32_1 = arith.constant 0 : i32
    return %c0_i32, %c0_i32_0 : i32, i32
  }
  func.func @transform_10(%arg0: i32) -> (i32, i32) {
    %c0_i32 = arith.constant 0 : i32
    %c0_i32_0 = arith.constant 0 : i32
    %c0_i32_1 = arith.constant 0 : i32
    return %c0_i32, %c0_i32_0 : i32, i32
  }
  func.func @transform_11(%arg0: i32) -> (i32, i32) {
    %c0_i32 = arith.constant 0 : i32
    %c0_i32_0 = arith.constant 0 : i32
    %c0_i32_1 = arith.constant 0 : i32
    return %c0_i32, %c0_i32_0 : i32, i32
  }
  func.func @transform_12(%arg0: i32) -> (i32, i32) {
    %c0_i32 = arith.constant 0 : i32
    %c0_i32_0 = arith.constant 0 : i32
    %c0_i32_1 = arith.constant 0 : i32
    return %c0_i32, %c0_i32_0 : i32, i32
  }
  func.func @transform_13(%arg0: i32) -> (i32, i32) {
    %c0_i32 = arith.constant 0 : i32
    %c0_i32_0 = arith.constant 0 : i32
    return %c0_i32, %arg0 : i32, i32
  }
}

</mosaic_0001>

<llo_original>
// kernel: tpu_custom_call.1
$region0: #{tpu_custom_call.1}
  #allocation0 [shape = 'u32[]', space=smem, size = 0x4, offset = 0x4, fixed_abs, tag = 'smem constant byte address 0x4 - core index']
  #allocation1 [shape = 'u32[144,128]{1,0:T(1,128)}', space=vmem, size = 0x12000, scoped, tag = 'internal scratch']
  #allocation2 [shape = 'f32[1,1]{1,0:T(1,128)S(1)}', space=vmem, size = 0x200, scoped, tag = 'scoped memory for tpu_custom_call.1']
  %s0 = inlined_call_operand.hbm [shape: bf16[2,16,512], index: 0, kind: input, shape index: {}]
  %s1 = inlined_call_operand.vmem [shape: f32[1,512], index: 1, kind: input, shape index: {}]
  %s2 = inlined_call_operand.vmem [shape: f32[1,512], index: 2, kind: input, shape index: {}]
  %s3 = inlined_call_operand.hbm [shape: bf16[512,512], index: 3, kind: input, shape index: {}]
  %s4 = inlined_call_operand.vmem [shape: f32[1,512], index: 4, kind: input, shape index: {}]
  %s5 = inlined_call_operand.hbm [shape: bf16[512,512], index: 5, kind: input, shape index: {}]
  %s6 = inlined_call_operand.vmem [shape: f32[1,512], index: 6, kind: input, shape index: {}]
  %s7 = inlined_call_operand.hbm [shape: bf16[512,512], index: 7, kind: input, shape index: {}]
  %s8 = inlined_call_operand.vmem [shape: f32[1,512], index: 8, kind: input, shape index: {}]
  %s9 = inlined_call_operand.hbm [shape: bf16[512,128], index: 9, kind: input, shape index: {}]
  %s10 = inlined_call_operand.vmem [shape: f32[1,128], index: 10, kind: input, shape index: {}]
  %s11 = inlined_call_operand.vmem [shape: f32[1,128], index: 11, kind: input, shape index: {}]
  %s12 = inlined_call_operand.<no memory space> [shape: f32[1,1], index: 12, kind: input, shape index: {}]
  %s13 = inlined_call_operand.hbm [shape: f32[1,16], index: 13, kind: output, shape index: {}]
  %s14 = sld [smem:[#allocation0]]
  $region82: #{tpu_custom_call.1} parent=0
    _
  %s16 = ssub.s32 1, %s14
  %s17 = scalar_select 0, %s16, %s14
  %v18 = vstv %s12
  %19 = vst [vmem:[#allocation2] sm:$0x1] %v18
  $region1: #{tpu_custom_call.1} parent=0
    #allocation3 [shape = 'u8[32768]{0}', space=vmem, size = 0x8000, scoped, tag = 'input window, operand 0, single buffered']
    #allocation4 [shape = 's32[1]{0}', space=sflag, size = 0x4, scoped, tag = 'scoped memory for tpu_custom_call.1']
    #allocation5 [shape = 's32[1]{0}', space=sflag, size = 0x4, scoped, tag = 'scoped memory for tpu_custom_call.1']
    #allocation6 [shape = 'u8[524288]{0}', space=vmem, size = 0x80000, scoped, tag = 'input window, operand 3, single buffered']
    #allocation7 [shape = 's32[1]{0}', space=sflag, size = 0x4, scoped, tag = 'scoped memory for tpu_custom_call.1']
    #allocation8 [shape = 'u8[524288]{0}', space=vmem, size = 0x80000, scoped, tag = 'input window, operand 5, single buffered']
    #allocation9 [shape = 'u8[524288]{0}', space=vmem, size = 0x80000, scoped, tag = 'input window, operand 7, single buffered']
    #allocation10 [shape = 's32[1]{0}', space=sflag, size = 0x4, scoped, tag = 'scoped memory for tpu_custom_call.1']
    #allocation11 [shape = 'u8[131072]{0}', space=vmem, size = 0x20000, scoped, tag = 'input window, operand 9, single buffered']
    #allocation12 [shape = 'u8[512]{0}', space=vmem, size = 0x400, scoped, tag = 'output window, operand 0, single buffered']
    %20 = vsyncpa [#allocation4], 0
    %21 = vsyncpa [#allocation7], 0
    %22 = vsyncpa [#allocation10], 0
    %23 = vsyncpa [#allocation5], 0
    // Predicated region
    $region2: #{tpu_custom_call.1} parent=1 // pred_check
      _
    $region3: #{tpu_custom_call.1} parent=1 // pred_check_branch
      %25 = sbr.rel (0) target = $region5
    $region4: #{tpu_custom_call.1} parent=1 // pred_region
      %s27 = ssub.s32 1024, 1024
      %28 = vsyncadd [#allocation4], %s27
      %s29 = sshll.u32 [#allocation3], 4
      %s30 = int_to_ptr.vmem [resolvable:$true] %s29
      %35 = dma.hbm_to_vmem [thread:$0]  %s0, 1024, %s30, [#allocation4], 256, 256, 16
    $region5: #{tpu_custom_call.1} parent=1 // pred_fallthru
      _
    // Predicated region
    $region6: #{tpu_custom_call.1} parent=1 // pred_check
      _
    $region7: #{tpu_custom_call.1} parent=1 // pred_check_branch
      %37 = sbr.rel (0) target = $region9
    $region8: #{tpu_custom_call.1} parent=1 // pred_region
      _
    $region9: #{tpu_custom_call.1} parent=1 // pred_fallthru
      _
    // Predicated region
    $region10: #{tpu_custom_call.1} parent=1 // pred_check
      _
    $region11: #{tpu_custom_call.1} parent=1 // pred_check_branch
      %39 = sbr.rel (0) target = $region13
    $region12: #{tpu_custom_call.1} parent=1 // pred_region
      _
    $region13: #{tpu_custom_call.1} parent=1 // pred_fallthru
      _
    // Predicated region
    $region14: #{tpu_custom_call.1} parent=1 // pred_check
      _
    $region15: #{tpu_custom_call.1} parent=1 // pred_check_branch
      %41 = sbr.rel (0) target = $region17
    $region16: #{tpu_custom_call.1} parent=1 // pred_region
      %s43 = ssub.s32 16384, 16384
      %44 = vsyncadd [#allocation7], %s43
      %s45 = sshll.u32 [#allocation6], 4
      %s46 = int_to_ptr.vmem [resolvable:$true] %s45
      %51 = dma.hbm_to_vmem [thread:$0]  %s3, 16384, %s46, [#allocation7], 256, 256, 16
    $region17: #{tpu_custom_call.1} parent=1 // pred_fallthru
      _
    // Predicated region
    $region18: #{tpu_custom_call.1} parent=1 // pred_check
      _
    $region19: #{tpu_custom_call.1} parent=1 // pred_check_branch
      %53 = sbr.rel (0) target = $region21
    $region20: #{tpu_custom_call.1} parent=1 // pred_region
      _
    $region21: #{tpu_custom_call.1} parent=1 // pred_fallthru
      _
    // Predicated region
    $region22: #{tpu_custom_call.1} parent=1 // pred_check
      _
    $region23: #{tpu_custom_call.1} parent=1 // pred_check_branch
      %55 = sbr.rel (0) target = $region25
    $region24: #{tpu_custom_call.1} parent=1 // pred_region
      %s57 = ssub.s32 16384, 16384
      %58 = vsyncadd [#allocation7], %s57
      %s59 = sshll.u32 [#allocation8], 4
      %s60 = int_to_ptr.vmem [resolvable:$true] %s59
      %65 = dma.hbm_to_vmem [thread:$0]  %s5, 16384, %s60, [#allocation7], 256, 256, 16
    $region25: #{tpu_custom_call.1} parent=1 // pred_fallthru
      _
    // Predicated region
    $region26: #{tpu_custom_call.1} parent=1 // pred_check
      _
    $region27: #{tpu_custom_call.1} parent=1 // pred_check_branch
      %67 = sbr.rel (0) target = $region29
    $region28: #{tpu_custom_call.1} parent=1 // pred_region
      _
    $region29: #{tpu_custom_call.1} parent=1 // pred_fallthru
      _
    // Predicated region
    $region30: #{tpu_custom_call.1} parent=1 // pred_check
      _
    $region31: #{tpu_custom_call.1} parent=1 // pred_check_branch
      %69 = sbr.rel (0) target = $region33
    $region32: #{tpu_custom_call.1} parent=1 // pred_region
      %s71 = ssub.s32 16384, 16384
      %72 = vsyncadd [#allocation10], %s71
      %s73 = sshll.u32 [#allocation9], 4
      %s74 = int_to_ptr.vmem [resolvable:$true] %s73
      %79 = dma.hbm_to_vmem [thread:$0]  %s7, 16384, %s74, [#allocation10], 256, 256, 16
    $region33: #{tpu_custom_call.1} parent=1 // pred_fallthru
      _
    // Predicated region
    $region34: #{tpu_custom_call.1} parent=1 // pred_check
      _
    $region35: #{tpu_custom_call.1} parent=1 // pred_check_branch
      %81 = sbr.rel (0) target = $region37
    $region36: #{tpu_custom_call.1} parent=1 // pred_region
      _
    $region37: #{tpu_custom_call.1} parent=1 // pred_fallthru
      _
    // Predicated region
    $region38: #{tpu_custom_call.1} parent=1 // pred_check
      _
    $region39: #{tpu_custom_call.1} parent=1 // pred_check_branch
      %83 = sbr.rel (0) target = $region41
    $region40: #{tpu_custom_call.1} parent=1 // pred_region
      %s85 = ssub.s32 4096, 4096
      %86 = vsyncadd [#allocation10], %s85
      %s87 = sshll.u32 [#allocation11], 4
      %s88 = int_to_ptr.vmem [resolvable:$true] %s87
      %93 = dma.hbm_to_vmem [thread:$0]  %s9, 4096, %s88, [#allocation10], 64, 64, 4
    $region41: #{tpu_custom_call.1} parent=1 // pred_fallthru
      _
    // Predicated region
    $region42: #{tpu_custom_call.1} parent=1 // pred_check
      _
    $region43: #{tpu_custom_call.1} parent=1 // pred_check_branch
      %95 = sbr.rel (0) target = $region45
    $region44: #{tpu_custom_call.1} parent=1 // pred_region
      _
    $region45: #{tpu_custom_call.1} parent=1 // pred_fallthru
      _
    // Predicated region
    $region46: #{tpu_custom_call.1} parent=1 // pred_check
      _
    $region47: #{tpu_custom_call.1} parent=1 // pred_check_branch
      %97 = sbr.rel (0) target = $region49
    $region48: #{tpu_custom_call.1} parent=1 // pred_region
      _
    $region49: #{tpu_custom_call.1} parent=1 // pred_fallthru
      _
    // Predicated region
    $region50: #{tpu_custom_call.1} parent=1 // pred_check
      _
    $region51: #{tpu_custom_call.1} parent=1 // pred_check_branch
      %99 = sbr.rel (0) target = $region53
    $region52: #{tpu_custom_call.1} parent=1 // pred_region
      _
    $region53: #{tpu_custom_call.1} parent=1 // pred_fallthru
      _
    // Predicated region
    $region54: #{tpu_custom_call.1} parent=1 // pred_check
      _
    $region55: #{tpu_custom_call.1} parent=1 // pred_check_branch
      %101 = sbr.rel (0) target = $region57
    $region56: #{tpu_custom_call.1} parent=1 // pred_region
      %102 = dma.done [#allocation4], 1024
    $region57: #{tpu_custom_call.1} parent=1 // pred_fallthru
      _
    // Predicated region
    $region58: #{tpu_custom_call.1} parent=1 // pred_check
      _
    $region59: #{tpu_custom_call.1} parent=1 // pred_check_branch
      %104 = sbr.rel (0) target = $region61
    $region60: #{tpu_custom_call.1} parent=1 // pred_region
      %105 = dma.done [#allocation7], 16384
    $region61: #{tpu_custom_call.1} parent=1 // pred_fallthru
      _
    // Predicated region
    $region62: #{tpu_custom_call.1} parent=1 // pred_check
      _
    $region63: #{tpu_custom_call.1} parent=1 // pred_check_branch
      %107 = sbr.rel (0) target = $region65
    $region64: #{tpu_custom_call.1} parent=1 // pred_region
      %108 = dma.done [#allocation7], 16384
    $region65: #{tpu_custom_call.1} parent=1 // pred_fallthru
      _
    // Predicated region
    $region66: #{tpu_custom_call.1} parent=1 // pred_check
      _
    $region67: #{tpu_custom_call.1} parent=1 // pred_check_branch
      %110 = sbr.rel (0) target = $region69
    $region68: #{tpu_custom_call.1} parent=1 // pred_region
      %111 = dma.done [#allocation10], 16384
    $region69: #{tpu_custom_call.1} parent=1 // pred_fallthru
      _
    // Predicated region
    $region70: #{tpu_custom_call.1} parent=1 // pred_check
      _
    $region71: #{tpu_custom_call.1} parent=1 // pred_check_branch
      %113 = sbr.rel (0) target = $region73
    $region72: #{tpu_custom_call.1} parent=1 // pred_region
      %114 = dma.done [#allocation10], 4096
    $region73: #{tpu_custom_call.1} parent=1 // pred_fallthru
      _
    %v116 = vld [vmem:[#allocation3] sm:$0xff]
    %v117 = vld [vmem:[#allocation3 + $0x8] sm:$0xff]
    %v118 = vld [vmem:[#allocation3 + $0x10] sm:$0xff]
    %v119 = vld [vmem:[#allocation3 + $0x18] sm:$0xff]
    %v120 = vld [vmem:[#allocation3 + $0x20] sm:$0xff]
    %v121 = vld [vmem:[#allocation3 + $0x28] sm:$0xff]
    %v122 = vld [vmem:[#allocation3 + $0x30] sm:$0xff]
    %v123 = vld [vmem:[#allocation3 + $0x38] sm:$0xff]
    %v124 = vld [vmem:[#allocation6] sm:$0xff]
    %v125 = vld [vmem:[#allocation6 + $0x8] sm:$0xff]
    %v126 = vld [vmem:[#allocation6 + $0x10] sm:$0xff]
    %v127 = vld [vmem:[#allocation6 + $0x18] sm:$0xff]
    %v128 = vld [vmem:[#allocation6 + $0x20] sm:$0xff]
    %v129 = vld [vmem:[#allocation6 + $0x28] sm:$0xff]
    %v130 = vld [vmem:[#allocation6 + $0x30] sm:$0xff]
    %v131 = vld [vmem:[#allocation6 + $0x38] sm:$0xff]
    %v132 = vld [vmem:[#allocation6 + $0x40] sm:$0xff]
    %v133 = vld [vmem:[#allocation6 + $0x48] sm:$0xff]
    %v134 = vld [vmem:[#allocation6 + $0x50] sm:$0xff]
    %v135 = vld [vmem:[#allocation6 + $0x58] sm:$0xff]
    %v136 = vld [vmem:[#allocation6 + $0x60] sm:$0xff]
    %v137 = vld [vmem:[#allocation6 + $0x68] sm:$0xff]
    %v138 = vld [vmem:[#allocation6 + $0x70] sm:$0xff]
    %v139 = vld [vmem:[#allocation6 + $0x78] sm:$0xff]
    %v140 = vld [vmem:[#allocation6 + $0x80] sm:$0xff]
    %v141 = vld [vmem:[#allocation6 + $0x88] sm:$0xff]
    %v142 = vld [vmem:[#allocation6 + $0x90] sm:$0xff]
    %v143 = vld [vmem:[#allocation6 + $0x98] sm:$0xff]
    %v144 = vld [vmem:[#allocation6 + $0xa0] sm:$0xff]
    %v145 = vld [vmem:[#allocation6 + $0xa8] sm:$0xff]
    %v146 = vld [vmem:[#allocation6 + $0xb0] sm:$0xff]
    %v147 = vld [vmem:[#allocation6 + $0xb8] sm:$0xff]
    %v148 = vld [vmem:[#allocation6 + $0xc0] sm:$0xff]
    %v149 = vld [vmem:[#allocation6 + $0xc8] sm:$0xff]
    %v150 = vld [vmem:[#allocation6 + $0xd0] sm:$0xff]
    %v151 = vld [vmem:[#allocation6 + $0xd8] sm:$0xff]
    %v152 = vld [vmem:[#allocation6 + $0xe0] sm:$0xff]
    %v153 = vld [vmem:[#allocation6 + $0xe8] sm:$0xff]
    %v154 = vld [vmem:[#allocation6 + $0xf0] sm:$0xff]
    %v155 = vld [vmem:[#allocation6 + $0xf8] sm:$0xff]
    %v156 = vld [vmem:[#allocation6 + $0x100] sm:$0xff]
    %v157 = vld [vmem:[#allocation6 + $0x108] sm:$0xff]
    %v158 = vld [vmem:[#allocation6 + $0x110] sm:$0xff]
    %v159 = vld [vmem:[#allocation6 + $0x118] sm:$0xff]
    %v160 = vld [vmem:[#allocation6 + $0x120] sm:$0xff]
    %v161 = vld [vmem:[#allocation6 + $0x128] sm:$0xff]
    %v162 = vld [vmem:[#allocation6 + $0x130] sm:$0xff]
    %v163 = vld [vmem:[#allocation6 + $0x138] sm:$0xff]
    %v164 = vld [vmem:[#allocation6 + $0x140] sm:$0xff]
    %v165 = vld [vmem:[#allocation6 + $0x148] sm:$0xff]
    %v166 = vld [vmem:[#allocation6 + $0x150] sm:$0xff]
    %v167 = vld [vmem:[#allocation6 + $0x158] sm:$0xff]
    %v168 = vld [vmem:[#allocation6 + $0x160] sm:$0xff]
    %v169 = vld [vmem:[#allocation6 + $0x168] sm:$0xff]
    %v170 = vld [vmem:[#allocation6 + $0x170] sm:$0xff]
    %v171 = vld [vmem:[#allocation6 + $0x178] sm:$0xff]
    %v172 = vld [vmem:[#allocation6 + $0x180] sm:$0xff]
    %v173 = vld [vmem:[#allocation6 + $0x188] sm:$0xff]
    %v174 = vld [vmem:[#allocation6 + $0x190] sm:$0xff]
    %v175 = vld [vmem:[#allocation6 + $0x198] sm:$0xff]
    %v176 = vld [vmem:[#allocation6 + $0x1a0] sm:$0xff]
    %v177 = vld [vmem:[#allocation6 + $0x1a8] sm:$0xff]
    %v178 = vld [vmem:[#allocation6 + $0x1b0] sm:$0xff]
    %v179 = vld [vmem:[#allocation6 + $0x1b8] sm:$0xff]
    %v180 = vld [vmem:[#allocation6 + $0x1c0] sm:$0xff]
    %v181 = vld [vmem:[#allocation6 + $0x1c8] sm:$0xff]
    %v182 = vld [vmem:[#allocation6 + $0x1d0] sm:$0xff]
    %v183 = vld [vmem:[#allocation6 + $0x1d8] sm:$0xff]
    %v184 = vld [vmem:[#allocation6 + $0x1e0] sm:$0xff]
    %v185 = vld [vmem:[#allocation6 + $0x1e8] sm:$0xff]
    %v186 = vld [vmem:[#allocation6 + $0x1f0] sm:$0xff]
    %v187 = vld [vmem:[#allocation6 + $0x1f8] sm:$0xff]
    %v188 = vld [vmem:[#allocation6 + $0x200] sm:$0xff]
    %v189 = vld [vmem:[#allocation6 + $0x208] sm:$0xff]
    %v190 = vld [vmem:[#allocation6 + $0x210] sm:$0xff]
    %v191 = vld [vmem:[#allocation6 + $0x218] sm:$0xff]
    %v192 = vld [vmem:[#allocation6 + $0x220] sm:$0xff]
    %v193 = vld [vmem:[#allocation6 + $0x228] sm:$0xff]
    %v194 = vld [vmem:[#allocation6 + $0x230] sm:$0xff]
    %v195 = vld [vmem:[#allocation6 + $0x238] sm:$0xff]
    %v196 = vld [vmem:[#allocation6 + $0x240] sm:$0xff]
    %v197 = vld [vmem:[#allocation6 + $0x248] sm:$0xff]
    %v198 = vld [vmem:[#allocation6 + $0x250] sm:$0xff]
    %v199 = vld [vmem:[#allocation6 + $0x258] sm:$0xff]
    %v200 = vld [vmem:[#allocation6 + $0x260] sm:$0xff]
    %v201 = vld [vmem:[#allocation6 + $0x268] sm:$0xff]
    %v202 = vld [vmem:[#allocation6 + $0x270] sm:$0xff]
    %v203 = vld [vmem:[#allocation6 + $0x278] sm:$0xff]
    %v204 = vld [vmem:[#allocation6 + $0x280] sm:$0xff]
    %v205 = vld [vmem:[#allocation6 + $0x288] sm:$0xff]
    %v206 = vld [vmem:[#allocation6 + $0x290] sm:$0xff]
    %v207 = vld [vmem:[#allocation6 + $0x298] sm:$0xff]
    %v208 = vld [vmem:[#allocation6 + $0x2a0] sm:$0xff]
    %v209 = vld [vmem:[#allocation6 + $0x2a8] sm:$0xff]
    %v210 = vld [vmem:[#allocation6 + $0x2b0] sm:$0xff]
    %v211 = vld [vmem:[#allocation6 + $0x2b8] sm:$0xff]
    %v212 = vld [vmem:[#allocation6 + $0x2c0] sm:$0xff]
    %v213 = vld [vmem:[#allocation6 + $0x2c8] sm:$0xff]
    %v214 = vld [vmem:[#allocation6 + $0x2d0] sm:$0xff]
    %v215 = vld [vmem:[#allocation6 + $0x2d8] sm:$0xff]
    %v216 = vld [vmem:[#allocation6 + $0x2e0] sm:$0xff]
    %v217 = vld [vmem:[#allocation6 + $0x2e8] sm:$0xff]
    %v218 = vld [vmem:[#allocation6 + $0x2f0] sm:$0xff]
    %v219 = vld [vmem:[#allocation6 + $0x2f8] sm:$0xff]
    %v220 = vld [vmem:[#allocation6 + $0x300] sm:$0xff]
    %v221 = vld [vmem:[#allocation6 + $0x308] sm:$0xff]
    %v222 = vld [vmem:[#allocation6 + $0x310] sm:$0xff]
    %v223 = vld [vmem:[#allocation6 + $0x318] sm:$0xff]
    %v224 = vld [vmem:[#allocation6 + $0x320] sm:$0xff]
    %v225 = vld [vmem:[#allocation6 + $0x328] sm:$0xff]
    %v226 = vld [vmem:[#allocation6 + $0x330] sm:$0xff]
    %v227 = vld [vmem:[#allocation6 + $0x338] sm:$0xff]
    %v228 = vld [vmem:[#allocation6 + $0x340] sm:$0xff]
    %v229 = vld [vmem:[#allocation6 + $0x348] sm:$0xff]
    %v230 = vld [vmem:[#allocation6 + $0x350] sm:$0xff]
    %v231 = vld [vmem:[#allocation6 + $0x358] sm:$0xff]
    %v232 = vld [vmem:[#allocation6 + $0x360] sm:$0xff]
    %v233 = vld [vmem:[#allocation6 + $0x368] sm:$0xff]
    %v234 = vld [vmem:[#allocation6 + $0x370] sm:$0xff]
    %v235 = vld [vmem:[#allocation6 + $0x378] sm:$0xff]
    %v236 = vld [vmem:[#allocation6 + $0x380] sm:$0xff]
    %v237 = vld [vmem:[#allocation6 + $0x388] sm:$0xff]
    %v238 = vld [vmem:[#allocation6 + $0x390] sm:$0xff]
    %v239 = vld [vmem:[#allocation6 + $0x398] sm:$0xff]
    %v240 = vld [vmem:[#allocation6 + $0x3a0] sm:$0xff]
    %v241 = vld [vmem:[#allocation6 + $0x3a8] sm:$0xff]
    %v242 = vld [vmem:[#allocation6 + $0x3b0] sm:$0xff]
    %v243 = vld [vmem:[#allocation6 + $0x3b8] sm:$0xff]
    %v244 = vld [vmem:[#allocation6 + $0x3c0] sm:$0xff]
    %v245 = vld [vmem:[#allocation6 + $0x3c8] sm:$0xff]
    %v246 = vld [vmem:[#allocation6 + $0x3d0] sm:$0xff]
    %v247 = vld [vmem:[#allocation6 + $0x3d8] sm:$0xff]
    %v248 = vld [vmem:[#allocation6 + $0x3e0] sm:$0xff]
    %v249 = vld [vmem:[#allocation6 + $0x3e8] sm:$0xff]
    %v250 = vld [vmem:[#allocation6 + $0x3f0] sm:$0xff]
    %v251 = vld [vmem:[#allocation6 + $0x3f8] sm:$0xff]
    %v252 = vld [vmem:[%s4] sm:$0xf]
    %v254 = vlaneseq
    %v255 = vshrl.u32 %v254, 7
    %v256 = vsub.s32 0, %v255
    %v257 = vrot.slane %v252, %v256
    %v258 = vlaneseq
    %v259 = vshrl.u32 %v258, 7
    %v260 = vsub.s32 1, %v259
    %v261 = vrot.slane %v252, %v260
    %v262 = vlaneseq
    %v263 = vshrl.u32 %v262, 7
    %v264 = vsub.s32 2, %v263
    %v265 = vrot.slane %v252, %v264
    %v266 = vlaneseq
    %v267 = vshrl.u32 %v266, 7
    %v268 = vsub.s32 3, %v267
    %v269 = vrot.slane %v252, %v268
    %v282 = vunpack.c.l.b16 %v116
    %v283 = vunpack.c.h.b16 %v116
    %v284 = vunpack.c.l.b16 %v117
    %v285 = vunpack.c.h.b16 %v117
    %v286 = vunpack.c.l.b16 %v118
    %v287 = vunpack.c.h.b16 %v118
    %v288 = vunpack.c.l.b16 %v119
    %v289 = vunpack.c.h.b16 %v119
    %v290 = vunpack.c.l.b16 %v120
    %v291 = vunpack.c.h.b16 %v120
    %v292 = vunpack.c.l.b16 %v121
    %v293 = vunpack.c.h.b16 %v121
    %v294 = vunpack.c.l.b16 %v122
    %v295 = vunpack.c.h.b16 %v122
    %v296 = vunpack.c.l.b16 %v123
    %v297 = vunpack.c.h.b16 %v123
    %v298 = vpack.c.b16 %v286, %v282
    %v299 = vpack.c.b16 %v287, %v283
    %v300 = vpack.c.b16 %v288, %v284
    %v301 = vpack.c.b16 %v289, %v285
    %v302 = vpack.c.b16 %v294, %v290
    %v303 = vpack.c.b16 %v295, %v291
    %v304 = vpack.c.b16 %v296, %v292
    %v305 = vpack.c.b16 %v297, %v293
    %v442 = vunpack.c.l.b16 %v124
    %v443 = vunpack.c.h.b16 %v124
    %v444 = vunpack.c.l.b16 %v125
    %v445 = vunpack.c.h.b16 %v125
    %v446 = vunpack.c.l.b16 %v126
    %v447 = vunpack.c.h.b16 %v126
    %v448 = vunpack.c.l.b16 %v127
    %v449 = vunpack.c.h.b16 %v127
    %v450 = vunpack.c.l.b16 %v128
    %v451 = vunpack.c.h.b16 %v128
    %v452 = vunpack.c.l.b16 %v129
    %v453 = vunpack.c.h.b16 %v129
    %v454 = vunpack.c.l.b16 %v130
    %v455 = vunpack.c.h.b16 %v130
    %v456 = vunpack.c.l.b16 %v131
    %v457 = vunpack.c.h.b16 %v131
    %v458 = vunpack.c.l.b16 %v132
    %v459 = vunpack.c.h.b16 %v132
    %v460 = vunpack.c.l.b16 %v133
    %v461 = vunpack.c.h.b16 %v133
    %v462 = vunpack.c.l.b16 %v134
    %v463 = vunpack.c.h.b16 %v134
    %v464 = vunpack.c.l.b16 %v135
    %v465 = vunpack.c.h.b16 %v135
    %v466 = vunpack.c.l.b16 %v136
    %v467 = vunpack.c.h.b16 %v136
    %v468 = vunpack.c.l.b16 %v137
    %v469 = vunpack.c.h.b16 %v137
    %v470 = vunpack.c.l.b16 %v138
    %v471 = vunpack.c.h.b16 %v138
    %v472 = vunpack.c.l.b16 %v139
    %v473 = vunpack.c.h.b16 %v139
    %v474 = vunpack.c.l.b16 %v140
    %v475 = vunpack.c.h.b16 %v140
    %v476 = vunpack.c.l.b16 %v141
    %v477 = vunpack.c.h.b16 %v141
    %v478 = vunpack.c.l.b16 %v142
    %v479 = vunpack.c.h.b16 %v142
    %v480 = vunpack.c.l.b16 %v143
    %v481 = vunpack.c.h.b16 %v143
    %v482 = vunpack.c.l.b16 %v144
    %v483 = vunpack.c.h.b16 %v144
    %v484 = vunpack.c.l.b16 %v145
    %v485 = vunpack.c.h.b16 %v145
    %v486 = vunpack.c.l.b16 %v146
    %v487 = vunpack.c.h.b16 %v146
    %v488 = vunpack.c.l.b16 %v147
    %v489 = vunpack.c.h.b16 %v147
    %v490 = vunpack.c.l.b16 %v148
    %v491 = vunpack.c.h.b16 %v148
    %v492 = vunpack.c.l.b16 %v149
    %v493 = vunpack.c.h.b16 %v149
    %v494 = vunpack.c.l.b16 %v150
    %v495 = vunpack.c.h.b16 %v150
    %v496 = vunpack.c.l.b16 %v151
    %v497 = vunpack.c.h.b16 %v151
    %v498 = vunpack.c.l.b16 %v152
    %v499 = vunpack.c.h.b16 %v152
    %v500 = vunpack.c.l.b16 %v153
    %v501 = vunpack.c.h.b16 %v153
    %v502 = vunpack.c.l.b16 %v154
    %v503 = vunpack.c.h.b16 %v154
    %v504 = vunpack.c.l.b16 %v155
    %v505 = vunpack.c.h.b16 %v155
    %v506 = vunpack.c.l.b16 %v156
    %v507 = vunpack.c.h.b16 %v156
    %v508 = vunpack.c.l.b16 %v157
    %v509 = vunpack.c.h.b16 %v157
    %v510 = vunpack.c.l.b16 %v158
    %v511 = vunpack.c.h.b16 %v158
    %v512 = vunpack.c.l.b16 %v159
    %v513 = vunpack.c.h.b16 %v159
    %v514 = vunpack.c.l.b16 %v160
    %v515 = vunpack.c.h.b16 %v160
    %v516 = vunpack.c.l.b16 %v161
    %v517 = vunpack.c.h.b16 %v161
    %v518 = vunpack.c.l.b16 %v162
    %v519 = vunpack.c.h.b16 %v162
    %v520 = vunpack.c.l.b16 %v163
    %v521 = vunpack.c.h.b16 %v163
    %v522 = vunpack.c.l.b16 %v164
    %v523 = vunpack.c.h.b16 %v164
    %v524 = vunpack.c.l.b16 %v165
    %v525 = vunpack.c.h.b16 %v165
    %v526 = vunpack.c.l.b16 %v166
    %v527 = vunpack.c.h.b16 %v166
    %v528 = vunpack.c.l.b16 %v167
    %v529 = vunpack.c.h.b16 %v167
    %v530 = vunpack.c.l.b16 %v168
    %v531 = vunpack.c.h.b16 %v168
    %v532 = vunpack.c.l.b16 %v169
    %v533 = vunpack.c.h.b16 %v169
    %v534 = vunpack.c.l.b16 %v170
    %v535 = vunpack.c.h.b16 %v170
    %v536 = vunpack.c.l.b16 %v171
    %v537 = vunpack.c.h.b16 %v171
    %v538 = vunpack.c.l.b16 %v172
    %v539 = vunpack.c.h.b16 %v172
    %v540 = vunpack.c.l.b16 %v173
    %v541 = vunpack.c.h.b16 %v173
    %v542 = vunpack.c.l.b16 %v174
    %v543 = vunpack.c.h.b16 %v174
    %v544 = vunpack.c.l.b16 %v175
    %v545 = vunpack.c.h.b16 %v175
    %v546 = vunpack.c.l.b16 %v176
    %v547 = vunpack.c.h.b16 %v176
    %v548 = vunpack.c.l.b16 %v177
    %v549 = vunpack.c.h.b16 %v177
    %v550 = vunpack.c.l.b16 %v178
    %v551 = vunpack.c.h.b16 %v178
    %v552 = vunpack.c.l.b16 %v179
    %v553 = vunpack.c.h.b16 %v179
    %v554 = vunpack.c.l.b16 %v180
    %v555 = vunpack.c.h.b16 %v180
    %v556 = vunpack.c.l.b16 %v181
    %v557 = vunpack.c.h.b16 %v181
    %v558 = vunpack.c.l.b16 %v182
    %v559 = vunpack.c.h.b16 %v182
    %v560 = vunpack.c.l.b16 %v183
    %v561 = vunpack.c.h.b16 %v183
    %v562 = vunpack.c.l.b16 %v184
    %v563 = vunpack.c.h.b16 %v184
    %v564 = vunpack.c.l.b16 %v185
    %v565 = vunpack.c.h.b16 %v185
    %v566 = vunpack.c.l.b16 %v186
    %v567 = vunpack.c.h.b16 %v186
    %v568 = vunpack.c.l.b16 %v187
    %v569 = vunpack.c.h.b16 %v187
    %v570 = vunpack.c.l.b16 %v188
    %v571 = vunpack.c.h.b16 %v188
    %v572 = vunpack.c.l.b16 %v189
    %v573 = vunpack.c.h.b16 %v189
    %v574 = vunpack.c.l.b16 %v190
    %v575 = vunpack.c.h.b16 %v190
    %v576 = vunpack.c.l.b16 %v191
    %v577 = vunpack.c.h.b16 %v191
    %v578 = vunpack.c.l.b16 %v192
    %v579 = vunpack.c.h.b16 %v192
    %v580 = vunpack.c.l.b16 %v193
    %v581 = vunpack.c.h.b16 %v193
    %v582 = vunpack.c.l.b16 %v194
    %v583 = vunpack.c.h.b16 %v194
    %v584 = vunpack.c.l.b16 %v195
    %v585 = vunpack.c.h.b16 %v195
    %v586 = vunpack.c.l.b16 %v196
    %v587 = vunpack.c.h.b16 %v196
    %v588 = vunpack.c.l.b16 %v197
    %v589 = vunpack.c.h.b16 %v197
    %v590 = vunpack.c.l.b16 %v198
    %v591 = vunpack.c.h.b16 %v198
    %v592 = vunpack.c.l.b16 %v199
    %v593 = vunpack.c.h.b16 %v199
    %v594 = vunpack.c.l.b16 %v200
    %v595 = vunpack.c.h.b16 %v200
    %v596 = vunpack.c.l.b16 %v201
    %v597 = vunpack.c.h.b16 %v201
    %v598 = vunpack.c.l.b16 %v202
    %v599 = vunpack.c.h.b16 %v202
    %v600 = vunpack.c.l.b16 %v203
    %v601 = vunpack.c.h.b16 %v203
    %v602 = vunpack.c.l.b16 %v204
    %v603 = vunpack.c.h.b16 %v204
    %v604 = vunpack.c.l.b16 %v205
    %v605 = vunpack.c.h.b16 %v205
    %v606 = vunpack.c.l.b16 %v206
    %v607 = vunpack.c.h.b16 %v206
    %v608 = vunpack.c.l.b16 %v207
    %v609 = vunpack.c.h.b16 %v207
    %v610 = vunpack.c.l.b16 %v208
    %v611 = vunpack.c.h.b16 %v208
    %v612 = vunpack.c.l.b16 %v209
    %v613 = vunpack.c.h.b16 %v209
    %v614 = vunpack.c.l.b16 %v210
    %v615 = vunpack.c.h.b16 %v210
    %v616 = vunpack.c.l.b16 %v211
    %v617 = vunpack.c.h.b16 %v211
    %v618 = vunpack.c.l.b16 %v212
    %v619 = vunpack.c.h.b16 %v212
    %v620 = vunpack.c.l.b16 %v213
    %v621 = vunpack.c.h.b16 %v213
    %v622 = vunpack.c.l.b16 %v214
    %v623 = vunpack.c.h.b16 %v214
    %v624 = vunpack.c.l.b16 %v215
    %v625 = vunpack.c.h.b16 %v215
    %v626 = vunpack.c.l.b16 %v216
    %v627 = vunpack.c.h.b16 %v216
    %v628 = vunpack.c.l.b16 %v217
    %v629 = vunpack.c.h.b16 %v217
    %v630 = vunpack.c.l.b16 %v218
    %v631 = vunpack.c.h.b16 %v218
    %v632 = vunpack.c.l.b16 %v219
    %v633 = vunpack.c.h.b16 %v219
    %v634 = vunpack.c.l.b16 %v220
    %v635 = vunpack.c.h.b16 %v220
    %v636 = vunpack.c.l.b16 %v221
    %v637 = vunpack.c.h.b16 %v221
    %v638 = vunpack.c.l.b16 %v222
    %v639 = vunpack.c.h.b16 %v222
    %v640 = vunpack.c.l.b16 %v223
    %v641 = vunpack.c.h.b16 %v223
    %v642 = vunpack.c.l.b16 %v224
    %v643 = vunpack.c.h.b16 %v224
    %v644 = vunpack.c.l.b16 %v225
    %v645 = vunpack.c.h.b16 %v225
    %v646 = vunpack.c.l.b16 %v226
    %v647 = vunpack.c.h.b16 %v226
    %v648 = vunpack.c.l.b16 %v227
    %v649 = vunpack.c.h.b16 %v227
    %v650 = vunpack.c.l.b16 %v228
    %v651 = vunpack.c.h.b16 %v228
    %v652 = vunpack.c.l.b16 %v229
    %v653 = vunpack.c.h.b16 %v229
    %v654 = vunpack.c.l.b16 %v230
    %v655 = vunpack.c.h.b16 %v230
    %v656 = vunpack.c.l.b16 %v231
    %v657 = vunpack.c.h.b16 %v231
    %v658 = vunpack.c.l.b16 %v232
    %v659 = vunpack.c.h.b16 %v232
    %v660 = vunpack.c.l.b16 %v233
    %v661 = vunpack.c.h.b16 %v233
    %v662 = vunpack.c.l.b16 %v234
    %v663 = vunpack.c.h.b16 %v234
    %v664 = vunpack.c.l.b16 %v235
    %v665 = vunpack.c.h.b16 %v235
    %v666 = vunpack.c.l.b16 %v236
    %v667 = vunpack.c.h.b16 %v236
    %v668 = vunpack.c.l.b16 %v237
    %v669 = vunpack.c.h.b16 %v237
    %v670 = vunpack.c.l.b16 %v238
    %v671 = vunpack.c.h.b16 %v238
    %v672 = vunpack.c.l.b16 %v239
    %v673 = vunpack.c.h.b16 %v239
    %v674 = vunpack.c.l.b16 %v240
    %v675 = vunpack.c.h.b16 %v240
    %v676 = vunpack.c.l.b16 %v241
    %v677 = vunpack.c.h.b16 %v241
    %v678 = vunpack.c.l.b16 %v242
    %v679 = vunpack.c.h.b16 %v242
    %v680 = vunpack.c.l.b16 %v243
    %v681 = vunpack.c.h.b16 %v243
    %v682 = vunpack.c.l.b16 %v244
    %v683 = vunpack.c.h.b16 %v244
    %v684 = vunpack.c.l.b16 %v245
    %v685 = vunpack.c.h.b16 %v245
    %v686 = vunpack.c.l.b16 %v246
    %v687 = vunpack.c.h.b16 %v246
    %v688 = vunpack.c.l.b16 %v247
    %v689 = vunpack.c.h.b16 %v247
    %v690 = vunpack.c.l.b16 %v248
    %v691 = vunpack.c.h.b16 %v248
    %v692 = vunpack.c.l.b16 %v249
    %v693 = vunpack.c.h.b16 %v249
    %v694 = vunpack.c.l.b16 %v250
    %v695 = vunpack.c.h.b16 %v250
    %v696 = vunpack.c.l.b16 %v251
    %v697 = vunpack.c.h.b16 %v251
    %v698 = vpack.c.b16 %v446, %v442
    %v699 = vpack.c.b16 %v447, %v443
    %v700 = vpack.c.b16 %v448, %v444
    %v701 = vpack.c.b16 %v449, %v445
    %v702 = vpack.c.b16 %v454, %v450
    %v703 = vpack.c.b16 %v455, %v451
    %v704 = vpack.c.b16 %v456, %v452
    %v705 = vpack.c.b16 %v457, %v453
    %v706 = vpack.c.b16 %v462, %v458
    %v707 = vpack.c.b16 %v463, %v459
    %v708 = vpack.c.b16 %v464, %v460
    %v709 = vpack.c.b16 %v465, %v461
    %v710 = vpack.c.b16 %v470, %v466
    %v711 = vpack.c.b16 %v471, %v467
    %v712 = vpack.c.b16 %v472, %v468
    %v713 = vpack.c.b16 %v473, %v469
    %v714 = vpack.c.b16 %v478, %v474
    %v715 = vpack.c.b16 %v479, %v475
    %v716 = vpack.c.b16 %v480, %v476
    %v717 = vpack.c.b16 %v481, %v477
    %v718 = vpack.c.b16 %v486, %v482
    %v719 = vpack.c.b16 %v487, %v483
    %v720 = vpack.c.b16 %v488, %v484
    %v721 = vpack.c.b16 %v489, %v485
    %v722 = vpack.c.b16 %v494, %v490
    %v723 = vpack.c.b16 %v495, %v491
    %v724 = vpack.c.b16 %v496, %v492
    %v725 = vpack.c.b16 %v497, %v493
    %v726 = vpack.c.b16 %v502, %v498
    %v727 = vpack.c.b16 %v503, %v499
    %v728 = vpack.c.b16 %v504, %v500
    %v729 = vpack.c.b16 %v505, %v501
    %v730 = vpack.c.b16 %v510, %v506
    %v731 = vpack.c.b16 %v511, %v507
    %v732 = vpack.c.b16 %v512, %v508
    %v733 = vpack.c.b16 %v513, %v509
    %v734 = vpack.c.b16 %v518, %v514
    %v735 = vpack.c.b16 %v519, %v515
    %v736 = vpack.c.b16 %v520, %v516
    %v737 = vpack.c.b16 %v521, %v517
    %v738 = vpack.c.b16 %v526, %v522
    %v739 = vpack.c.b16 %v527, %v523
    %v740 = vpack.c.b16 %v528, %v524
    %v741 = vpack.c.b16 %v529, %v525
    %v742 = vpack.c.b16 %v534, %v530
    %v743 = vpack.c.b16 %v535, %v531
    %v744 = vpack.c.b16 %v536, %v532
    %v745 = vpack.c.b16 %v537, %v533
    %v746 = vpack.c.b16 %v542, %v538
    %v747 = vpack.c.b16 %v543, %v539
    %v748 = vpack.c.b16 %v544, %v540
    %v749 = vpack.c.b16 %v545, %v541
    %v750 = vpack.c.b16 %v550, %v546
    %v751 = vpack.c.b16 %v551, %v547
    %v752 = vpack.c.b16 %v552, %v548
    %v753 = vpack.c.b16 %v553, %v549
    %v754 = vpack.c.b16 %v558, %v554
    %v755 = vpack.c.b16 %v559, %v555
    %v756 = vpack.c.b16 %v560, %v556
    %v757 = vpack.c.b16 %v561, %v557
    %v758 = vpack.c.b16 %v566, %v562
    %v759 = vpack.c.b16 %v567, %v563
    %v760 = vpack.c.b16 %v568, %v564
    %v761 = vpack.c.b16 %v569, %v565
    %v762 = vpack.c.b16 %v574, %v570
    %v763 = vpack.c.b16 %v575, %v571
    %v764 = vpack.c.b16 %v576, %v572
    %v765 = vpack.c.b16 %v577, %v573
    %v766 = vpack.c.b16 %v582, %v578
    %v767 = vpack.c.b16 %v583, %v579
    %v768 = vpack.c.b16 %v584, %v580
    %v769 = vpack.c.b16 %v585, %v581
    %v770 = vpack.c.b16 %v590, %v586
    %v771 = vpack.c.b16 %v591, %v587
    %v772 = vpack.c.b16 %v592, %v588
    %v773 = vpack.c.b16 %v593, %v589
    %v774 = vpack.c.b16 %v598, %v594
    %v775 = vpack.c.b16 %v599, %v595
    %v776 = vpack.c.b16 %v600, %v596
    %v777 = vpack.c.b16 %v601, %v597
    %v778 = vpack.c.b16 %v606, %v602
    %v779 = vpack.c.b16 %v607, %v603
    %v780 = vpack.c.b16 %v608, %v604
    %v781 = vpack.c.b16 %v609, %v605
    %v782 = vpack.c.b16 %v614, %v610
    %v783 = vpack.c.b16 %v615, %v611
    %v784 = vpack.c.b16 %v616, %v612
    %v785 = vpack.c.b16 %v617, %v613
    %v786 = vpack.c.b16 %v622, %v618
    %v787 = vpack.c.b16 %v623, %v619
    %v788 = vpack.c.b16 %v624, %v620
    %v789 = vpack.c.b16 %v625, %v621
    %v790 = vpack.c.b16 %v630, %v626
    %v791 = vpack.c.b16 %v631, %v627
    %v792 = vpack.c.b16 %v632, %v628
    %v793 = vpack.c.b16 %v633, %v629
    %v794 = vpack.c.b16 %v638, %v634
    %v795 = vpack.c.b16 %v639, %v635
    %v796 = vpack.c.b16 %v640, %v636
    %v797 = vpack.c.b16 %v641, %v637
    %v798 = vpack.c.b16 %v646, %v642
    %v799 = vpack.c.b16 %v647, %v643
    %v800 = vpack.c.b16 %v648, %v644
    %v801 = vpack.c.b16 %v649, %v645
    %v802 = vpack.c.b16 %v654, %v650
    %v803 = vpack.c.b16 %v655, %v651
    %v804 = vpack.c.b16 %v656, %v652
    %v805 = vpack.c.b16 %v657, %v653
    %v806 = vpack.c.b16 %v662, %v658
    %v807 = vpack.c.b16 %v663, %v659
    %v808 = vpack.c.b16 %v664, %v660
    %v809 = vpack.c.b16 %v665, %v661
    %v810 = vpack.c.b16 %v670, %v666
    %v811 = vpack.c.b16 %v671, %v667
    %v812 = vpack.c.b16 %v672, %v668
    %v813 = vpack.c.b16 %v673, %v669
    %v814 = vpack.c.b16 %v678, %v674
    %v815 = vpack.c.b16 %v679, %v675
    %v816 = vpack.c.b16 %v680, %v676
    %v817 = vpack.c.b16 %v681, %v677
    %v818 = vpack.c.b16 %v686, %v682
    %v819 = vpack.c.b16 %v687, %v683
    %v820 = vpack.c.b16 %v688, %v684
    %v821 = vpack.c.b16 %v689, %v685
    %v822 = vpack.c.b16 %v694, %v690
    %v823 = vpack.c.b16 %v695, %v691
    %v824 = vpack.c.b16 %v696, %v692
    %v825 = vpack.c.b16 %v697, %v693
    %954 = vmatprep.subr.bf16.mxu0 %v699
    %955 = vmatpush1.bf16.msra.mxu0 %v698
    %956 = vmatprep.subr.bf16.mxu0 %v703
    %957 = vmatpush1.bf16.msra.mxu0 %v702
    %958 = vmatprep.subr.bf16.mxu0 %v707
    %959 = vmatpush1.bf16.msra.mxu0 %v706
    %960 = vmatprep.subr.bf16.mxu0 %v711
    %961 = vmatpush1.bf16.msra.mxu0 %v710
    %962 = vmatprep.subr.bf16.mxu0 %v715
    %963 = vmatpush1.bf16.msra.mxu0 %v714
    %964 = vmatprep.subr.bf16.mxu0 %v719
    %965 = vmatpush1.bf16.msra.mxu0 %v718
    %966 = vmatprep.subr.bf16.mxu0 %v723
    %967 = vmatpush1.bf16.msra.mxu0 %v722
    %968 = vmatprep.subr.bf16.mxu0 %v727
    %969 = vmatpush1.bf16.msra.mxu0 %v726
    %970 = vmatprep.subr.bf16.mxu0 %v731
    %971 = vmatpush1.bf16.msra.mxu0 %v730
    %972 = vmatprep.subr.bf16.mxu0 %v735
    %973 = vmatpush1.bf16.msra.mxu0 %v734
    %974 = vmatprep.subr.bf16.mxu0 %v739
    %975 = vmatpush1.bf16.msra.mxu0 %v738
    %976 = vmatprep.subr.bf16.mxu0 %v743
    %977 = vmatpush1.bf16.msra.mxu0 %v742
    %978 = vmatprep.subr.bf16.mxu0 %v747
    %979 = vmatpush1.bf16.msra.mxu0 %v746
    %980 = vmatprep.subr.bf16.mxu0 %v751
    %981 = vmatpush1.bf16.msra.mxu0 %v750
    %982 = vmatprep.subr.bf16.mxu0 %v755
    %983 = vmatpush1.bf16.msra.mxu0 %v754
    %984 = vmatprep.subr.bf16.mxu0 %v759
    %985 = vmatpush1.bf16.msra.mxu0 %v758
    %986 = vmatprep.mubr.bf16.mxu0 %v299
    %987 = vmatmul.mubr.bf16.gmra.mrb[0].mxu0 %v298
    %v988 = vpop.f32.mrb[0].mxu0
    %v989 = vadd.f32 %v257, %v988
    %v990 = vpop.f32.mrb[0].mxu0
    %v991 = vadd.f32 %v261, %v990
    %v992 = vpop.f32.mrb[0].mxu0
    %v993 = vadd.f32 %v257, %v992
    %v994 = vpop.f32.mrb[0].mxu0
    %v995 = vadd.f32 %v261, %v994
    %996 = vmatprep.mubr.bf16.mxu0 %v303
    %997 = vmatmul.mubr.bf16.gmra.mrb[0].mxu0 %v302
    %v998 = vpop.f32.mrb[0].mxu0
    %v999 = vadd.f32 %v257, %v998
    %v1000 = vpop.f32.mrb[0].mxu0
    %v1001 = vadd.f32 %v261, %v1000
    %v1002 = vpop.f32.mrb[0].mxu0
    %v1003 = vadd.f32 %v257, %v1002
    %v1004 = vpop.f32.mrb[0].mxu0
    %v1005 = vadd.f32 %v261, %v1004
    %1006 = vdwg.mxu0
    %1007 = vmatprep.subr.bf16.mxu0 %v763
    %1008 = vmatpush1.bf16.msra.mxu0 %v762
    %1009 = vmatprep.subr.bf16.mxu0 %v767
    %1010 = vmatpush1.bf16.msra.mxu0 %v766
    %1011 = vmatprep.subr.bf16.mxu0 %v771
    %1012 = vmatpush1.bf16.msra.mxu0 %v770
    %1013 = vmatprep.subr.bf16.mxu0 %v775
    %1014 = vmatpush1.bf16.msra.mxu0 %v774
    %1015 = vmatprep.subr.bf16.mxu0 %v779
    %1016 = vmatpush1.bf16.msra.mxu0 %v778
    %1017 = vmatprep.subr.bf16.mxu0 %v783
    %1018 = vmatpush1.bf16.msra.mxu0 %v782
    %1019 = vmatprep.subr.bf16.mxu0 %v787
    %1020 = vmatpush1.bf16.msra.mxu0 %v786
    %1021 = vmatprep.subr.bf16.mxu0 %v791
    %1022 = vmatpush1.bf16.msra.mxu0 %v790
    %1023 = vmatprep.subr.bf16.mxu0 %v795
    %1024 = vmatpush1.bf16.msra.mxu0 %v794
    %1025 = vmatprep.subr.bf16.mxu0 %v799
    %1026 = vmatpush1.bf16.msra.mxu0 %v798
    %1027 = vmatprep.subr.bf16.mxu0 %v803
    %1028 = vmatpush1.bf16.msra.mxu0 %v802
    %1029 = vmatprep.subr.bf16.mxu0 %v807
    %1030 = vmatpush1.bf16.msra.mxu0 %v806
    %1031 = vmatprep.subr.bf16.mxu0 %v811
    %1032 = vmatpush1.bf16.msra.mxu0 %v810
    %1033 = vmatprep.subr.bf16.mxu0 %v815
    %1034 = vmatpush1.bf16.msra.mxu0 %v814
    %1035 = vmatprep.subr.bf16.mxu0 %v819
    %1036 = vmatpush1.bf16.msra.mxu0 %v818
    %1037 = vmatprep.subr.bf16.mxu0 %v823
    %1038 = vmatpush1.bf16.msra.mxu0 %v822
    %1039 = vmatprep.mubr.bf16.mxu0 %v301
    %1040 = vmatmul.mubr.bf16.gmra.mrb[0].mxu0 %v300
    %v1041 = vpop.f32.mrb[0].mxu0
    %v1042 = vadd.f32 %v989, %v1041
    %v1043 = vpop.f32.mrb[0].mxu0
    %v1044 = vadd.f32 %v991, %v1043
    %v1045 = vpop.f32.mrb[0].mxu0
    %v1046 = vadd.f32 %v993, %v1045
    %v1047 = vpop.f32.mrb[0].mxu0
    %v1048 = vadd.f32 %v995, %v1047
    %1049 = vmatprep.mubr.bf16.mxu0 %v305
    %1050 = vmatmul.mubr.bf16.gmra.mrb[0].mxu0 %v304
    %v1051 = vpop.f32.mrb[0].mxu0
    %v1052 = vadd.f32 %v999, %v1051
    %v1053 = vpop.f32.mrb[0].mxu0
    %v1054 = vadd.f32 %v1001, %v1053
    %v1055 = vpop.f32.mrb[0].mxu0
    %v1056 = vadd.f32 %v1003, %v1055
    %v1057 = vpop.f32.mrb[0].mxu0
    %v1058 = vadd.f32 %v1005, %v1057
    %1059 = vdwg.mxu0
    %1060 = vmatprep.subr.bf16.mxu0 %v701
    %1061 = vmatpush1.bf16.msra.mxu0 %v700
    %1062 = vmatprep.subr.bf16.mxu0 %v705
    %1063 = vmatpush1.bf16.msra.mxu0 %v704
    %1064 = vmatprep.subr.bf16.mxu0 %v709
    %1065 = vmatpush1.bf16.msra.mxu0 %v708
    %1066 = vmatprep.subr.bf16.mxu0 %v713
    %1067 = vmatpush1.bf16.msra.mxu0 %v712
    %1068 = vmatprep.subr.bf16.mxu0 %v717
    %1069 = vmatpush1.bf16.msra.mxu0 %v716
    %1070 = vmatprep.subr.bf16.mxu0 %v721
    %1071 = vmatpush1.bf16.msra.mxu0 %v720
    %1072 = vmatprep.subr.bf16.mxu0 %v725
    %1073 = vmatpush1.bf16.msra.mxu0 %v724
    %1074 = vmatprep.subr.bf16.mxu0 %v729
    %1075 = vmatpush1.bf16.msra.mxu0 %v728
    %1076 = vmatprep.subr.bf16.mxu0 %v733
    %1077 = vmatpush1.bf16.msra.mxu0 %v732
    %1078 = vmatprep.subr.bf16.mxu0 %v737
    %1079 = vmatpush1.bf16.msra.mxu0 %v736
    %1080 = vmatprep.subr.bf16.mxu0 %v741
    %1081 = vmatpush1.bf16.msra.mxu0 %v740
    %1082 = vmatprep.subr.bf16.mxu0 %v745
    %1083 = vmatpush1.bf16.msra.mxu0 %v744
    %1084 = vmatprep.subr.bf16.mxu0 %v749
    %1085 = vmatpush1.bf16.msra.mxu0 %v748
    %1086 = vmatprep.subr.bf16.mxu0 %v753
    %1087 = vmatpush1.bf16.msra.mxu0 %v752
    %1088 = vmatprep.subr.bf16.mxu0 %v757
    %1089 = vmatpush1.bf16.msra.mxu0 %v756
    %1090 = vmatprep.subr.bf16.mxu0 %v761
    %1091 = vmatpush1.bf16.msra.mxu0 %v760
    %1092 = vmatprep.mubr.bf16.mxu0 %v299
    %1093 = vmatmul.mubr.bf16.gmra.mrb[0].mxu0 %v298
    %v1094 = vpop.f32.mrb[0].mxu0
    %v1095 = vadd.f32 %v265, %v1094
    %v1096 = vpop.f32.mrb[0].mxu0
    %v1097 = vadd.f32 %v269, %v1096
    %v1098 = vpop.f32.mrb[0].mxu0
    %v1099 = vadd.f32 %v265, %v1098
    %v1100 = vpop.f32.mrb[0].mxu0
    %v1101 = vadd.f32 %v269, %v1100
    %1102 = vmatprep.mubr.bf16.mxu0 %v303
    %1103 = vmatmul.mubr.bf16.gmra.mrb[0].mxu0 %v302
    %v1104 = vpop.f32.mrb[0].mxu0
    %v1105 = vadd.f32 %v265, %v1104
    %v1106 = vpop.f32.mrb[0].mxu0
    %v1107 = vadd.f32 %v269, %v1106
    %v1108 = vpop.f32.mrb[0].mxu0
    %v1109 = vadd.f32 %v265, %v1108
    %v1110 = vpop.f32.mrb[0].mxu0
    %v1111 = vadd.f32 %v269, %v1110
    %1112 = vdwg.mxu0
    %1113 = vmatprep.subr.bf16.mxu0 %v765
    %1114 = vmatpush1.bf16.msra.mxu0 %v764
    %1115 = vmatprep.subr.bf16.mxu0 %v769
    %1116 = vmatpush1.bf16.msra.mxu0 %v768
    %1117 = vmatprep.subr.bf16.mxu0 %v773
    %1118 = vmatpush1.bf16.msra.mxu0 %v772
    %1119 = vmatprep.subr.bf16.mxu0 %v777
    %1120 = vmatpush1.bf16.msra.mxu0 %v776
    %1121 = vmatprep.subr.bf16.mxu0 %v781
    %1122 = vmatpush1.bf16.msra.mxu0 %v780
    %1123 = vmatprep.subr.bf16.mxu0 %v785
    %1124 = vmatpush1.bf16.msra.mxu0 %v784
    %1125 = vmatprep.subr.bf16.mxu0 %v789
    %1126 = vmatpush1.bf16.msra.mxu0 %v788
    %1127 = vmatprep.subr.bf16.mxu0 %v793
    %1128 = vmatpush1.bf16.msra.mxu0 %v792
    %1129 = vmatprep.subr.bf16.mxu0 %v797
    %1130 = vmatpush1.bf16.msra.mxu0 %v796
    %1131 = vmatprep.subr.bf16.mxu0 %v801
    %1132 = vmatpush1.bf16.msra.mxu0 %v800
    %1133 = vmatprep.subr.bf16.mxu0 %v805
    %1134 = vmatpush1.bf16.msra.mxu0 %v804
    %1135 = vmatprep.subr.bf16.mxu0 %v809
    %1136 = vmatpush1.bf16.msra.mxu0 %v808
    %1137 = vmatprep.subr.bf16.mxu0 %v813
    %1138 = vmatpush1.bf16.msra.mxu0 %v812
    %1139 = vmatprep.subr.bf16.mxu0 %v817
    %1140 = vmatpush1.bf16.msra.mxu0 %v816
    %1141 = vmatprep.subr.bf16.mxu0 %v821
    %1142 = vmatpush1.bf16.msra.mxu0 %v820
    %1143 = vmatprep.subr.bf16.mxu0 %v825
    %1144 = vmatpush1.bf16.msra.mxu0 %v824
    %1145 = vmatprep.mubr.bf16.mxu0 %v301
    %1146 = vmatmul.mubr.bf16.gmra.mrb[0].mxu0 %v300
    %v1147 = vpop.f32.mrb[0].mxu0
    %v1148 = vadd.f32 %v1095, %v1147
    %v1149 = vpop.f32.mrb[0].mxu0
    %v1150 = vadd.f32 %v1097, %v1149
    %v1151 = vpop.f32.mrb[0].mxu0
    %v1152 = vadd.f32 %v1099, %v1151
    %v1153 = vpop.f32.mrb[0].mxu0
    %v1154 = vadd.f32 %v1101, %v1153
    %1155 = vmatprep.mubr.bf16.mxu0 %v305
    %1156 = vmatmul.mubr.bf16.gmra.mrb[0].mxu0 %v304
    %v1157 = vpop.f32.mrb[0].mxu0
    %v1158 = vadd.f32 %v1105, %v1157
    %v1159 = vpop.f32.mrb[0].mxu0
    %v1160 = vadd.f32 %v1107, %v1159
    %v1161 = vpop.f32.mrb[0].mxu0
    %v1162 = vadd.f32 %v1109, %v1161
    %v1163 = vpop.f32.mrb[0].mxu0
    %v1164 = vadd.f32 %v1111, %v1163
    %1165 = vdwg.mxu0
    %v1166 = vld [vmem:[#allocation8] sm:$0xff]
    %v1167 = vld [vmem:[#allocation8 + $0x8] sm:$0xff]
    %v1168 = vld [vmem:[#allocation8 + $0x10] sm:$0xff]
    %v1169 = vld [vmem:[#allocation8 + $0x18] sm:$0xff]
    %v1170 = vld [vmem:[#allocation8 + $0x20] sm:$0xff]
    %v1171 = vld [vmem:[#allocation8 + $0x28] sm:$0xff]
    %v1172 = vld [vmem:[#allocation8 + $0x30] sm:$0xff]
    %v1173 = vld [vmem:[#allocation8 + $0x38] sm:$0xff]
    %v1174 = vld [vmem:[#allocation8 + $0x40] sm:$0xff]
    %v1175 = vld [vmem:[#allocation8 + $0x48] sm:$0xff]
    %v1176 = vld [vmem:[#allocation8 + $0x50] sm:$0xff]
    %v1177 = vld [vmem:[#allocation8 + $0x58] sm:$0xff]
    %v1178 = vld [vmem:[#allocation8 + $0x60] sm:$0xff]
    %v1179 = vld [vmem:[#allocation8 + $0x68] sm:$0xff]
    %v1180 = vld [vmem:[#allocation8 + $0x70] sm:$0xff]
    %v1181 = vld [vmem:[#allocation8 + $0x78] sm:$0xff]
    %v1182 = vld [vmem:[#allocation8 + $0x80] sm:$0xff]
    %v1183 = vld [vmem:[#allocation8 + $0x88] sm:$0xff]
    %v1184 = vld [vmem:[#allocation8 + $0x90] sm:$0xff]
    %v1185 = vld [vmem:[#allocation8 + $0x98] sm:$0xff]
    %v1186 = vld [vmem:[#allocation8 + $0xa0] sm:$0xff]
    %v1187 = vld [vmem:[#allocation8 + $0xa8] sm:$0xff]
    %v1188 = vld [vmem:[#allocation8 + $0xb0] sm:$0xff]
    %v1189 = vld [vmem:[#allocation8 + $0xb8] sm:$0xff]
    %v1190 = vld [vmem:[#allocation8 + $0xc0] sm:$0xff]
    %v1191 = vld [vmem:[#allocation8 + $0xc8] sm:$0xff]
    %v1192 = vld [vmem:[#allocation8 + $0xd0] sm:$0xff]
    %v1193 = vld [vmem:[#allocation8 + $0xd8] sm:$0xff]
    %v1194 = vld [vmem:[#allocation8 + $0xe0] sm:$0xff]
    %v1195 = vld [vmem:[#allocation8 + $0xe8] sm:$0xff]
    %v1196 = vld [vmem:[#allocation8 + $0xf0] sm:$0xff]
    %v1197 = vld [vmem:[#allocation8 + $0xf8] sm:$0xff]
    %v1198 = vld [vmem:[#allocation8 + $0x100] sm:$0xff]
    %v1199 = vld [vmem:[#allocation8 + $0x108] sm:$0xff]
    %v1200 = vld [vmem:[#allocation8 + $0x110] sm:$0xff]
    %v1201 = vld [vmem:[#allocation8 + $0x118] sm:$0xff]
    %v1202 = vld [vmem:[#allocation8 + $0x120] sm:$0xff]
    %v1203 = vld [vmem:[#allocation8 + $0x128] sm:$0xff]
    %v1204 = vld [vmem:[#allocation8 + $0x130] sm:$0xff]
    %v1205 = vld [vmem:[#allocation8 + $0x138] sm:$0xff]
    %v1206 = vld [vmem:[#allocation8 + $0x140] sm:$0xff]
    %v1207 = vld [vmem:[#allocation8 + $0x148] sm:$0xff]
    %v1208 = vld [vmem:[#allocation8 + $0x150] sm:$0xff]
    %v1209 = vld [vmem:[#allocation8 + $0x158] sm:$0xff]
    %v1210 = vld [vmem:[#allocation8 + $0x160] sm:$0xff]
    %v1211 = vld [vmem:[#allocation8 + $0x168] sm:$0xff]
    %v1212 = vld [vmem:[#allocation8 + $0x170] sm:$0xff]
    %v1213 = vld [vmem:[#allocation8 + $0x178] sm:$0xff]
    %v1214 = vld [vmem:[#allocation8 + $0x180] sm:$0xff]
    %v1215 = vld [vmem:[#allocation8 + $0x188] sm:$0xff]
    %v1216 = vld [vmem:[#allocation8 + $0x190] sm:$0xff]
    %v1217 = vld [vmem:[#allocation8 + $0x198] sm:$0xff]
    %v1218 = vld [vmem:[#allocation8 + $0x1a0] sm:$0xff]
    %v1219 = vld [vmem:[#allocation8 + $0x1a8] sm:$0xff]
    %v1220 = vld [vmem:[#allocation8 + $0x1b0] sm:$0xff]
    %v1221 = vld [vmem:[#allocation8 + $0x1b8] sm:$0xff]
    %v1222 = vld [vmem:[#allocation8 + $0x1c0] sm:$0xff]
    %v1223 = vld [vmem:[#allocation8 + $0x1c8] sm:$0xff]
    %v1224 = vld [vmem:[#allocation8 + $0x1d0] sm:$0xff]
    %v1225 = vld [vmem:[#allocation8 + $0x1d8] sm:$0xff]
    %v1226 = vld [vmem:[#allocation8 + $0x1e0] sm:$0xff]
    %v1227 = vld [vmem:[#allocation8 + $0x1e8] sm:$0xff]
    %v1228 = vld [vmem:[#allocation8 + $0x1f0] sm:$0xff]
    %v1229 = vld [vmem:[#allocation8 + $0x1f8] sm:$0xff]
    %v1230 = vld [vmem:[#allocation8 + $0x200] sm:$0xff]
    %v1231 = vld [vmem:[#allocation8 + $0x208] sm:$0xff]
    %v1232 = vld [vmem:[#allocation8 + $0x210] sm:$0xff]
    %v1233 = vld [vmem:[#allocation8 + $0x218] sm:$0xff]
    %v1234 = vld [vmem:[#allocation8 + $0x220] sm:$0xff]
    %v1235 = vld [vmem:[#allocation8 + $0x228] sm:$0xff]
    %v1236 = vld [vmem:[#allocation8 + $0x230] sm:$0xff]
    %v1237 = vld [vmem:[#allocation8 + $0x238] sm:$0xff]
    %v1238 = vld [vmem:[#allocation8 + $0x240] sm:$0xff]
    %v1239 = vld [vmem:[#allocation8 + $0x248] sm:$0xff]
    %v1240 = vld [vmem:[#allocation8 + $0x250] sm:$0xff]
    %v1241 = vld [vmem:[#allocation8 + $0x258] sm:$0xff]
    %v1242 = vld [vmem:[#allocation8 + $0x260] sm:$0xff]
    %v1243 = vld [vmem:[#allocation8 + $0x268] sm:$0xff]
    %v1244 = vld [vmem:[#allocation8 + $0x270] sm:$0xff]
    %v1245 = vld [vmem:[#allocation8 + $0x278] sm:$0xff]
    %v1246 = vld [vmem:[#allocation8 + $0x280] sm:$0xff]
    %v1247 = vld [vmem:[#allocation8 + $0x288] sm:$0xff]
    %v1248 = vld [vmem:[#allocation8 + $0x290] sm:$0xff]
    %v1249 = vld [vmem:[#allocation8 + $0x298] sm:$0xff]
    %v1250 = vld [vmem:[#allocation8 + $0x2a0] sm:$0xff]
    %v1251 = vld [vmem:[#allocation8 + $0x2a8] sm:$0xff]
    %v1252 = vld [vmem:[#allocation8 + $0x2b0] sm:$0xff]
    %v1253 = vld [vmem:[#allocation8 + $0x2b8] sm:$0xff]
    %v1254 = vld [vmem:[#allocation8 + $0x2c0] sm:$0xff]
    %v1255 = vld [vmem:[#allocation8 + $0x2c8] sm:$0xff]
    %v1256 = vld [vmem:[#allocation8 + $0x2d0] sm:$0xff]
    %v1257 = vld [vmem:[#allocation8 + $0x2d8] sm:$0xff]
    %v1258 = vld [vmem:[#allocation8 + $0x2e0] sm:$0xff]
    %v1259 = vld [vmem:[#allocation8 + $0x2e8] sm:$0xff]
    %v1260 = vld [vmem:[#allocation8 + $0x2f0] sm:$0xff]
    %v1261 = vld [vmem:[#allocation8 + $0x2f8] sm:$0xff]
    %v1262 = vld [vmem:[#allocation8 + $0x300] sm:$0xff]
    %v1263 = vld [vmem:[#allocation8 + $0x308] sm:$0xff]
    %v1264 = vld [vmem:[#allocation8 + $0x310] sm:$0xff]
    %v1265 = vld [vmem:[#allocation8 + $0x318] sm:$0xff]
    %v1266 = vld [vmem:[#allocation8 + $0x320] sm:$0xff]
    %v1267 = vld [vmem:[#allocation8 + $0x328] sm:$0xff]
    %v1268 = vld [vmem:[#allocation8 + $0x330] sm:$0xff]
    %v1269 = vld [vmem:[#allocation8 + $0x338] sm:$0xff]
    %v1270 = vld [vmem:[#allocation8 + $0x340] sm:$0xff]
    %v1271 = vld [vmem:[#allocation8 + $0x348] sm:$0xff]
    %v1272 = vld [vmem:[#allocation8 + $0x350] sm:$0xff]
    %v1273 = vld [vmem:[#allocation8 + $0x358] sm:$0xff]
    %v1274 = vld [vmem:[#allocation8 + $0x360] sm:$0xff]
    %v1275 = vld [vmem:[#allocation8 + $0x368] sm:$0xff]
    %v1276 = vld [vmem:[#allocation8 + $0x370] sm:$0xff]
    %v1277 = vld [vmem:[#allocation8 + $0x378] sm:$0xff]
    %v1278 = vld [vmem:[#allocation8 + $0x380] sm:$0xff]
    %v1279 = vld [vmem:[#allocation8 + $0x388] sm:$0xff]
    %v1280 = vld [vmem:[#allocation8 + $0x390] sm:$0xff]
    %v1281 = vld [vmem:[#allocation8 + $0x398] sm:$0xff]
    %v1282 = vld [vmem:[#allocation8 + $0x3a0] sm:$0xff]
    %v1283 = vld [vmem:[#allocation8 + $0x3a8] sm:$0xff]
    %v1284 = vld [vmem:[#allocation8 + $0x3b0] sm:$0xff]
    %v1285 = vld [vmem:[#allocation8 + $0x3b8] sm:$0xff]
    %v1286 = vld [vmem:[#allocation8 + $0x3c0] sm:$0xff]
    %v1287 = vld [vmem:[#allocation8 + $0x3c8] sm:$0xff]
    %v1288 = vld [vmem:[#allocation8 + $0x3d0] sm:$0xff]
    %v1289 = vld [vmem:[#allocation8 + $0x3d8] sm:$0xff]
    %v1290 = vld [vmem:[#allocation8 + $0x3e0] sm:$0xff]
    %v1291 = vld [vmem:[#allocation8 + $0x3e8] sm:$0xff]
    %v1292 = vld [vmem:[#allocation8 + $0x3f0] sm:$0xff]
    %v1293 = vld [vmem:[#allocation8 + $0x3f8] sm:$0xff]
    %v1294 = vld [vmem:[%s6] sm:$0xf]
    %v1296 = vlaneseq
    %v1297 = vshrl.u32 %v1296, 7
    %v1298 = vsub.s32 0, %v1297
    %v1299 = vrot.slane %v1294, %v1298
    %v1300 = vlaneseq
    %v1301 = vshrl.u32 %v1300, 7
    %v1302 = vsub.s32 1, %v1301
    %v1303 = vrot.slane %v1294, %v1302
    %v1304 = vlaneseq
    %v1305 = vshrl.u32 %v1304, 7
    %v1306 = vsub.s32 2, %v1305
    %v1307 = vrot.slane %v1294, %v1306
    %v1308 = vlaneseq
    %v1309 = vshrl.u32 %v1308, 7
    %v1310 = vsub.s32 3, %v1309
    %v1311 = vrot.slane %v1294, %v1310
    %v1444 = vunpack.c.l.b16 %v1166
    %v1445 = vunpack.c.h.b16 %v1166
    %v1446 = vunpack.c.l.b16 %v1167
    %v1447 = vunpack.c.h.b16 %v1167
    %v1448 = vunpack.c.l.b16 %v1168
    %v1449 = vunpack.c.h.b16 %v1168
    %v1450 = vunpack.c.l.b16 %v1169
    %v1451 = vunpack.c.h.b16 %v1169
    %v1452 = vunpack.c.l.b16 %v1170
    %v1453 = vunpack.c.h.b16 %v1170
    %v1454 = vunpack.c.l.b16 %v1171
    %v1455 = vunpack.c.h.b16 %v1171
    %v1456 = vunpack.c.l.b16 %v1172
    %v1457 = vunpack.c.h.b16 %v1172
    %v1458 = vunpack.c.l.b16 %v1173
    %v1459 = vunpack.c.h.b16 %v1173
    %v1460 = vunpack.c.l.b16 %v1174
    %v1461 = vunpack.c.h.b16 %v1174
    %v1462 = vunpack.c.l.b16 %v1175
    %v1463 = vunpack.c.h.b16 %v1175
    %v1464 = vunpack.c.l.b16 %v1176
    %v1465 = vunpack.c.h.b16 %v1176
    %v1466 = vunpack.c.l.b16 %v1177
    %v1467 = vunpack.c.h.b16 %v1177
    %v1468 = vunpack.c.l.b16 %v1178
    %v1469 = vunpack.c.h.b16 %v1178
    %v1470 = vunpack.c.l.b16 %v1179
    %v1471 = vunpack.c.h.b16 %v1179
    %v1472 = vunpack.c.l.b16 %v1180
    %v1473 = vunpack.c.h.b16 %v1180
    %v1474 = vunpack.c.l.b16 %v1181
    %v1475 = vunpack.c.h.b16 %v1181
    %v1476 = vunpack.c.l.b16 %v1182
    %v1477 = vunpack.c.h.b16 %v1182
    %v1478 = vunpack.c.l.b16 %v1183
    %v1479 = vunpack.c.h.b16 %v1183
    %v1480 = vunpack.c.l.b16 %v1184
    %v1481 = vunpack.c.h.b16 %v1184
    %v1482 = vunpack.c.l.b16 %v1185
    %v1483 = vunpack.c.h.b16 %v1185
    %v1484 = vunpack.c.l.b16 %v1186
    %v1485 = vunpack.c.h.b16 %v1186
    %v1486 = vunpack.c.l.b16 %v1187
    %v1487 = vunpack.c.h.b16 %v1187
    %v1488 = vunpack.c.l.b16 %v1188
    %v1489 = vunpack.c.h.b16 %v1188
    %v1490 = vunpack.c.l.b16 %v1189
    %v1491 = vunpack.c.h.b16 %v1189
    %v1492 = vunpack.c.l.b16 %v1190
    %v1493 = vunpack.c.h.b16 %v1190
    %v1494 = vunpack.c.l.b16 %v1191
    %v1495 = vunpack.c.h.b16 %v1191
    %v1496 = vunpack.c.l.b16 %v1192
    %v1497 = vunpack.c.h.b16 %v1192
    %v1498 = vunpack.c.l.b16 %v1193
    %v1499 = vunpack.c.h.b16 %v1193
    %v1500 = vunpack.c.l.b16 %v1194
    %v1501 = vunpack.c.h.b16 %v1194
    %v1502 = vunpack.c.l.b16 %v1195
    %v1503 = vunpack.c.h.b16 %v1195
    %v1504 = vunpack.c.l.b16 %v1196
    %v1505 = vunpack.c.h.b16 %v1196
    %v1506 = vunpack.c.l.b16 %v1197
    %v1507 = vunpack.c.h.b16 %v1197
    %v1508 = vunpack.c.l.b16 %v1198
    %v1509 = vunpack.c.h.b16 %v1198
    %v1510 = vunpack.c.l.b16 %v1199
    %v1511 = vunpack.c.h.b16 %v1199
    %v1512 = vunpack.c.l.b16 %v1200
    %v1513 = vunpack.c.h.b16 %v1200
    %v1514 = vunpack.c.l.b16 %v1201
    %v1515 = vunpack.c.h.b16 %v1201
    %v1516 = vunpack.c.l.b16 %v1202
    %v1517 = vunpack.c.h.b16 %v1202
    %v1518 = vunpack.c.l.b16 %v1203
    %v1519 = vunpack.c.h.b16 %v1203
    %v1520 = vunpack.c.l.b16 %v1204
    %v1521 = vunpack.c.h.b16 %v1204
    %v1522 = vunpack.c.l.b16 %v1205
    %v1523 = vunpack.c.h.b16 %v1205
    %v1524 = vunpack.c.l.b16 %v1206
    %v1525 = vunpack.c.h.b16 %v1206
    %v1526 = vunpack.c.l.b16 %v1207
    %v1527 = vunpack.c.h.b16 %v1207
    %v1528 = vunpack.c.l.b16 %v1208
    %v1529 = vunpack.c.h.b16 %v1208
    %v1530 = vunpack.c.l.b16 %v1209
    %v1531 = vunpack.c.h.b16 %v1209
    %v1532 = vunpack.c.l.b16 %v1210
    %v1533 = vunpack.c.h.b16 %v1210
    %v1534 = vunpack.c.l.b16 %v1211
    %v1535 = vunpack.c.h.b16 %v1211
    %v1536 = vunpack.c.l.b16 %v1212
    %v1537 = vunpack.c.h.b16 %v1212
    %v1538 = vunpack.c.l.b16 %v1213
    %v1539 = vunpack.c.h.b16 %v1213
    %v1540 = vunpack.c.l.b16 %v1214
    %v1541 = vunpack.c.h.b16 %v1214
    %v1542 = vunpack.c.l.b16 %v1215
    %v1543 = vunpack.c.h.b16 %v1215
    %v1544 = vunpack.c.l.b16 %v1216
    %v1545 = vunpack.c.h.b16 %v1216
    %v1546 = vunpack.c.l.b16 %v1217
    %v1547 = vunpack.c.h.b16 %v1217
    %v1548 = vunpack.c.l.b16 %v1218
    %v1549 = vunpack.c.h.b16 %v1218
    %v1550 = vunpack.c.l.b16 %v1219
    %v1551 = vunpack.c.h.b16 %v1219
    %v1552 = vunpack.c.l.b16 %v1220
    %v1553 = vunpack.c.h.b16 %v1220
    %v1554 = vunpack.c.l.b16 %v1221
    %v1555 = vunpack.c.h.b16 %v1221
    %v1556 = vunpack.c.l.b16 %v1222
    %v1557 = vunpack.c.h.b16 %v1222
    %v1558 = vunpack.c.l.b16 %v1223
    %v1559 = vunpack.c.h.b16 %v1223
    %v1560 = vunpack.c.l.b16 %v1224
    %v1561 = vunpack.c.h.b16 %v1224
    %v1562 = vunpack.c.l.b16 %v1225
    %v1563 = vunpack.c.h.b16 %v1225
    %v1564 = vunpack.c.l.b16 %v1226
    %v1565 = vunpack.c.h.b16 %v1226
    %v1566 = vunpack.c.l.b16 %v1227
    %v1567 = vunpack.c.h.b16 %v1227
    %v1568 = vunpack.c.l.b16 %v1228
    %v1569 = vunpack.c.h.b16 %v1228
    %v1570 = vunpack.c.l.b16 %v1229
    %v1571 = vunpack.c.h.b16 %v1229
    %v1572 = vunpack.c.l.b16 %v1230
    %v1573 = vunpack.c.h.b16 %v1230
    %v1574 = vunpack.c.l.b16 %v1231
    %v1575 = vunpack.c.h.b16 %v1231
    %v1576 = vunpack.c.l.b16 %v1232
    %v1577 = vunpack.c.h.b16 %v1232
    %v1578 = vunpack.c.l.b16 %v1233
    %v1579 = vunpack.c.h.b16 %v1233
    %v1580 = vunpack.c.l.b16 %v1234
    %v1581 = vunpack.c.h.b16 %v1234
    %v1582 = vunpack.c.l.b16 %v1235
    %v1583 = vunpack.c.h.b16 %v1235
    %v1584 = vunpack.c.l.b16 %v1236
    %v1585 = vunpack.c.h.b16 %v1236
    %v1586 = vunpack.c.l.b16 %v1237
    %v1587 = vunpack.c.h.b16 %v1237
    %v1588 = vunpack.c.l.b16 %v1238
    %v1589 = vunpack.c.h.b16 %v1238
    %v1590 = vunpack.c.l.b16 %v1239
    %v1591 = vunpack.c.h.b16 %v1239
    %v1592 = vunpack.c.l.b16 %v1240
    %v1593 = vunpack.c.h.b16 %v1240
    %v1594 = vunpack.c.l.b16 %v1241
    %v1595 = vunpack.c.h.b16 %v1241
    %v1596 = vunpack.c.l.b16 %v1242
    %v1597 = vunpack.c.h.b16 %v1242
    %v1598 = vunpack.c.l.b16 %v1243
    %v1599 = vunpack.c.h.b16 %v1243
    %v1600 = vunpack.c.l.b16 %v1244
    %v1601 = vunpack.c.h.b16 %v1244
    %v1602 = vunpack.c.l.b16 %v1245
    %v1603 = vunpack.c.h.b16 %v1245
    %v1604 = vunpack.c.l.b16 %v1246
    %v1605 = vunpack.c.h.b16 %v1246
    %v1606 = vunpack.c.l.b16 %v1247
    %v1607 = vunpack.c.h.b16 %v1247
    %v1608 = vunpack.c.l.b16 %v1248
    %v1609 = vunpack.c.h.b16 %v1248
    %v1610 = vunpack.c.l.b16 %v1249
    %v1611 = vunpack.c.h.b16 %v1249
    %v1612 = vunpack.c.l.b16 %v1250
    %v1613 = vunpack.c.h.b16 %v1250
    %v1614 = vunpack.c.l.b16 %v1251
    %v1615 = vunpack.c.h.b16 %v1251
    %v1616 = vunpack.c.l.b16 %v1252
    %v1617 = vunpack.c.h.b16 %v1252
    %v1618 = vunpack.c.l.b16 %v1253
    %v1619 = vunpack.c.h.b16 %v1253
    %v1620 = vunpack.c.l.b16 %v1254
    %v1621 = vunpack.c.h.b16 %v1254
    %v1622 = vunpack.c.l.b16 %v1255
    %v1623 = vunpack.c.h.b16 %v1255
    %v1624 = vunpack.c.l.b16 %v1256
    %v1625 = vunpack.c.h.b16 %v1256
    %v1626 = vunpack.c.l.b16 %v1257
    %v1627 = vunpack.c.h.b16 %v1257
    %v1628 = vunpack.c.l.b16 %v1258
    %v1629 = vunpack.c.h.b16 %v1258
    %v1630 = vunpack.c.l.b16 %v1259
    %v1631 = vunpack.c.h.b16 %v1259
    %v1632 = vunpack.c.l.b16 %v1260
    %v1633 = vunpack.c.h.b16 %v1260
    %v1634 = vunpack.c.l.b16 %v1261
    %v1635 = vunpack.c.h.b16 %v1261
    %v1636 = vunpack.c.l.b16 %v1262
    %v1637 = vunpack.c.h.b16 %v1262
    %v1638 = vunpack.c.l.b16 %v1263
    %v1639 = vunpack.c.h.b16 %v1263
    %v1640 = vunpack.c.l.b16 %v1264
    %v1641 = vunpack.c.h.b16 %v1264
    %v1642 = vunpack.c.l.b16 %v1265
    %v1643 = vunpack.c.h.b16 %v1265
    %v1644 = vunpack.c.l.b16 %v1266
    %v1645 = vunpack.c.h.b16 %v1266
    %v1646 = vunpack.c.l.b16 %v1267
    %v1647 = vunpack.c.h.b16 %v1267
    %v1648 = vunpack.c.l.b16 %v1268
    %v1649 = vunpack.c.h.b16 %v1268
    %v1650 = vunpack.c.l.b16 %v1269
    %v1651 = vunpack.c.h.b16 %v1269
    %v1652 = vunpack.c.l.b16 %v1270
    %v1653 = vunpack.c.h.b16 %v1270
    %v1654 = vunpack.c.l.b16 %v1271
    %v1655 = vunpack.c.h.b16 %v1271
    %v1656 = vunpack.c.l.b16 %v1272
    %v1657 = vunpack.c.h.b16 %v1272
    %v1658 = vunpack.c.l.b16 %v1273
    %v1659 = vunpack.c.h.b16 %v1273
    %v1660 = vunpack.c.l.b16 %v1274
    %v1661 = vunpack.c.h.b16 %v1274
    %v1662 = vunpack.c.l.b16 %v1275
    %v1663 = vunpack.c.h.b16 %v1275
    %v1664 = vunpack.c.l.b16 %v1276
    %v1665 = vunpack.c.h.b16 %v1276
    %v1666 = vunpack.c.l.b16 %v1277
    %v1667 = vunpack.c.h.b16 %v1277
    %v1668 = vunpack.c.l.b16 %v1278
    %v1669 = vunpack.c.h.b16 %v1278
    %v1670 = vunpack.c.l.b16 %v1279
    %v1671 = vunpack.c.h.b16 %v1279
    %v1672 = vunpack.c.l.b16 %v1280
    %v1673 = vunpack.c.h.b16 %v1280
    %v1674 = vunpack.c.l.b16 %v1281
    %v1675 = vunpack.c.h.b16 %v1281
    %v1676 = vunpack.c.l.b16 %v1282
    %v1677 = vunpack.c.h.b16 %v1282
    %v1678 = vunpack.c.l.b16 %v1283
    %v1679 = vunpack.c.h.b16 %v1283
    %v1680 = vunpack.c.l.b16 %v1284
    %v1681 = vunpack.c.h.b16 %v1284
    %v1682 = vunpack.c.l.b16 %v1285
    %v1683 = vunpack.c.h.b16 %v1285
    %v1684 = vunpack.c.l.b16 %v1286
    %v1685 = vunpack.c.h.b16 %v1286
    %v1686 = vunpack.c.l.b16 %v1287
    %v1687 = vunpack.c.h.b16 %v1287
    %v1688 = vunpack.c.l.b16 %v1288
    %v1689 = vunpack.c.h.b16 %v1288
    %v1690 = vunpack.c.l.b16 %v1289
    %v1691 = vunpack.c.h.b16 %v1289
    %v1692 = vunpack.c.l.b16 %v1290
    %v1693 = vunpack.c.h.b16 %v1290
    %v1694 = vunpack.c.l.b16 %v1291
    %v1695 = vunpack.c.h.b16 %v1291
    %v1696 = vunpack.c.l.b16 %v1292
    %v1697 = vunpack.c.h.b16 %v1292
    %v1698 = vunpack.c.l.b16 %v1293
    %v1699 = vunpack.c.h.b16 %v1293
    %v1700 = vpack.c.b16 %v1448, %v1444
    %v1701 = vpack.c.b16 %v1449, %v1445
    %v1702 = vpack.c.b16 %v1450, %v1446
    %v1703 = vpack.c.b16 %v1451, %v1447
    %v1704 = vpack.c.b16 %v1456, %v1452
    %v1705 = vpack.c.b16 %v1457, %v1453
    %v1706 = vpack.c.b16 %v1458, %v1454
    %v1707 = vpack.c.b16 %v1459, %v1455
    %v1708 = vpack.c.b16 %v1464, %v1460
    %v1709 = vpack.c.b16 %v1465, %v1461
    %v1710 = vpack.c.b16 %v1466, %v1462
    %v1711 = vpack.c.b16 %v1467, %v1463
    %v1712 = vpack.c.b16 %v1472, %v1468
    %v1713 = vpack.c.b16 %v1473, %v1469
    %v1714 = vpack.c.b16 %v1474, %v1470
    %v1715 = vpack.c.b16 %v1475, %v1471
    %v1716 = vpack.c.b16 %v1480, %v1476
    %v1717 = vpack.c.b16 %v1481, %v1477
    %v1718 = vpack.c.b16 %v1482, %v1478
    %v1719 = vpack.c.b16 %v1483, %v1479
    %v1720 = vpack.c.b16 %v1488, %v1484
    %v1721 = vpack.c.b16 %v1489, %v1485
    %v1722 = vpack.c.b16 %v1490, %v1486
    %v1723 = vpack.c.b16 %v1491, %v1487
    %v1724 = vpack.c.b16 %v1496, %v1492
    %v1725 = vpack.c.b16 %v1497, %v1493
    %v1726 = vpack.c.b16 %v1498, %v1494
    %v1727 = vpack.c.b16 %v1499, %v1495
    %v1728 = vpack.c.b16 %v1504, %v1500
    %v1729 = vpack.c.b16 %v1505, %v1501
    %v1730 = vpack.c.b16 %v1506, %v1502
    %v1731 = vpack.c.b16 %v1507, %v1503
    %v1732 = vpack.c.b16 %v1512, %v1508
    %v1733 = vpack.c.b16 %v1513, %v1509
    %v1734 = vpack.c.b16 %v1514, %v1510
    %v1735 = vpack.c.b16 %v1515, %v1511
    %v1736 = vpack.c.b16 %v1520, %v1516
    %v1737 = vpack.c.b16 %v1521, %v1517
    %v1738 = vpack.c.b16 %v1522, %v1518
    %v1739 = vpack.c.b16 %v1523, %v1519
    %v1740 = vpack.c.b16 %v1528, %v1524
    %v1741 = vpack.c.b16 %v1529, %v1525
    %v1742 = vpack.c.b16 %v1530, %v1526
    %v1743 = vpack.c.b16 %v1531, %v1527
    %v1744 = vpack.c.b16 %v1536, %v1532
    %v1745 = vpack.c.b16 %v1537, %v1533
    %v1746 = vpack.c.b16 %v1538, %v1534
    %v1747 = vpack.c.b16 %v1539, %v1535
    %v1748 = vpack.c.b16 %v1544, %v1540
    %v1749 = vpack.c.b16 %v1545, %v1541
    %v1750 = vpack.c.b16 %v1546, %v1542
    %v1751 = vpack.c.b16 %v1547, %v1543
    %v1752 = vpack.c.b16 %v1552, %v1548
    %v1753 = vpack.c.b16 %v1553, %v1549
    %v1754 = vpack.c.b16 %v1554, %v1550
    %v1755 = vpack.c.b16 %v1555, %v1551
    %v1756 = vpack.c.b16 %v1560, %v1556
    %v1757 = vpack.c.b16 %v1561, %v1557
    %v1758 = vpack.c.b16 %v1562, %v1558
    %v1759 = vpack.c.b16 %v1563, %v1559
    %v1760 = vpack.c.b16 %v1568, %v1564
    %v1761 = vpack.c.b16 %v1569, %v1565
    %v1762 = vpack.c.b16 %v1570, %v1566
    %v1763 = vpack.c.b16 %v1571, %v1567
    %v1764 = vpack.c.b16 %v1576, %v1572
    %v1765 = vpack.c.b16 %v1577, %v1573
    %v1766 = vpack.c.b16 %v1578, %v1574
    %v1767 = vpack.c.b16 %v1579, %v1575
    %v1768 = vpack.c.b16 %v1584, %v1580
    %v1769 = vpack.c.b16 %v1585, %v1581
    %v1770 = vpack.c.b16 %v1586, %v1582
    %v1771 = vpack.c.b16 %v1587, %v1583
    %v1772 = vpack.c.b16 %v1592, %v1588
    %v1773 = vpack.c.b16 %v1593, %v1589
    %v1774 = vpack.c.b16 %v1594, %v1590
    %v1775 = vpack.c.b16 %v1595, %v1591
    %v1776 = vpack.c.b16 %v1600, %v1596
    %v1777 = vpack.c.b16 %v1601, %v1597
    %v1778 = vpack.c.b16 %v1602, %v1598
    %v1779 = vpack.c.b16 %v1603, %v1599
    %v1780 = vpack.c.b16 %v1608, %v1604
    %v1781 = vpack.c.b16 %v1609, %v1605
    %v1782 = vpack.c.b16 %v1610, %v1606
    %v1783 = vpack.c.b16 %v1611, %v1607
    %v1784 = vpack.c.b16 %v1616, %v1612
    %v1785 = vpack.c.b16 %v1617, %v1613
    %v1786 = vpack.c.b16 %v1618, %v1614
    %v1787 = vpack.c.b16 %v1619, %v1615
    %v1788 = vpack.c.b16 %v1624, %v1620
    %v1789 = vpack.c.b16 %v1625, %v1621
    %v1790 = vpack.c.b16 %v1626, %v1622
    %v1791 = vpack.c.b16 %v1627, %v1623
    %v1792 = vpack.c.b16 %v1632, %v1628
    %v1793 = vpack.c.b16 %v1633, %v1629
    %v1794 = vpack.c.b16 %v1634, %v1630
    %v1795 = vpack.c.b16 %v1635, %v1631
    %v1796 = vpack.c.b16 %v1640, %v1636
    %v1797 = vpack.c.b16 %v1641, %v1637
    %v1798 = vpack.c.b16 %v1642, %v1638
    %v1799 = vpack.c.b16 %v1643, %v1639
    %v1800 = vpack.c.b16 %v1648, %v1644
    %v1801 = vpack.c.b16 %v1649, %v1645
    %v1802 = vpack.c.b16 %v1650, %v1646
    %v1803 = vpack.c.b16 %v1651, %v1647
    %v1804 = vpack.c.b16 %v1656, %v1652
    %v1805 = vpack.c.b16 %v1657, %v1653
    %v1806 = vpack.c.b16 %v1658, %v1654
    %v1807 = vpack.c.b16 %v1659, %v1655
    %v1808 = vpack.c.b16 %v1664, %v1660
    %v1809 = vpack.c.b16 %v1665, %v1661
    %v1810 = vpack.c.b16 %v1666, %v1662
    %v1811 = vpack.c.b16 %v1667, %v1663
    %v1812 = vpack.c.b16 %v1672, %v1668
    %v1813 = vpack.c.b16 %v1673, %v1669
    %v1814 = vpack.c.b16 %v1674, %v1670
    %v1815 = vpack.c.b16 %v1675, %v1671
    %v1816 = vpack.c.b16 %v1680, %v1676
    %v1817 = vpack.c.b16 %v1681, %v1677
    %v1818 = vpack.c.b16 %v1682, %v1678
    %v1819 = vpack.c.b16 %v1683, %v1679
    %v1820 = vpack.c.b16 %v1688, %v1684
    %v1821 = vpack.c.b16 %v1689, %v1685
    %v1822 = vpack.c.b16 %v1690, %v1686
    %v1823 = vpack.c.b16 %v1691, %v1687
    %v1824 = vpack.c.b16 %v1696, %v1692
    %v1825 = vpack.c.b16 %v1697, %v1693
    %v1826 = vpack.c.b16 %v1698, %v1694
    %v1827 = vpack.c.b16 %v1699, %v1695
    %1956 = vmatprep.subr.bf16.mxu0 %v1701
    %1957 = vmatpush1.bf16.msra.mxu0 %v1700
    %1958 = vmatprep.subr.bf16.mxu0 %v1705
    %1959 = vmatpush1.bf16.msra.mxu0 %v1704
    %1960 = vmatprep.subr.bf16.mxu0 %v1709
    %1961 = vmatpush1.bf16.msra.mxu0 %v1708
    %1962 = vmatprep.subr.bf16.mxu0 %v1713
    %1963 = vmatpush1.bf16.msra.mxu0 %v1712
    %1964 = vmatprep.subr.bf16.mxu0 %v1717
    %1965 = vmatpush1.bf16.msra.mxu0 %v1716
    %1966 = vmatprep.subr.bf16.mxu0 %v1721
    %1967 = vmatpush1.bf16.msra.mxu0 %v1720
    %1968 = vmatprep.subr.bf16.mxu0 %v1725
    %1969 = vmatpush1.bf16.msra.mxu0 %v1724
    %1970 = vmatprep.subr.bf16.mxu0 %v1729
    %1971 = vmatpush1.bf16.msra.mxu0 %v1728
    %1972 = vmatprep.subr.bf16.mxu0 %v1733
    %1973 = vmatpush1.bf16.msra.mxu0 %v1732
    %1974 = vmatprep.subr.bf16.mxu0 %v1737
    %1975 = vmatpush1.bf16.msra.mxu0 %v1736
    %1976 = vmatprep.subr.bf16.mxu0 %v1741
    %1977 = vmatpush1.bf16.msra.mxu0 %v1740
    %1978 = vmatprep.subr.bf16.mxu0 %v1745
    %1979 = vmatpush1.bf16.msra.mxu0 %v1744
    %1980 = vmatprep.subr.bf16.mxu0 %v1749
    %1981 = vmatpush1.bf16.msra.mxu0 %v1748
    %1982 = vmatprep.subr.bf16.mxu0 %v1753
    %1983 = vmatpush1.bf16.msra.mxu0 %v1752
    %1984 = vmatprep.subr.bf16.mxu0 %v1757
    %1985 = vmatpush1.bf16.msra.mxu0 %v1756
    %1986 = vmatprep.subr.bf16.mxu0 %v1761
    %1987 = vmatpush1.bf16.msra.mxu0 %v1760
    %1988 = vmatprep.mubr.bf16.mxu0 %v299
    %1989 = vmatmul.mubr.bf16.gmra.mrb[0].mxu0 %v298
    %v1990 = vpop.f32.mrb[0].mxu0
    %v1991 = vadd.f32 %v1299, %v1990
    %v1992 = vpop.f32.mrb[0].mxu0
    %v1993 = vadd.f32 %v1303, %v1992
    %v1994 = vpop.f32.mrb[0].mxu0
    %v1995 = vadd.f32 %v1299, %v1994
    %v1996 = vpop.f32.mrb[0].mxu0
    %v1997 = vadd.f32 %v1303, %v1996
    %1998 = vmatprep.mubr.bf16.mxu0 %v303
    %1999 = vmatmul.mubr.bf16.gmra.mrb[0].mxu0 %v302
    %v2000 = vpop.f32.mrb[0].mxu0
    %v2001 = vadd.f32 %v1299, %v2000
    %v2002 = vpop.f32.mrb[0].mxu0
    %v2003 = vadd.f32 %v1303, %v2002
    %v2004 = vpop.f32.mrb[0].mxu0
    %v2005 = vadd.f32 %v1299, %v2004
    %v2006 = vpop.f32.mrb[0].mxu0
    %v2007 = vadd.f32 %v1303, %v2006
    %2008 = vdwg.mxu0
    %2009 = vmatprep.subr.bf16.mxu0 %v1765
    %2010 = vmatpush1.bf16.msra.mxu0 %v1764
    %2011 = vmatprep.subr.bf16.mxu0 %v1769
    %2012 = vmatpush1.bf16.msra.mxu0 %v1768
    %2013 = vmatprep.subr.bf16.mxu0 %v1773
    %2014 = vmatpush1.bf16.msra.mxu0 %v1772
    %2015 = vmatprep.subr.bf16.mxu0 %v1777
    %2016 = vmatpush1.bf16.msra.mxu0 %v1776
    %2017 = vmatprep.subr.bf16.mxu0 %v1781
    %2018 = vmatpush1.bf16.msra.mxu0 %v1780
    %2019 = vmatprep.subr.bf16.mxu0 %v1785
    %2020 = vmatpush1.bf16.msra.mxu0 %v1784
    %2021 = vmatprep.subr.bf16.mxu0 %v1789
    %2022 = vmatpush1.bf16.msra.mxu0 %v1788
    %2023 = vmatprep.subr.bf16.mxu0 %v1793
    %2024 = vmatpush1.bf16.msra.mxu0 %v1792
    %2025 = vmatprep.subr.bf16.mxu0 %v1797
    %2026 = vmatpush1.bf16.msra.mxu0 %v1796
    %2027 = vmatprep.subr.bf16.mxu0 %v1801
    %2028 = vmatpush1.bf16.msra.mxu0 %v1800
    %2029 = vmatprep.subr.bf16.mxu0 %v1805
    %2030 = vmatpush1.bf16.msra.mxu0 %v1804
    %2031 = vmatprep.subr.bf16.mxu0 %v1809
    %2032 = vmatpush1.bf16.msra.mxu0 %v1808
    %2033 = vmatprep.subr.bf16.mxu0 %v1813
    %2034 = vmatpush1.bf16.msra.mxu0 %v1812
    %2035 = vmatprep.subr.bf16.mxu0 %v1817
    %2036 = vmatpush1.bf16.msra.mxu0 %v1816
    %2037 = vmatprep.subr.bf16.mxu0 %v1821
    %2038 = vmatpush1.bf16.msra.mxu0 %v1820
    %2039 = vmatprep.subr.bf16.mxu0 %v1825
    %2040 = vmatpush1.bf16.msra.mxu0 %v1824
    %2041 = vmatprep.mubr.bf16.mxu0 %v301
    %2042 = vmatmul.mubr.bf16.gmra.mrb[0].mxu0 %v300
    %v2043 = vpop.f32.mrb[0].mxu0
    %v2044 = vadd.f32 %v1991, %v2043
    %v2045 = vpop.f32.mrb[0].mxu0
    %v2046 = vadd.f32 %v1993, %v2045
    %v2047 = vpop.f32.mrb[0].mxu0
    %v2048 = vadd.f32 %v1995, %v2047
    %v2049 = vpop.f32.mrb[0].mxu0
    %v2050 = vadd.f32 %v1997, %v2049
    %2051 = vmatprep.mubr.bf16.mxu0 %v305
    %2052 = vmatmul.mubr.bf16.gmra.mrb[0].mxu0 %v304
    %v2053 = vpop.f32.mrb[0].mxu0
    %v2054 = vadd.f32 %v2001, %v2053
    %v2055 = vpop.f32.mrb[0].mxu0
    %v2056 = vadd.f32 %v2003, %v2055
    %v2057 = vpop.f32.mrb[0].mxu0
    %v2058 = vadd.f32 %v2005, %v2057
    %v2059 = vpop.f32.mrb[0].mxu0
    %v2060 = vadd.f32 %v2007, %v2059
    %2061 = vdwg.mxu0
    %2062 = vmatprep.subr.bf16.mxu0 %v1703
    %2063 = vmatpush1.bf16.msra.mxu0 %v1702
    %2064 = vmatprep.subr.bf16.mxu0 %v1707
    %2065 = vmatpush1.bf16.msra.mxu0 %v1706
    %2066 = vmatprep.subr.bf16.mxu0 %v1711
    %2067 = vmatpush1.bf16.msra.mxu0 %v1710
    %2068 = vmatprep.subr.bf16.mxu0 %v1715
    %2069 = vmatpush1.bf16.msra.mxu0 %v1714
    %2070 = vmatprep.subr.bf16.mxu0 %v1719
    %2071 = vmatpush1.bf16.msra.mxu0 %v1718
    %2072 = vmatprep.subr.bf16.mxu0 %v1723
    %2073 = vmatpush1.bf16.msra.mxu0 %v1722
    %2074 = vmatprep.subr.bf16.mxu0 %v1727
    %2075 = vmatpush1.bf16.msra.mxu0 %v1726
    %2076 = vmatprep.subr.bf16.mxu0 %v1731
    %2077 = vmatpush1.bf16.msra.mxu0 %v1730
    %2078 = vmatprep.subr.bf16.mxu0 %v1735
    %2079 = vmatpush1.bf16.msra.mxu0 %v1734
    %2080 = vmatprep.subr.bf16.mxu0 %v1739
    %2081 = vmatpush1.bf16.msra.mxu0 %v1738
    %2082 = vmatprep.subr.bf16.mxu0 %v1743
    %2083 = vmatpush1.bf16.msra.mxu0 %v1742
    %2084 = vmatprep.subr.bf16.mxu0 %v1747
    %2085 = vmatpush1.bf16.msra.mxu0 %v1746
    %2086 = vmatprep.subr.bf16.mxu0 %v1751
    %2087 = vmatpush1.bf16.msra.mxu0 %v1750
    %2088 = vmatprep.subr.bf16.mxu0 %v1755
    %2089 = vmatpush1.bf16.msra.mxu0 %v1754
    %2090 = vmatprep.subr.bf16.mxu0 %v1759
    %2091 = vmatpush1.bf16.msra.mxu0 %v1758
    %2092 = vmatprep.subr.bf16.mxu0 %v1763
    %2093 = vmatpush1.bf16.msra.mxu0 %v1762
    %2094 = vmatprep.mubr.bf16.mxu0 %v299
    %2095 = vmatmul.mubr.bf16.gmra.mrb[0].mxu0 %v298
    %v2096 = vpop.f32.mrb[0].mxu0
    %v2097 = vadd.f32 %v1307, %v2096
    %v2098 = vpop.f32.mrb[0].mxu0
    %v2099 = vadd.f32 %v1311, %v2098
    %v2100 = vpop.f32.mrb[0].mxu0
    %v2101 = vadd.f32 %v1307, %v2100
    %v2102 = vpop.f32.mrb[0].mxu0
    %v2103 = vadd.f32 %v1311, %v2102
    %2104 = vmatprep.mubr.bf16.mxu0 %v303
    %2105 = vmatmul.mubr.bf16.gmra.mrb[0].mxu0 %v302
    %v2106 = vpop.f32.mrb[0].mxu0
    %v2107 = vadd.f32 %v1307, %v2106
    %v2108 = vpop.f32.mrb[0].mxu0
    %v2109 = vadd.f32 %v1311, %v2108
    %v2110 = vpop.f32.mrb[0].mxu0
    %v2111 = vadd.f32 %v1307, %v2110
    %v2112 = vpop.f32.mrb[0].mxu0
    %v2113 = vadd.f32 %v1311, %v2112
    %2114 = vdwg.mxu0
    %2115 = vmatprep.subr.bf16.mxu0 %v1767
    %2116 = vmatpush1.bf16.msra.mxu0 %v1766
    %2117 = vmatprep.subr.bf16.mxu0 %v1771
    %2118 = vmatpush1.bf16.msra.mxu0 %v1770
    %2119 = vmatprep.subr.bf16.mxu0 %v1775
    %2120 = vmatpush1.bf16.msra.mxu0 %v1774
    %2121 = vmatprep.subr.bf16.mxu0 %v1779
    %2122 = vmatpush1.bf16.msra.mxu0 %v1778
    %2123 = vmatprep.subr.bf16.mxu0 %v1783
    %2124 = vmatpush1.bf16.msra.mxu0 %v1782
    %2125 = vmatprep.subr.bf16.mxu0 %v1787
    %2126 = vmatpush1.bf16.msra.mxu0 %v1786
    %2127 = vmatprep.subr.bf16.mxu0 %v1791
    %2128 = vmatpush1.bf16.msra.mxu0 %v1790
    %2129 = vmatprep.subr.bf16.mxu0 %v1795
    %2130 = vmatpush1.bf16.msra.mxu0 %v1794
    %2131 = vmatprep.subr.bf16.mxu0 %v1799
    %2132 = vmatpush1.bf16.msra.mxu0 %v1798
    %2133 = vmatprep.subr.bf16.mxu0 %v1803
    %2134 = vmatpush1.bf16.msra.mxu0 %v1802
    %2135 = vmatprep.subr.bf16.mxu0 %v1807
    %2136 = vmatpush1.bf16.msra.mxu0 %v1806
    %2137 = vmatprep.subr.bf16.mxu0 %v1811
    %2138 = vmatpush1.bf16.msra.mxu0 %v1810
    %2139 = vmatprep.subr.bf16.mxu0 %v1815
    %2140 = vmatpush1.bf16.msra.mxu0 %v1814
    %2141 = vmatprep.subr.bf16.mxu0 %v1819
    %2142 = vmatpush1.bf16.msra.mxu0 %v1818
    %2143 = vmatprep.subr.bf16.mxu0 %v1823
    %2144 = vmatpush1.bf16.msra.mxu0 %v1822
    %2145 = vmatprep.subr.bf16.mxu0 %v1827
    %2146 = vmatpush1.bf16.msra.mxu0 %v1826
    %2147 = vmatprep.mubr.bf16.mxu0 %v301
    %2148 = vmatmul.mubr.bf16.gmra.mrb[0].mxu0 %v300
    %v2149 = vpop.f32.mrb[0].mxu0
    %v2150 = vadd.f32 %v2097, %v2149
    %v2151 = vpop.f32.mrb[0].mxu0
    %v2152 = vadd.f32 %v2099, %v2151
    %v2153 = vpop.f32.mrb[0].mxu0
    %v2154 = vadd.f32 %v2101, %v2153
    %v2155 = vpop.f32.mrb[0].mxu0
    %v2156 = vadd.f32 %v2103, %v2155
    %2157 = vmatprep.mubr.bf16.mxu0 %v305
    %2158 = vmatmul.mubr.bf16.gmra.mrb[0].mxu0 %v304
    %v2159 = vpop.f32.mrb[0].mxu0
    %v2160 = vadd.f32 %v2107, %v2159
    %v2161 = vpop.f32.mrb[0].mxu0
    %v2162 = vadd.f32 %v2109, %v2161
    %v2163 = vpop.f32.mrb[0].mxu0
    %v2164 = vadd.f32 %v2111, %v2163
    %v2165 = vpop.f32.mrb[0].mxu0
    %v2166 = vadd.f32 %v2113, %v2165
    %2167 = vdwg.mxu0
    %v2168 = vld [vmem:[%s1] sm:$0xf]
    %v2169 = vmax.f32 %v1042, %v1052
    %v2170 = vmax.f32 %v1044, %v1054
    %v2171 = vmax.f32 %v1148, %v1158
    %v2172 = vmax.f32 %v1150, %v1160
    %v2173 = vmax.f32 %v1046, %v1056
    %v2174 = vmax.f32 %v1048, %v1058
    %v2175 = vmax.f32 %v1152, %v1162
    %v2176 = vmax.f32 %v1154, %v1164
    %v2178 = vlaneseq
    %v2179 = vshrl.u32 %v2178, 7
    %v2180 = vsub.s32 0, %v2179
    %v2181 = vrot.slane %v2168, %v2180
    %v2182 = vlaneseq
    %v2183 = vshrl.u32 %v2182, 7
    %v2184 = vsub.s32 1, %v2183
    %v2185 = vrot.slane %v2168, %v2184
    %v2186 = vlaneseq
    %v2187 = vshrl.u32 %v2186, 7
    %v2188 = vsub.s32 2, %v2187
    %v2189 = vrot.slane %v2168, %v2188
    %v2190 = vlaneseq
    %v2191 = vshrl.u32 %v2190, 7
    %v2192 = vsub.s32 3, %v2191
    %v2193 = vrot.slane %v2168, %v2192
    %v2198 = vmax.f32 %v2169, %v2181
    %v2199 = vmax.f32 %v2170, %v2185
    %v2200 = vmax.f32 %v2171, %v2189
    %v2201 = vmax.f32 %v2172, %v2193
    %v2202 = vmax.f32 %v2173, %v2181
    %v2203 = vmax.f32 %v2174, %v2185
    %v2204 = vmax.f32 %v2175, %v2189
    %v2205 = vmax.f32 %v2176, %v2193
    %v2206 = vsub.f32 %v2181, %v2198
    %v2207 = vsub.f32 %v2185, %v2199
    %v2208 = vsub.f32 %v2189, %v2200
    %v2209 = vsub.f32 %v2193, %v2201
    %v2210 = vsub.f32 %v2181, %v2202
    %v2211 = vsub.f32 %v2185, %v2203
    %v2212 = vsub.f32 %v2189, %v2204
    %v2213 = vsub.f32 %v2193, %v2205
    %v2214 = vmul.f32 %v2206, 1.442695
    %v2215 = vpow.pop %v2214
    %v2216 = vmul.f32 %v2207, 1.442695
    %v2217 = vpow.pop %v2216
    %v2218 = vmul.f32 %v2208, 1.442695
    %v2219 = vpow.pop %v2218
    %v2220 = vmul.f32 %v2209, 1.442695
    %v2221 = vpow.pop %v2220
    %v2222 = vmul.f32 %v2210, 1.442695
    %v2223 = vpow.pop %v2222
    %v2224 = vmul.f32 %v2211, 1.442695
    %v2225 = vpow.pop %v2224
    %v2226 = vmul.f32 %v2212, 1.442695
    %v2227 = vpow.pop %v2226
    %v2228 = vmul.f32 %v2213, 1.442695
    %v2229 = vpow.pop %v2228
    %v2230 = vsub.f32 %v1042, %v2198
    %v2231 = vsub.f32 %v1044, %v2199
    %v2232 = vsub.f32 %v1148, %v2200
    %v2233 = vsub.f32 %v1150, %v2201
    %v2234 = vsub.f32 %v1046, %v2202
    %v2235 = vsub.f32 %v1048, %v2203
    %v2236 = vsub.f32 %v1152, %v2204
    %v2237 = vsub.f32 %v1154, %v2205
    %v2238 = vmul.f32 %v2230, 1.442695
    %v2239 = vpow.pop %v2238
    %v2240 = vmul.f32 %v2231, 1.442695
    %v2241 = vpow.pop %v2240
    %v2242 = vmul.f32 %v2232, 1.442695
    %v2243 = vpow.pop %v2242
    %v2244 = vmul.f32 %v2233, 1.442695
    %v2245 = vpow.pop %v2244
    %v2246 = vmul.f32 %v2234, 1.442695
    %v2247 = vpow.pop %v2246
    %v2248 = vmul.f32 %v2235, 1.442695
    %v2249 = vpow.pop %v2248
    %v2250 = vmul.f32 %v2236, 1.442695
    %v2251 = vpow.pop %v2250
    %v2252 = vmul.f32 %v2237, 1.442695
    %v2253 = vpow.pop %v2252
    %v2254 = vsub.f32 %v1052, %v2198
    %v2255 = vsub.f32 %v1054, %v2199
    %v2256 = vsub.f32 %v1158, %v2200
    %v2257 = vsub.f32 %v1160, %v2201
    %v2258 = vsub.f32 %v1056, %v2202
    %v2259 = vsub.f32 %v1058, %v2203
    %v2260 = vsub.f32 %v1162, %v2204
    %v2261 = vsub.f32 %v1164, %v2205
    %v2262 = vmul.f32 %v2254, 1.442695
    %v2263 = vpow.pop %v2262
    %v2264 = vmul.f32 %v2255, 1.442695
    %v2265 = vpow.pop %v2264
    %v2266 = vmul.f32 %v2256, 1.442695
    %v2267 = vpow.pop %v2266
    %v2268 = vmul.f32 %v2257, 1.442695
    %v2269 = vpow.pop %v2268
    %v2270 = vmul.f32 %v2258, 1.442695
    %v2271 = vpow.pop %v2270
    %v2272 = vmul.f32 %v2259, 1.442695
    %v2273 = vpow.pop %v2272
    %v2274 = vmul.f32 %v2260, 1.442695
    %v2275 = vpow.pop %v2274
    %v2276 = vmul.f32 %v2261, 1.442695
    %v2277 = vpow.pop %v2276
    %v2278 = vadd.f32 %v2215, %v2239
    %v2279 = vadd.f32 %v2217, %v2241
    %v2280 = vadd.f32 %v2219, %v2243
    %v2281 = vadd.f32 %v2221, %v2245
    %v2282 = vadd.f32 %v2223, %v2247
    %v2283 = vadd.f32 %v2225, %v2249
    %v2284 = vadd.f32 %v2227, %v2251
    %v2285 = vadd.f32 %v2229, %v2253
    %v2286 = vadd.f32 %v2278, %v2263
    %v2287 = vadd.f32 %v2279, %v2265
    %v2288 = vadd.f32 %v2280, %v2267
    %v2289 = vadd.f32 %v2281, %v2269
    %v2290 = vadd.f32 %v2282, %v2271
    %v2291 = vadd.f32 %v2283, %v2273
    %v2292 = vadd.f32 %v2284, %v2275
    %v2293 = vadd.f32 %v2285, %v2277
    %v2294 = vrcp.pop %v2286
    %v2295 = vrcp.pop %v2287
    %v2296 = vrcp.pop %v2288
    %v2297 = vrcp.pop %v2289
    %v2298 = vrcp.pop %v2290
    %v2299 = vrcp.pop %v2291
    %v2300 = vrcp.pop %v2292
    %v2301 = vrcp.pop %v2293
    %v2302 = vmul.f32 %v2215, %v2294
    %v2303 = vmul.f32 %v2217, %v2295
    %v2304 = vmul.f32 %v2219, %v2296
    %v2305 = vmul.f32 %v2221, %v2297
    %v2306 = vmul.f32 %v2223, %v2298
    %v2307 = vmul.f32 %v2225, %v2299
    %v2308 = vmul.f32 %v2227, %v2300
    %v2309 = vmul.f32 %v2229, %v2301
    %v2310 = vld [vmem:[%s2] sm:$0xf]
    %v2312 = vlaneseq
    %v2313 = vshrl.u32 %v2312, 7
    %v2314 = vsub.s32 0, %v2313
    %v2315 = vrot.slane %v2310, %v2314
    %v2316 = vlaneseq
    %v2317 = vshrl.u32 %v2316, 7
    %v2318 = vsub.s32 1, %v2317
    %v2319 = vrot.slane %v2310, %v2318
    %v2320 = vlaneseq
    %v2321 = vshrl.u32 %v2320, 7
    %v2322 = vsub.s32 2, %v2321
    %v2323 = vrot.slane %v2310, %v2322
    %v2324 = vlaneseq
    %v2325 = vshrl.u32 %v2324, 7
    %v2326 = vsub.s32 3, %v2325
    %v2327 = vrot.slane %v2310, %v2326
    %v2332 = vmul.f32 %v2302, %v2315
    %v2333 = vmul.f32 %v2303, %v2319
    %v2334 = vmul.f32 %v2304, %v2323
    %v2335 = vmul.f32 %v2305, %v2327
    %v2336 = vmul.f32 %v2306, %v2315
    %v2337 = vmul.f32 %v2307, %v2319
    %v2338 = vmul.f32 %v2308, %v2323
    %v2339 = vmul.f32 %v2309, %v2327
    %v2340 = vmul.f32 %v2239, %v2294
    %v2341 = vmul.f32 %v2241, %v2295
    %v2342 = vmul.f32 %v2243, %v2296
    %v2343 = vmul.f32 %v2245, %v2297
    %v2344 = vmul.f32 %v2247, %v2298
    %v2345 = vmul.f32 %v2249, %v2299
    %v2346 = vmul.f32 %v2251, %v2300
    %v2347 = vmul.f32 %v2253, %v2301
    %v2348 = vmul.f32 %v2340, %v2044
    %v2349 = vmul.f32 %v2341, %v2046
    %v2350 = vmul.f32 %v2342, %v2150
    %v2351 = vmul.f32 %v2343, %v2152
    %v2352 = vmul.f32 %v2344, %v2048
    %v2353 = vmul.f32 %v2345, %v2050
    %v2354 = vmul.f32 %v2346, %v2154
    %v2355 = vmul.f32 %v2347, %v2156
    %v2356 = vadd.f32 %v2332, %v2348
    %v2357 = vadd.f32 %v2333, %v2349
    %v2358 = vadd.f32 %v2334, %v2350
    %v2359 = vadd.f32 %v2335, %v2351
    %v2360 = vadd.f32 %v2336, %v2352
    %v2361 = vadd.f32 %v2337, %v2353
    %v2362 = vadd.f32 %v2338, %v2354
    %v2363 = vadd.f32 %v2339, %v2355
    %v2364 = vmul.f32 %v2263, %v2294
    %v2365 = vmul.f32 %v2265, %v2295
    %v2366 = vmul.f32 %v2267, %v2296
    %v2367 = vmul.f32 %v2269, %v2297
    %v2368 = vmul.f32 %v2271, %v2298
    %v2369 = vmul.f32 %v2273, %v2299
    %v2370 = vmul.f32 %v2275, %v2300
    %v2371 = vmul.f32 %v2277, %v2301
    %v2372 = vmul.f32 %v2364, %v2054
    %v2373 = vmul.f32 %v2365, %v2056
    %v2374 = vmul.f32 %v2366, %v2160
    %v2375 = vmul.f32 %v2367, %v2162
    %v2376 = vmul.f32 %v2368, %v2058
    %v2377 = vmul.f32 %v2369, %v2060
    %v2378 = vmul.f32 %v2370, %v2164
    %v2379 = vmul.f32 %v2371, %v2166
    %v2380 = vadd.f32 %v2356, %v2372
    %v2381 = vadd.f32 %v2357, %v2373
    %v2382 = vadd.f32 %v2358, %v2374
    %v2383 = vadd.f32 %v2359, %v2375
    %v2384 = vadd.f32 %v2360, %v2376
    %v2385 = vadd.f32 %v2361, %v2377
    %v2386 = vadd.f32 %v2362, %v2378
    %v2387 = vadd.f32 %v2363, %v2379
    %v2388 = vpack.c.bf16 %v2384, %v2380
    %v2389 = vpack.c.bf16 %v2385, %v2381
    %v2390 = vpack.c.bf16 %v2386, %v2382
    %v2391 = vpack.c.bf16 %v2387, %v2383
    %v2392 = vld [vmem:[#allocation9] sm:$0xff]
    %v2393 = vld [vmem:[#allocation9 + $0x8] sm:$0xff]
    %v2394 = vld [vmem:[#allocation9 + $0x10] sm:$0xff]
    %v2395 = vld [vmem:[#allocation9 + $0x18] sm:$0xff]
    %v2396 = vld [vmem:[#allocation9 + $0x20] sm:$0xff]
    %v2397 = vld [vmem:[#allocation9 + $0x28] sm:$0xff]
    %v2398 = vld [vmem:[#allocation9 + $0x30] sm:$0xff]
    %v2399 = vld [vmem:[#allocation9 + $0x38] sm:$0xff]
    %v2400 = vld [vmem:[#allocation9 + $0x40] sm:$0xff]
    %v2401 = vld [vmem:[#allocation9 + $0x48] sm:$0xff]
    %v2402 = vld [vmem:[#allocation9 + $0x50] sm:$0xff]
    %v2403 = vld [vmem:[#allocation9 + $0x58] sm:$0xff]
    %v2404 = vld [vmem:[#allocation9 + $0x60] sm:$0xff]
    %v2405 = vld [vmem:[#allocation9 + $0x68] sm:$0xff]
    %v2406 = vld [vmem:[#allocation9 + $0x70] sm:$0xff]
    %v2407 = vld [vmem:[#allocation9 + $0x78] sm:$0xff]
    %v2408 = vld [vmem:[#allocation9 + $0x80] sm:$0xff]
    %v2409 = vld [vmem:[#allocation9 + $0x88] sm:$0xff]
    %v2410 = vld [vmem:[#allocation9 + $0x90] sm:$0xff]
    %v2411 = vld [vmem:[#allocation9 + $0x98] sm:$0xff]
    %v2412 = vld [vmem:[#allocation9 + $0xa0] sm:$0xff]
    %v2413 = vld [vmem:[#allocation9 + $0xa8] sm:$0xff]
    %v2414 = vld [vmem:[#allocation9 + $0xb0] sm:$0xff]
    %v2415 = vld [vmem:[#allocation9 + $0xb8] sm:$0xff]
    %v2416 = vld [vmem:[#allocation9 + $0xc0] sm:$0xff]
    %v2417 = vld [vmem:[#allocation9 + $0xc8] sm:$0xff]
    %v2418 = vld [vmem:[#allocation9 + $0xd0] sm:$0xff]
    %v2419 = vld [vmem:[#allocation9 + $0xd8] sm:$0xff]
    %v2420 = vld [vmem:[#allocation9 + $0xe0] sm:$0xff]
    %v2421 = vld [vmem:[#allocation9 + $0xe8] sm:$0xff]
    %v2422 = vld [vmem:[#allocation9 + $0xf0] sm:$0xff]
    %v2423 = vld [vmem:[#allocation9 + $0xf8] sm:$0xff]
    %v2424 = vld [vmem:[#allocation9 + $0x100] sm:$0xff]
    %v2425 = vld [vmem:[#allocation9 + $0x108] sm:$0xff]
    %v2426 = vld [vmem:[#allocation9 + $0x110] sm:$0xff]
    %v2427 = vld [vmem:[#allocation9 + $0x118] sm:$0xff]
    %v2428 = vld [vmem:[#allocation9 + $0x120] sm:$0xff]
    %v2429 = vld [vmem:[#allocation9 + $0x128] sm:$0xff]
    %v2430 = vld [vmem:[#allocation9 + $0x130] sm:$0xff]
    %v2431 = vld [vmem:[#allocation9 + $0x138] sm:$0xff]
    %v2432 = vld [vmem:[#allocation9 + $0x140] sm:$0xff]
    %v2433 = vld [vmem:[#allocation9 + $0x148] sm:$0xff]
    %v2434 = vld [vmem:[#allocation9 + $0x150] sm:$0xff]
    %v2435 = vld [vmem:[#allocation9 + $0x158] sm:$0xff]
    %v2436 = vld [vmem:[#allocation9 + $0x160] sm:$0xff]
    %v2437 = vld [vmem:[#allocation9 + $0x168] sm:$0xff]
    %v2438 = vld [vmem:[#allocation9 + $0x170] sm:$0xff]
    %v2439 = vld [vmem:[#allocation9 + $0x178] sm:$0xff]
    %v2440 = vld [vmem:[#allocation9 + $0x180] sm:$0xff]
    %v2441 = vld [vmem:[#allocation9 + $0x188] sm:$0xff]
    %v2442 = vld [vmem:[#allocation9 + $0x190] sm:$0xff]
    %v2443 = vld [vmem:[#allocation9 + $0x198] sm:$0xff]
    %v2444 = vld [vmem:[#allocation9 + $0x1a0] sm:$0xff]
    %v2445 = vld [vmem:[#allocation9 + $0x1a8] sm:$0xff]
    %v2446 = vld [vmem:[#allocation9 + $0x1b0] sm:$0xff]
    %v2447 = vld [vmem:[#allocation9 + $0x1b8] sm:$0xff]
    %v2448 = vld [vmem:[#allocation9 + $0x1c0] sm:$0xff]
    %v2449 = vld [vmem:[#allocation9 + $0x1c8] sm:$0xff]
    %v2450 = vld [vmem:[#allocation9 + $0x1d0] sm:$0xff]
    %v2451 = vld [vmem:[#allocation9 + $0x1d8] sm:$0xff]
    %v2452 = vld [vmem:[#allocation9 + $0x1e0] sm:$0xff]
    %v2453 = vld [vmem:[#allocation9 + $0x1e8] sm:$0xff]
    %v2454 = vld [vmem:[#allocation9 + $0x1f0] sm:$0xff]
    %v2455 = vld [vmem:[#allocation9 + $0x1f8] sm:$0xff]
    %v2456 = vld [vmem:[#allocation9 + $0x200] sm:$0xff]
    %v2457 = vld [vmem:[#allocation9 + $0x208] sm:$0xff]
    %v2458 = vld [vmem:[#allocation9 + $0x210] sm:$0xff]
    %v2459 = vld [vmem:[#allocation9 + $0x218] sm:$0xff]
    %v2460 = vld [vmem:[#allocation9 + $0x220] sm:$0xff]
    %v2461 = vld [vmem:[#allocation9 + $0x228] sm:$0xff]
    %v2462 = vld [vmem:[#allocation9 + $0x230] sm:$0xff]
    %v2463 = vld [vmem:[#allocation9 + $0x238] sm:$0xff]
    %v2464 = vld [vmem:[#allocation9 + $0x240] sm:$0xff]
    %v2465 = vld [vmem:[#allocation9 + $0x248] sm:$0xff]
    %v2466 = vld [vmem:[#allocation9 + $0x250] sm:$0xff]
    %v2467 = vld [vmem:[#allocation9 + $0x258] sm:$0xff]
    %v2468 = vld [vmem:[#allocation9 + $0x260] sm:$0xff]
    %v2469 = vld [vmem:[#allocation9 + $0x268] sm:$0xff]
    %v2470 = vld [vmem:[#allocation9 + $0x270] sm:$0xff]
    %v2471 = vld [vmem:[#allocation9 + $0x278] sm:$0xff]
    %v2472 = vld [vmem:[#allocation9 + $0x280] sm:$0xff]
    %v2473 = vld [vmem:[#allocation9 + $0x288] sm:$0xff]
    %v2474 = vld [vmem:[#allocation9 + $0x290] sm:$0xff]
    %v2475 = vld [vmem:[#allocation9 + $0x298] sm:$0xff]
    %v2476 = vld [vmem:[#allocation9 + $0x2a0] sm:$0xff]
    %v2477 = vld [vmem:[#allocation9 + $0x2a8] sm:$0xff]
    %v2478 = vld [vmem:[#allocation9 + $0x2b0] sm:$0xff]
    %v2479 = vld [vmem:[#allocation9 + $0x2b8] sm:$0xff]
    %v2480 = vld [vmem:[#allocation9 + $0x2c0] sm:$0xff]
    %v2481 = vld [vmem:[#allocation9 + $0x2c8] sm:$0xff]
    %v2482 = vld [vmem:[#allocation9 + $0x2d0] sm:$0xff]
    %v2483 = vld [vmem:[#allocation9 + $0x2d8] sm:$0xff]
    %v2484 = vld [vmem:[#allocation9 + $0x2e0] sm:$0xff]
    %v2485 = vld [vmem:[#allocation9 + $0x2e8] sm:$0xff]
    %v2486 = vld [vmem:[#allocation9 + $0x2f0] sm:$0xff]
    %v2487 = vld [vmem:[#allocation9 + $0x2f8] sm:$0xff]
    %v2488 = vld [vmem:[#allocation9 + $0x300] sm:$0xff]
    %v2489 = vld [vmem:[#allocation9 + $0x308] sm:$0xff]
    %v2490 = vld [vmem:[#allocation9 + $0x310] sm:$0xff]
    %v2491 = vld [vmem:[#allocation9 + $0x318] sm:$0xff]
    %v2492 = vld [vmem:[#allocation9 + $0x320] sm:$0xff]
    %v2493 = vld [vmem:[#allocation9 + $0x328] sm:$0xff]
    %v2494 = vld [vmem:[#allocation9 + $0x330] sm:$0xff]
    %v2495 = vld [vmem:[#allocation9 + $0x338] sm:$0xff]
    %v2496 = vld [vmem:[#allocation9 + $0x340] sm:$0xff]
    %v2497 = vld [vmem:[#allocation9 + $0x348] sm:$0xff]
    %v2498 = vld [vmem:[#allocation9 + $0x350] sm:$0xff]
    %v2499 = vld [vmem:[#allocation9 + $0x358] sm:$0xff]
    %v2500 = vld [vmem:[#allocation9 + $0x360] sm:$0xff]
    %v2501 = vld [vmem:[#allocation9 + $0x368] sm:$0xff]
    %v2502 = vld [vmem:[#allocation9 + $0x370] sm:$0xff]
    %v2503 = vld [vmem:[#allocation9 + $0x378] sm:$0xff]
    %v2504 = vld [vmem:[#allocation9 + $0x380] sm:$0xff]
    %v2505 = vld [vmem:[#allocation9 + $0x388] sm:$0xff]
    %v2506 = vld [vmem:[#allocation9 + $0x390] sm:$0xff]
    %v2507 = vld [vmem:[#allocation9 + $0x398] sm:$0xff]
    %v2508 = vld [vmem:[#allocation9 + $0x3a0] sm:$0xff]
    %v2509 = vld [vmem:[#allocation9 + $0x3a8] sm:$0xff]
    %v2510 = vld [vmem:[#allocation9 + $0x3b0] sm:$0xff]
    %v2511 = vld [vmem:[#allocation9 + $0x3b8] sm:$0xff]
    %v2512 = vld [vmem:[#allocation9 + $0x3c0] sm:$0xff]
    %v2513 = vld [vmem:[#allocation9 + $0x3c8] sm:$0xff]
    %v2514 = vld [vmem:[#allocation9 + $0x3d0] sm:$0xff]
    %v2515 = vld [vmem:[#allocation9 + $0x3d8] sm:$0xff]
    %v2516 = vld [vmem:[#allocation9 + $0x3e0] sm:$0xff]
    %v2517 = vld [vmem:[#allocation9 + $0x3e8] sm:$0xff]
    %v2518 = vld [vmem:[#allocation9 + $0x3f0] sm:$0xff]
    %v2519 = vld [vmem:[#allocation9 + $0x3f8] sm:$0xff]
    %v2520 = vld [vmem:[%s8] sm:$0xf]
    %v2522 = vlaneseq
    %v2523 = vshrl.u32 %v2522, 7
    %v2524 = vsub.s32 0, %v2523
    %v2525 = vrot.slane %v2520, %v2524
    %v2526 = vlaneseq
    %v2527 = vshrl.u32 %v2526, 7
    %v2528 = vsub.s32 1, %v2527
    %v2529 = vrot.slane %v2520, %v2528
    %v2530 = vlaneseq
    %v2531 = vshrl.u32 %v2530, 7
    %v2532 = vsub.s32 2, %v2531
    %v2533 = vrot.slane %v2520, %v2532
    %v2534 = vlaneseq
    %v2535 = vshrl.u32 %v2534, 7
    %v2536 = vsub.s32 3, %v2535
    %v2537 = vrot.slane %v2520, %v2536
    %v2670 = vunpack.c.l.b16 %v2392
    %v2671 = vunpack.c.h.b16 %v2392
    %v2672 = vunpack.c.l.b16 %v2393
    %v2673 = vunpack.c.h.b16 %v2393
    %v2674 = vunpack.c.l.b16 %v2394
    %v2675 = vunpack.c.h.b16 %v2394
    %v2676 = vunpack.c.l.b16 %v2395
    %v2677 = vunpack.c.h.b16 %v2395
    %v2678 = vunpack.c.l.b16 %v2396
    %v2679 = vunpack.c.h.b16 %v2396
    %v2680 = vunpack.c.l.b16 %v2397
    %v2681 = vunpack.c.h.b16 %v2397
    %v2682 = vunpack.c.l.b16 %v2398
    %v2683 = vunpack.c.h.b16 %v2398
    %v2684 = vunpack.c.l.b16 %v2399
    %v2685 = vunpack.c.h.b16 %v2399
    %v2686 = vunpack.c.l.b16 %v2400
    %v2687 = vunpack.c.h.b16 %v2400
    %v2688 = vunpack.c.l.b16 %v2401
    %v2689 = vunpack.c.h.b16 %v2401
    %v2690 = vunpack.c.l.b16 %v2402
    %v2691 = vunpack.c.h.b16 %v2402
    %v2692 = vunpack.c.l.b16 %v2403
    %v2693 = vunpack.c.h.b16 %v2403
    %v2694 = vunpack.c.l.b16 %v2404
    %v2695 = vunpack.c.h.b16 %v2404
    %v2696 = vunpack.c.l.b16 %v2405
    %v2697 = vunpack.c.h.b16 %v2405
    %v2698 = vunpack.c.l.b16 %v2406
    %v2699 = vunpack.c.h.b16 %v2406
    %v2700 = vunpack.c.l.b16 %v2407
    %v2701 = vunpack.c.h.b16 %v2407
    %v2702 = vunpack.c.l.b16 %v2408
    %v2703 = vunpack.c.h.b16 %v2408
    %v2704 = vunpack.c.l.b16 %v2409
    %v2705 = vunpack.c.h.b16 %v2409
    %v2706 = vunpack.c.l.b16 %v2410
    %v2707 = vunpack.c.h.b16 %v2410
    %v2708 = vunpack.c.l.b16 %v2411
    %v2709 = vunpack.c.h.b16 %v2411
    %v2710 = vunpack.c.l.b16 %v2412
    %v2711 = vunpack.c.h.b16 %v2412
    %v2712 = vunpack.c.l.b16 %v2413
    %v2713 = vunpack.c.h.b16 %v2413
    %v2714 = vunpack.c.l.b16 %v2414
    %v2715 = vunpack.c.h.b16 %v2414
    %v2716 = vunpack.c.l.b16 %v2415
    %v2717 = vunpack.c.h.b16 %v2415
    %v2718 = vunpack.c.l.b16 %v2416
    %v2719 = vunpack.c.h.b16 %v2416
    %v2720 = vunpack.c.l.b16 %v2417
    %v2721 = vunpack.c.h.b16 %v2417
    %v2722 = vunpack.c.l.b16 %v2418
    %v2723 = vunpack.c.h.b16 %v2418
    %v2724 = vunpack.c.l.b16 %v2419
    %v2725 = vunpack.c.h.b16 %v2419
    %v2726 = vunpack.c.l.b16 %v2420
    %v2727 = vunpack.c.h.b16 %v2420
    %v2728 = vunpack.c.l.b16 %v2421
    %v2729 = vunpack.c.h.b16 %v2421
    %v2730 = vunpack.c.l.b16 %v2422
    %v2731 = vunpack.c.h.b16 %v2422
    %v2732 = vunpack.c.l.b16 %v2423
    %v2733 = vunpack.c.h.b16 %v2423
    %v2734 = vunpack.c.l.b16 %v2424
    %v2735 = vunpack.c.h.b16 %v2424
    %v2736 = vunpack.c.l.b16 %v2425
    %v2737 = vunpack.c.h.b16 %v2425
    %v2738 = vunpack.c.l.b16 %v2426
    %v2739 = vunpack.c.h.b16 %v2426
    %v2740 = vunpack.c.l.b16 %v2427
    %v2741 = vunpack.c.h.b16 %v2427
    %v2742 = vunpack.c.l.b16 %v2428
    %v2743 = vunpack.c.h.b16 %v2428
    %v2744 = vunpack.c.l.b16 %v2429
    %v2745 = vunpack.c.h.b16 %v2429
    %v2746 = vunpack.c.l.b16 %v2430
    %v2747 = vunpack.c.h.b16 %v2430
    %v2748 = vunpack.c.l.b16 %v2431
    %v2749 = vunpack.c.h.b16 %v2431
    %v2750 = vunpack.c.l.b16 %v2432
    %v2751 = vunpack.c.h.b16 %v2432
    %v2752 = vunpack.c.l.b16 %v2433
    %v2753 = vunpack.c.h.b16 %v2433
    %v2754 = vunpack.c.l.b16 %v2434
    %v2755 = vunpack.c.h.b16 %v2434
    %v2756 = vunpack.c.l.b16 %v2435
    %v2757 = vunpack.c.h.b16 %v2435
    %v2758 = vunpack.c.l.b16 %v2436
    %v2759 = vunpack.c.h.b16 %v2436
    %v2760 = vunpack.c.l.b16 %v2437
    %v2761 = vunpack.c.h.b16 %v2437
    %v2762 = vunpack.c.l.b16 %v2438
    %v2763 = vunpack.c.h.b16 %v2438
    %v2764 = vunpack.c.l.b16 %v2439
    %v2765 = vunpack.c.h.b16 %v2439
    %v2766 = vunpack.c.l.b16 %v2440
    %v2767 = vunpack.c.h.b16 %v2440
    %v2768 = vunpack.c.l.b16 %v2441
    %v2769 = vunpack.c.h.b16 %v2441
    %v2770 = vunpack.c.l.b16 %v2442
    %v2771 = vunpack.c.h.b16 %v2442
    %v2772 = vunpack.c.l.b16 %v2443
    %v2773 = vunpack.c.h.b16 %v2443
    %v2774 = vunpack.c.l.b16 %v2444
    %v2775 = vunpack.c.h.b16 %v2444
    %v2776 = vunpack.c.l.b16 %v2445
    %v2777 = vunpack.c.h.b16 %v2445
    %v2778 = vunpack.c.l.b16 %v2446
    %v2779 = vunpack.c.h.b16 %v2446
    %v2780 = vunpack.c.l.b16 %v2447
    %v2781 = vunpack.c.h.b16 %v2447
    %v2782 = vunpack.c.l.b16 %v2448
    %v2783 = vunpack.c.h.b16 %v2448
    %v2784 = vunpack.c.l.b16 %v2449
    %v2785 = vunpack.c.h.b16 %v2449
    %v2786 = vunpack.c.l.b16 %v2450
    %v2787 = vunpack.c.h.b16 %v2450
    %v2788 = vunpack.c.l.b16 %v2451
    %v2789 = vunpack.c.h.b16 %v2451
    %v2790 = vunpack.c.l.b16 %v2452
    %v2791 = vunpack.c.h.b16 %v2452
    %v2792 = vunpack.c.l.b16 %v2453
    %v2793 = vunpack.c.h.b16 %v2453
    %v2794 = vunpack.c.l.b16 %v2454
    %v2795 = vunpack.c.h.b16 %v2454
    %v2796 = vunpack.c.l.b16 %v2455
    %v2797 = vunpack.c.h.b16 %v2455
    %v2798 = vunpack.c.l.b16 %v2456
    %v2799 = vunpack.c.h.b16 %v2456
    %v2800 = vunpack.c.l.b16 %v2457
    %v2801 = vunpack.c.h.b16 %v2457
    %v2802 = vunpack.c.l.b16 %v2458
    %v2803 = vunpack.c.h.b16 %v2458
    %v2804 = vunpack.c.l.b16 %v2459
    %v2805 = vunpack.c.h.b16 %v2459
    %v2806 = vunpack.c.l.b16 %v2460
    %v2807 = vunpack.c.h.b16 %v2460
    %v2808 = vunpack.c.l.b16 %v2461
    %v2809 = vunpack.c.h.b16 %v2461
    %v2810 = vunpack.c.l.b16 %v2462
    %v2811 = vunpack.c.h.b16 %v2462
    %v2812 = vunpack.c.l.b16 %v2463
    %v2813 = vunpack.c.h.b16 %v2463
    %v2814 = vunpack.c.l.b16 %v2464
    %v2815 = vunpack.c.h.b16 %v2464
    %v2816 = vunpack.c.l.b16 %v2465
    %v2817 = vunpack.c.h.b16 %v2465
    %v2818 = vunpack.c.l.b16 %v2466
    %v2819 = vunpack.c.h.b16 %v2466
    %v2820 = vunpack.c.l.b16 %v2467
    %v2821 = vunpack.c.h.b16 %v2467
    %v2822 = vunpack.c.l.b16 %v2468
    %v2823 = vunpack.c.h.b16 %v2468
    %v2824 = vunpack.c.l.b16 %v2469
    %v2825 = vunpack.c.h.b16 %v2469
    %v2826 = vunpack.c.l.b16 %v2470
    %v2827 = vunpack.c.h.b16 %v2470
    %v2828 = vunpack.c.l.b16 %v2471
    %v2829 = vunpack.c.h.b16 %v2471
    %v2830 = vunpack.c.l.b16 %v2472
    %v2831 = vunpack.c.h.b16 %v2472
    %v2832 = vunpack.c.l.b16 %v2473
    %v2833 = vunpack.c.h.b16 %v2473
    %v2834 = vunpack.c.l.b16 %v2474
    %v2835 = vunpack.c.h.b16 %v2474
    %v2836 = vunpack.c.l.b16 %v2475
    %v2837 = vunpack.c.h.b16 %v2475
    %v2838 = vunpack.c.l.b16 %v2476
    %v2839 = vunpack.c.h.b16 %v2476
    %v2840 = vunpack.c.l.b16 %v2477
    %v2841 = vunpack.c.h.b16 %v2477
    %v2842 = vunpack.c.l.b16 %v2478
    %v2843 = vunpack.c.h.b16 %v2478
    %v2844 = vunpack.c.l.b16 %v2479
    %v2845 = vunpack.c.h.b16 %v2479
    %v2846 = vunpack.c.l.b16 %v2480
    %v2847 = vunpack.c.h.b16 %v2480
    %v2848 = vunpack.c.l.b16 %v2481
    %v2849 = vunpack.c.h.b16 %v2481
    %v2850 = vunpack.c.l.b16 %v2482
    %v2851 = vunpack.c.h.b16 %v2482
    %v2852 = vunpack.c.l.b16 %v2483
    %v2853 = vunpack.c.h.b16 %v2483
    %v2854 = vunpack.c.l.b16 %v2484
    %v2855 = vunpack.c.h.b16 %v2484
    %v2856 = vunpack.c.l.b16 %v2485
    %v2857 = vunpack.c.h.b16 %v2485
    %v2858 = vunpack.c.l.b16 %v2486
    %v2859 = vunpack.c.h.b16 %v2486
    %v2860 = vunpack.c.l.b16 %v2487
    %v2861 = vunpack.c.h.b16 %v2487
    %v2862 = vunpack.c.l.b16 %v2488
    %v2863 = vunpack.c.h.b16 %v2488
    %v2864 = vunpack.c.l.b16 %v2489
    %v2865 = vunpack.c.h.b16 %v2489
    %v2866 = vunpack.c.l.b16 %v2490
    %v2867 = vunpack.c.h.b16 %v2490
    %v2868 = vunpack.c.l.b16 %v2491
    %v2869 = vunpack.c.h.b16 %v2491
    %v2870 = vunpack.c.l.b16 %v2492
    %v2871 = vunpack.c.h.b16 %v2492
    %v2872 = vunpack.c.l.b16 %v2493
    %v2873 = vunpack.c.h.b16 %v2493
    %v2874 = vunpack.c.l.b16 %v2494
    %v2875 = vunpack.c.h.b16 %v2494
    %v2876 = vunpack.c.l.b16 %v2495
    %v2877 = vunpack.c.h.b16 %v2495
    %v2878 = vunpack.c.l.b16 %v2496
    %v2879 = vunpack.c.h.b16 %v2496
    %v2880 = vunpack.c.l.b16 %v2497
    %v2881 = vunpack.c.h.b16 %v2497
    %v2882 = vunpack.c.l.b16 %v2498
    %v2883 = vunpack.c.h.b16 %v2498
    %v2884 = vunpack.c.l.b16 %v2499
    %v2885 = vunpack.c.h.b16 %v2499
    %v2886 = vunpack.c.l.b16 %v2500
    %v2887 = vunpack.c.h.b16 %v2500
    %v2888 = vunpack.c.l.b16 %v2501
    %v2889 = vunpack.c.h.b16 %v2501
    %v2890 = vunpack.c.l.b16 %v2502
    %v2891 = vunpack.c.h.b16 %v2502
    %v2892 = vunpack.c.l.b16 %v2503
    %v2893 = vunpack.c.h.b16 %v2503
    %v2894 = vunpack.c.l.b16 %v2504
    %v2895 = vunpack.c.h.b16 %v2504
    %v2896 = vunpack.c.l.b16 %v2505
    %v2897 = vunpack.c.h.b16 %v2505
    %v2898 = vunpack.c.l.b16 %v2506
    %v2899 = vunpack.c.h.b16 %v2506
    %v2900 = vunpack.c.l.b16 %v2507
    %v2901 = vunpack.c.h.b16 %v2507
    %v2902 = vunpack.c.l.b16 %v2508
    %v2903 = vunpack.c.h.b16 %v2508
    %v2904 = vunpack.c.l.b16 %v2509
    %v2905 = vunpack.c.h.b16 %v2509
    %v2906 = vunpack.c.l.b16 %v2510
    %v2907 = vunpack.c.h.b16 %v2510
    %v2908 = vunpack.c.l.b16 %v2511
    %v2909 = vunpack.c.h.b16 %v2511
    %v2910 = vunpack.c.l.b16 %v2512
    %v2911 = vunpack.c.h.b16 %v2512
    %v2912 = vunpack.c.l.b16 %v2513
    %v2913 = vunpack.c.h.b16 %v2513
    %v2914 = vunpack.c.l.b16 %v2514
    %v2915 = vunpack.c.h.b16 %v2514
    %v2916 = vunpack.c.l.b16 %v2515
    %v2917 = vunpack.c.h.b16 %v2515
    %v2918 = vunpack.c.l.b16 %v2516
    %v2919 = vunpack.c.h.b16 %v2516
    %v2920 = vunpack.c.l.b16 %v2517
    %v2921 = vunpack.c.h.b16 %v2517
    %v2922 = vunpack.c.l.b16 %v2518
    %v2923 = vunpack.c.h.b16 %v2518
    %v2924 = vunpack.c.l.b16 %v2519
    %v2925 = vunpack.c.h.b16 %v2519
    %v2926 = vpack.c.b16 %v2674, %v2670
    %v2927 = vpack.c.b16 %v2675, %v2671
    %v2928 = vpack.c.b16 %v2676, %v2672
    %v2929 = vpack.c.b16 %v2677, %v2673
    %v2930 = vpack.c.b16 %v2682, %v2678
    %v2931 = vpack.c.b16 %v2683, %v2679
    %v2932 = vpack.c.b16 %v2684, %v2680
    %v2933 = vpack.c.b16 %v2685, %v2681
    %v2934 = vpack.c.b16 %v2690, %v2686
    %v2935 = vpack.c.b16 %v2691, %v2687
    %v2936 = vpack.c.b16 %v2692, %v2688
    %v2937 = vpack.c.b16 %v2693, %v2689
    %v2938 = vpack.c.b16 %v2698, %v2694
    %v2939 = vpack.c.b16 %v2699, %v2695
    %v2940 = vpack.c.b16 %v2700, %v2696
    %v2941 = vpack.c.b16 %v2701, %v2697
    %v2942 = vpack.c.b16 %v2706, %v2702
    %v2943 = vpack.c.b16 %v2707, %v2703
    %v2944 = vpack.c.b16 %v2708, %v2704
    %v2945 = vpack.c.b16 %v2709, %v2705
    %v2946 = vpack.c.b16 %v2714, %v2710
    %v2947 = vpack.c.b16 %v2715, %v2711
    %v2948 = vpack.c.b16 %v2716, %v2712
    %v2949 = vpack.c.b16 %v2717, %v2713
    %v2950 = vpack.c.b16 %v2722, %v2718
    %v2951 = vpack.c.b16 %v2723, %v2719
    %v2952 = vpack.c.b16 %v2724, %v2720
    %v2953 = vpack.c.b16 %v2725, %v2721
    %v2954 = vpack.c.b16 %v2730, %v2726
    %v2955 = vpack.c.b16 %v2731, %v2727
    %v2956 = vpack.c.b16 %v2732, %v2728
    %v2957 = vpack.c.b16 %v2733, %v2729
    %v2958 = vpack.c.b16 %v2738, %v2734
    %v2959 = vpack.c.b16 %v2739, %v2735
    %v2960 = vpack.c.b16 %v2740, %v2736
    %v2961 = vpack.c.b16 %v2741, %v2737
    %v2962 = vpack.c.b16 %v2746, %v2742
    %v2963 = vpack.c.b16 %v2747, %v2743
    %v2964 = vpack.c.b16 %v2748, %v2744
    %v2965 = vpack.c.b16 %v2749, %v2745
    %v2966 = vpack.c.b16 %v2754, %v2750
    %v2967 = vpack.c.b16 %v2755, %v2751
    %v2968 = vpack.c.b16 %v2756, %v2752
    %v2969 = vpack.c.b16 %v2757, %v2753
    %v2970 = vpack.c.b16 %v2762, %v2758
    %v2971 = vpack.c.b16 %v2763, %v2759
    %v2972 = vpack.c.b16 %v2764, %v2760
    %v2973 = vpack.c.b16 %v2765, %v2761
    %v2974 = vpack.c.b16 %v2770, %v2766
    %v2975 = vpack.c.b16 %v2771, %v2767
    %v2976 = vpack.c.b16 %v2772, %v2768
    %v2977 = vpack.c.b16 %v2773, %v2769
    %v2978 = vpack.c.b16 %v2778, %v2774
    %v2979 = vpack.c.b16 %v2779, %v2775
    %v2980 = vpack.c.b16 %v2780, %v2776
    %v2981 = vpack.c.b16 %v2781, %v2777
    %v2982 = vpack.c.b16 %v2786, %v2782
    %v2983 = vpack.c.b16 %v2787, %v2783
    %v2984 = vpack.c.b16 %v2788, %v2784
    %v2985 = vpack.c.b16 %v2789, %v2785
    %v2986 = vpack.c.b16 %v2794, %v2790
    %v2987 = vpack.c.b16 %v2795, %v2791
    %v2988 = vpack.c.b16 %v2796, %v2792
    %v2989 = vpack.c.b16 %v2797, %v2793
    %v2990 = vpack.c.b16 %v2802, %v2798
    %v2991 = vpack.c.b16 %v2803, %v2799
    %v2992 = vpack.c.b16 %v2804, %v2800
    %v2993 = vpack.c.b16 %v2805, %v2801
    %v2994 = vpack.c.b16 %v2810, %v2806
    %v2995 = vpack.c.b16 %v2811, %v2807
    %v2996 = vpack.c.b16 %v2812, %v2808
    %v2997 = vpack.c.b16 %v2813, %v2809
    %v2998 = vpack.c.b16 %v2818, %v2814
    %v2999 = vpack.c.b16 %v2819, %v2815
    %v3000 = vpack.c.b16 %v2820, %v2816
    %v3001 = vpack.c.b16 %v2821, %v2817
    %v3002 = vpack.c.b16 %v2826, %v2822
    %v3003 = vpack.c.b16 %v2827, %v2823
    %v3004 = vpack.c.b16 %v2828, %v2824
    %v3005 = vpack.c.b16 %v2829, %v2825
    %v3006 = vpack.c.b16 %v2834, %v2830
    %v3007 = vpack.c.b16 %v2835, %v2831
    %v3008 = vpack.c.b16 %v2836, %v2832
    %v3009 = vpack.c.b16 %v2837, %v2833
    %v3010 = vpack.c.b16 %v2842, %v2838
    %v3011 = vpack.c.b16 %v2843, %v2839
    %v3012 = vpack.c.b16 %v2844, %v2840
    %v3013 = vpack.c.b16 %v2845, %v2841
    %v3014 = vpack.c.b16 %v2850, %v2846
    %v3015 = vpack.c.b16 %v2851, %v2847
    %v3016 = vpack.c.b16 %v2852, %v2848
    %v3017 = vpack.c.b16 %v2853, %v2849
    %v3018 = vpack.c.b16 %v2858, %v2854
    %v3019 = vpack.c.b16 %v2859, %v2855
    %v3020 = vpack.c.b16 %v2860, %v2856
    %v3021 = vpack.c.b16 %v2861, %v2857
    %v3022 = vpack.c.b16 %v2866, %v2862
    %v3023 = vpack.c.b16 %v2867, %v2863
    %v3024 = vpack.c.b16 %v2868, %v2864
    %v3025 = vpack.c.b16 %v2869, %v2865
    %v3026 = vpack.c.b16 %v2874, %v2870
    %v3027 = vpack.c.b16 %v2875, %v2871
    %v3028 = vpack.c.b16 %v2876, %v2872
    %v3029 = vpack.c.b16 %v2877, %v2873
    %v3030 = vpack.c.b16 %v2882, %v2878
    %v3031 = vpack.c.b16 %v2883, %v2879
    %v3032 = vpack.c.b16 %v2884, %v2880
    %v3033 = vpack.c.b16 %v2885, %v2881
    %v3034 = vpack.c.b16 %v2890, %v2886
    %v3035 = vpack.c.b16 %v2891, %v2887
    %v3036 = vpack.c.b16 %v2892, %v2888
    %v3037 = vpack.c.b16 %v2893, %v2889
    %v3038 = vpack.c.b16 %v2898, %v2894
    %v3039 = vpack.c.b16 %v2899, %v2895
    %v3040 = vpack.c.b16 %v2900, %v2896
    %v3041 = vpack.c.b16 %v2901, %v2897
    %v3042 = vpack.c.b16 %v2906, %v2902
    %v3043 = vpack.c.b16 %v2907, %v2903
    %v3044 = vpack.c.b16 %v2908, %v2904
    %v3045 = vpack.c.b16 %v2909, %v2905
    %v3046 = vpack.c.b16 %v2914, %v2910
    %v3047 = vpack.c.b16 %v2915, %v2911
    %v3048 = vpack.c.b16 %v2916, %v2912
    %v3049 = vpack.c.b16 %v2917, %v2913
    %v3050 = vpack.c.b16 %v2922, %v2918
    %v3051 = vpack.c.b16 %v2923, %v2919
    %v3052 = vpack.c.b16 %v2924, %v2920
    %v3053 = vpack.c.b16 %v2925, %v2921
    %3182 = vmatprep.subr.bf16.mxu0 %v2927
    %3183 = vmatpush1.bf16.msra.mxu0 %v2926
    %3184 = vmatprep.subr.bf16.mxu0 %v2931
    %3185 = vmatpush1.bf16.msra.mxu0 %v2930
    %3186 = vmatprep.subr.bf16.mxu0 %v2935
    %3187 = vmatpush1.bf16.msra.mxu0 %v2934
    %3188 = vmatprep.subr.bf16.mxu0 %v2939
    %3189 = vmatpush1.bf16.msra.mxu0 %v2938
    %3190 = vmatprep.subr.bf16.mxu0 %v2943
    %3191 = vmatpush1.bf16.msra.mxu0 %v2942
    %3192 = vmatprep.subr.bf16.mxu0 %v2947
    %3193 = vmatpush1.bf16.msra.mxu0 %v2946
    %3194 = vmatprep.subr.bf16.mxu0 %v2951
    %3195 = vmatpush1.bf16.msra.mxu0 %v2950
    %3196 = vmatprep.subr.bf16.mxu0 %v2955
    %3197 = vmatpush1.bf16.msra.mxu0 %v2954
    %3198 = vmatprep.subr.bf16.mxu0 %v2959
    %3199 = vmatpush1.bf16.msra.mxu0 %v2958
    %3200 = vmatprep.subr.bf16.mxu0 %v2963
    %3201 = vmatpush1.bf16.msra.mxu0 %v2962
    %3202 = vmatprep.subr.bf16.mxu0 %v2967
    %3203 = vmatpush1.bf16.msra.mxu0 %v2966
    %3204 = vmatprep.subr.bf16.mxu0 %v2971
    %3205 = vmatpush1.bf16.msra.mxu0 %v2970
    %3206 = vmatprep.subr.bf16.mxu0 %v2975
    %3207 = vmatpush1.bf16.msra.mxu0 %v2974
    %3208 = vmatprep.subr.bf16.mxu0 %v2979
    %3209 = vmatpush1.bf16.msra.mxu0 %v2978
    %3210 = vmatprep.subr.bf16.mxu0 %v2983
    %3211 = vmatpush1.bf16.msra.mxu0 %v2982
    %3212 = vmatprep.subr.bf16.mxu0 %v2987
    %3213 = vmatpush1.bf16.msra.mxu0 %v2986
    %3214 = vmatprep.mubr.bf16.mxu0 %v2389
    %3215 = vmatmul.mubr.bf16.gmra.mrb[0].mxu0 %v2388
    %v3216 = vpop.f32.mrb[0].mxu0
    %v3217 = vadd.f32 %v2525, %v3216
    %v3218 = vpop.f32.mrb[0].mxu0
    %v3219 = vadd.f32 %v2529, %v3218
    %v3220 = vpop.f32.mrb[0].mxu0
    %v3221 = vadd.f32 %v2525, %v3220
    %v3222 = vpop.f32.mrb[0].mxu0
    %v3223 = vadd.f32 %v2529, %v3222
    %3224 = vdwg.mxu0
    %3225 = vmatprep.subr.bf16.mxu0 %v2991
    %3226 = vmatpush1.bf16.msra.mxu0 %v2990
    %3227 = vmatprep.subr.bf16.mxu0 %v2995
    %3228 = vmatpush1.bf16.msra.mxu0 %v2994
    %3229 = vmatprep.subr.bf16.mxu0 %v2999
    %3230 = vmatpush1.bf16.msra.mxu0 %v2998
    %3231 = vmatprep.subr.bf16.mxu0 %v3003
    %3232 = vmatpush1.bf16.msra.mxu0 %v3002
    %3233 = vmatprep.subr.bf16.mxu0 %v3007
    %3234 = vmatpush1.bf16.msra.mxu0 %v3006
    %3235 = vmatprep.subr.bf16.mxu0 %v3011
    %3236 = vmatpush1.bf16.msra.mxu0 %v3010
    %3237 = vmatprep.subr.bf16.mxu0 %v3015
    %3238 = vmatpush1.bf16.msra.mxu0 %v3014
    %3239 = vmatprep.subr.bf16.mxu0 %v3019
    %3240 = vmatpush1.bf16.msra.mxu0 %v3018
    %3241 = vmatprep.subr.bf16.mxu0 %v3023
    %3242 = vmatpush1.bf16.msra.mxu0 %v3022
    %3243 = vmatprep.subr.bf16.mxu0 %v3027
    %3244 = vmatpush1.bf16.msra.mxu0 %v3026
    %3245 = vmatprep.subr.bf16.mxu0 %v3031
    %3246 = vmatpush1.bf16.msra.mxu0 %v3030
    %3247 = vmatprep.subr.bf16.mxu0 %v3035
    %3248 = vmatpush1.bf16.msra.mxu0 %v3034
    %3249 = vmatprep.subr.bf16.mxu0 %v3039
    %3250 = vmatpush1.bf16.msra.mxu0 %v3038
    %3251 = vmatprep.subr.bf16.mxu0 %v3043
    %3252 = vmatpush1.bf16.msra.mxu0 %v3042
    %3253 = vmatprep.subr.bf16.mxu0 %v3047
    %3254 = vmatpush1.bf16.msra.mxu0 %v3046
    %3255 = vmatprep.subr.bf16.mxu0 %v3051
    %3256 = vmatpush1.bf16.msra.mxu0 %v3050
    %3257 = vmatprep.mubr.bf16.mxu0 %v2391
    %3258 = vmatmul.mubr.bf16.gmra.mrb[0].mxu0 %v2390
    %v3259 = vpop.f32.mrb[0].mxu0
    %v3260 = vadd.f32 %v3217, %v3259
    %v3261 = vpop.f32.mrb[0].mxu0
    %v3262 = vadd.f32 %v3219, %v3261
    %v3263 = vpop.f32.mrb[0].mxu0
    %v3264 = vadd.f32 %v3221, %v3263
    %v3265 = vpop.f32.mrb[0].mxu0
    %v3266 = vadd.f32 %v3223, %v3265
    %3267 = vdwg.mxu0
    %3268 = vmatprep.subr.bf16.mxu0 %v2929
    %3269 = vmatpush1.bf16.msra.mxu0 %v2928
    %3270 = vmatprep.subr.bf16.mxu0 %v2933
    %3271 = vmatpush1.bf16.msra.mxu0 %v2932
    %3272 = vmatprep.subr.bf16.mxu0 %v2937
    %3273 = vmatpush1.bf16.msra.mxu0 %v2936
    %3274 = vmatprep.subr.bf16.mxu0 %v2941
    %3275 = vmatpush1.bf16.msra.mxu0 %v2940
    %3276 = vmatprep.subr.bf16.mxu0 %v2945
    %3277 = vmatpush1.bf16.msra.mxu0 %v2944
    %3278 = vmatprep.subr.bf16.mxu0 %v2949
    %3279 = vmatpush1.bf16.msra.mxu0 %v2948
    %3280 = vmatprep.subr.bf16.mxu0 %v2953
    %3281 = vmatpush1.bf16.msra.mxu0 %v2952
    %3282 = vmatprep.subr.bf16.mxu0 %v2957
    %3283 = vmatpush1.bf16.msra.mxu0 %v2956
    %3284 = vmatprep.subr.bf16.mxu0 %v2961
    %3285 = vmatpush1.bf16.msra.mxu0 %v2960
    %3286 = vmatprep.subr.bf16.mxu0 %v2965
    %3287 = vmatpush1.bf16.msra.mxu0 %v2964
    %3288 = vmatprep.subr.bf16.mxu0 %v2969
    %3289 = vmatpush1.bf16.msra.mxu0 %v2968
    %3290 = vmatprep.subr.bf16.mxu0 %v2973
    %3291 = vmatpush1.bf16.msra.mxu0 %v2972
    %3292 = vmatprep.subr.bf16.mxu0 %v2977
    %3293 = vmatpush1.bf16.msra.mxu0 %v2976
    %3294 = vmatprep.subr.bf16.mxu0 %v2981
    %3295 = vmatpush1.bf16.msra.mxu0 %v2980
    %3296 = vmatprep.subr.bf16.mxu0 %v2985
    %3297 = vmatpush1.bf16.msra.mxu0 %v2984
    %3298 = vmatprep.subr.bf16.mxu0 %v2989
    %3299 = vmatpush1.bf16.msra.mxu0 %v2988
    %3300 = vmatprep.mubr.bf16.mxu0 %v2389
    %3301 = vmatmul.mubr.bf16.gmra.mrb[0].mxu0 %v2388
    %v3302 = vpop.f32.mrb[0].mxu0
    %v3303 = vadd.f32 %v2533, %v3302
    %v3304 = vpop.f32.mrb[0].mxu0
    %v3305 = vadd.f32 %v2537, %v3304
    %v3306 = vpop.f32.mrb[0].mxu0
    %v3307 = vadd.f32 %v2533, %v3306
    %v3308 = vpop.f32.mrb[0].mxu0
    %v3309 = vadd.f32 %v2537, %v3308
    %3310 = vdwg.mxu0
    %3311 = vmatprep.subr.bf16.mxu0 %v2993
    %3312 = vmatpush1.bf16.msra.mxu0 %v2992
    %3313 = vmatprep.subr.bf16.mxu0 %v2997
    %3314 = vmatpush1.bf16.msra.mxu0 %v2996
    %3315 = vmatprep.subr.bf16.mxu0 %v3001
    %3316 = vmatpush1.bf16.msra.mxu0 %v3000
    %3317 = vmatprep.subr.bf16.mxu0 %v3005
    %3318 = vmatpush1.bf16.msra.mxu0 %v3004
    %3319 = vmatprep.subr.bf16.mxu0 %v3009
    %3320 = vmatpush1.bf16.msra.mxu0 %v3008
    %3321 = vmatprep.subr.bf16.mxu0 %v3013
    %3322 = vmatpush1.bf16.msra.mxu0 %v3012
    %3323 = vmatprep.subr.bf16.mxu0 %v3017
    %3324 = vmatpush1.bf16.msra.mxu0 %v3016
    %3325 = vmatprep.subr.bf16.mxu0 %v3021
    %3326 = vmatpush1.bf16.msra.mxu0 %v3020
    %3327 = vmatprep.subr.bf16.mxu0 %v3025
    %3328 = vmatpush1.bf16.msra.mxu0 %v3024
    %3329 = vmatprep.subr.bf16.mxu0 %v3029
    %3330 = vmatpush1.bf16.msra.mxu0 %v3028
    %3331 = vmatprep.subr.bf16.mxu0 %v3033
    %3332 = vmatpush1.bf16.msra.mxu0 %v3032
    %3333 = vmatprep.subr.bf16.mxu0 %v3037
    %3334 = vmatpush1.bf16.msra.mxu0 %v3036
    %3335 = vmatprep.subr.bf16.mxu0 %v3041
    %3336 = vmatpush1.bf16.msra.mxu0 %v3040
    %3337 = vmatprep.subr.bf16.mxu0 %v3045
    %3338 = vmatpush1.bf16.msra.mxu0 %v3044
    %3339 = vmatprep.subr.bf16.mxu0 %v3049
    %3340 = vmatpush1.bf16.msra.mxu0 %v3048
    %3341 = vmatprep.subr.bf16.mxu0 %v3053
    %3342 = vmatpush1.bf16.msra.mxu0 %v3052
    %3343 = vmatprep.mubr.bf16.mxu0 %v2391
    %3344 = vmatmul.mubr.bf16.gmra.mrb[0].mxu0 %v2390
    %v3345 = vpop.f32.mrb[0].mxu0
    %v3346 = vadd.f32 %v3303, %v3345
    %v3347 = vpop.f32.mrb[0].mxu0
    %v3348 = vadd.f32 %v3305, %v3347
    %v3349 = vpop.f32.mrb[0].mxu0
    %v3350 = vadd.f32 %v3307, %v3349
    %v3351 = vpop.f32.mrb[0].mxu0
    %v3352 = vadd.f32 %v3309, %v3351
    %3353 = vdwg.mxu0
    %v3354 = vpack.c.bf16 %v3264, %v3260
    %v3355 = vpack.c.bf16 %v3266, %v3262
    %v3356 = vpack.c.bf16 %v3350, %v3346
    %v3357 = vpack.c.bf16 %v3352, %v3348
    %v3358 = vld [vmem:[#allocation11] sm:$0xf]
    %v3359 = vld [vmem:[#allocation11 + $0x4] sm:$0xf]
    %v3360 = vld [vmem:[#allocation11 + $0x8] sm:$0xf]
    %v3361 = vld [vmem:[#allocation11 + $0xc] sm:$0xf]
    %v3362 = vld [vmem:[#allocation11 + $0x10] sm:$0xf]
    %v3363 = vld [vmem:[#allocation11 + $0x14] sm:$0xf]
    %v3364 = vld [vmem:[#allocation11 + $0x18] sm:$0xf]
    %v3365 = vld [vmem:[#allocation11 + $0x1c] sm:$0xf]
    %v3366 = vld [vmem:[#allocation11 + $0x20] sm:$0xf]
    %v3367 = vld [vmem:[#allocation11 + $0x24] sm:$0xf]
    %v3368 = vld [vmem:[#allocation11 + $0x28] sm:$0xf]
    %v3369 = vld [vmem:[#allocation11 + $0x2c] sm:$0xf]
    %v3370 = vld [vmem:[#allocation11 + $0x30] sm:$0xf]
    %v3371 = vld [vmem:[#allocation11 + $0x34] sm:$0xf]
    %v3372 = vld [vmem:[#allocation11 + $0x38] sm:$0xf]
    %v3373 = vld [vmem:[#allocation11 + $0x3c] sm:$0xf]
    %v3374 = vld [vmem:[#allocation11 + $0x40] sm:$0xf]
    %v3375 = vld [vmem:[#allocation11 + $0x44] sm:$0xf]
    %v3376 = vld [vmem:[#allocation11 + $0x48] sm:$0xf]
    %v3377 = vld [vmem:[#allocation11 + $0x4c] sm:$0xf]
    %v3378 = vld [vmem:[#allocation11 + $0x50] sm:$0xf]
    %v3379 = vld [vmem:[#allocation11 + $0x54] sm:$0xf]
    %v3380 = vld [vmem:[#allocation11 + $0x58] sm:$0xf]
    %v3381 = vld [vmem:[#allocation11 + $0x5c] sm:$0xf]
    %v3382 = vld [vmem:[#allocation11 + $0x60] sm:$0xf]
    %v3383 = vld [vmem:[#allocation11 + $0x64] sm:$0xf]
    %v3384 = vld [vmem:[#allocation11 + $0x68] sm:$0xf]
    %v3385 = vld [vmem:[#allocation11 + $0x6c] sm:$0xf]
    %v3386 = vld [vmem:[#allocation11 + $0x70] sm:$0xf]
    %v3387 = vld [vmem:[#allocation11 + $0x74] sm:$0xf]
    %v3388 = vld [vmem:[#allocation11 + $0x78] sm:$0xf]
    %v3389 = vld [vmem:[#allocation11 + $0x7c] sm:$0xf]
    %v3390 = vld [vmem:[#allocation11 + $0x80] sm:$0xf]
    %v3391 = vld [vmem:[#allocation11 + $0x84] sm:$0xf]
    %v3392 = vld [vmem:[#allocation11 + $0x88] sm:$0xf]
    %v3393 = vld [vmem:[#allocation11 + $0x8c] sm:$0xf]
    %v3394 = vld [vmem:[#allocation11 + $0x90] sm:$0xf]
    %v3395 = vld [vmem:[#allocation11 + $0x94] sm:$0xf]
    %v3396 = vld [vmem:[#allocation11 + $0x98] sm:$0xf]
    %v3397 = vld [vmem:[#allocation11 + $0x9c] sm:$0xf]
    %v3398 = vld [vmem:[#allocation11 + $0xa0] sm:$0xf]
    %v3399 = vld [vmem:[#allocation11 + $0xa4] sm:$0xf]
    %v3400 = vld [vmem:[#allocation11 + $0xa8] sm:$0xf]
    %v3401 = vld [vmem:[#allocation11 + $0xac] sm:$0xf]
    %v3402 = vld [vmem:[#allocation11 + $0xb0] sm:$0xf]
    %v3403 = vld [vmem:[#allocation11 + $0xb4] sm:$0xf]
    %v3404 = vld [vmem:[#allocation11 + $0xb8] sm:$0xf]
    %v3405 = vld [vmem:[#allocation11 + $0xbc] sm:$0xf]
    %v3406 = vld [vmem:[#allocation11 + $0xc0] sm:$0xf]
    %v3407 = vld [vmem:[#allocation11 + $0xc4] sm:$0xf]
    %v3408 = vld [vmem:[#allocation11 + $0xc8] sm:$0xf]
    %v3409 = vld [vmem:[#allocation11 + $0xcc] sm:$0xf]
    %v3410 = vld [vmem:[#allocation11 + $0xd0] sm:$0xf]
    %v3411 = vld [vmem:[#allocation11 + $0xd4] sm:$0xf]
    %v3412 = vld [vmem:[#allocation11 + $0xd8] sm:$0xf]
    %v3413 = vld [vmem:[#allocation11 + $0xdc] sm:$0xf]
    %v3414 = vld [vmem:[#allocation11 + $0xe0] sm:$0xf]
    %v3415 = vld [vmem:[#allocation11 + $0xe4] sm:$0xf]
    %v3416 = vld [vmem:[#allocation11 + $0xe8] sm:$0xf]
    %v3417 = vld [vmem:[#allocation11 + $0xec] sm:$0xf]
    %v3418 = vld [vmem:[#allocation11 + $0xf0] sm:$0xf]
    %v3419 = vld [vmem:[#allocation11 + $0xf4] sm:$0xf]
    %v3420 = vld [vmem:[#allocation11 + $0xf8] sm:$0xf]
    %v3421 = vld [vmem:[#allocation11 + $0xfc] sm:$0xf]
    %v3422 = vld [vmem:[%s10] sm:$0x1]
    %v3424 = vlaneseq
    %v3425 = vshrl.u32 %v3424, 7
    %v3426 = vsub.s32 0, %v3425
    %v3427 = vrot.slane %v3422, %v3426
    %v3493 = vunpack.c.l.b16 %v3358
    %v3494 = vunpack.c.l.b16 %v3359
    %v3495 = vunpack.c.l.b16 %v3360
    %v3496 = vunpack.c.l.b16 %v3361
    %v3497 = vunpack.c.l.b16 %v3362
    %v3498 = vunpack.c.l.b16 %v3363
    %v3499 = vunpack.c.l.b16 %v3364
    %v3500 = vunpack.c.l.b16 %v3365
    %v3501 = vunpack.c.l.b16 %v3366
    %v3502 = vunpack.c.l.b16 %v3367
    %v3503 = vunpack.c.l.b16 %v3368
    %v3504 = vunpack.c.l.b16 %v3369
    %v3505 = vunpack.c.l.b16 %v3370
    %v3506 = vunpack.c.l.b16 %v3371
    %v3507 = vunpack.c.l.b16 %v3372
    %v3508 = vunpack.c.l.b16 %v3373
    %v3509 = vunpack.c.l.b16 %v3374
    %v3510 = vunpack.c.l.b16 %v3375
    %v3511 = vunpack.c.l.b16 %v3376
    %v3512 = vunpack.c.l.b16 %v3377
    %v3513 = vunpack.c.l.b16 %v3378
    %v3514 = vunpack.c.l.b16 %v3379
    %v3515 = vunpack.c.l.b16 %v3380
    %v3516 = vunpack.c.l.b16 %v3381
    %v3517 = vunpack.c.l.b16 %v3382
    %v3518 = vunpack.c.l.b16 %v3383
    %v3519 = vunpack.c.l.b16 %v3384
    %v3520 = vunpack.c.l.b16 %v3385
    %v3521 = vunpack.c.l.b16 %v3386
    %v3522 = vunpack.c.l.b16 %v3387
    %v3523 = vunpack.c.l.b16 %v3388
    %v3524 = vunpack.c.l.b16 %v3389
    %v3525 = vunpack.c.l.b16 %v3390
    %v3526 = vunpack.c.l.b16 %v3391
    %v3527 = vunpack.c.l.b16 %v3392
    %v3528 = vunpack.c.l.b16 %v3393
    %v3529 = vunpack.c.l.b16 %v3394
    %v3530 = vunpack.c.l.b16 %v3395
    %v3531 = vunpack.c.l.b16 %v3396
    %v3532 = vunpack.c.l.b16 %v3397
    %v3533 = vunpack.c.l.b16 %v3398
    %v3534 = vunpack.c.l.b16 %v3399
    %v3535 = vunpack.c.l.b16 %v3400
    %v3536 = vunpack.c.l.b16 %v3401
    %v3537 = vunpack.c.l.b16 %v3402
    %v3538 = vunpack.c.l.b16 %v3403
    %v3539 = vunpack.c.l.b16 %v3404
    %v3540 = vunpack.c.l.b16 %v3405
    %v3541 = vunpack.c.l.b16 %v3406
    %v3542 = vunpack.c.l.b16 %v3407
    %v3543 = vunpack.c.l.b16 %v3408
    %v3544 = vunpack.c.l.b16 %v3409
    %v3545 = vunpack.c.l.b16 %v3410
    %v3546 = vunpack.c.l.b16 %v3411
    %v3547 = vunpack.c.l.b16 %v3412
    %v3548 = vunpack.c.l.b16 %v3413
    %v3549 = vunpack.c.l.b16 %v3414
    %v3550 = vunpack.c.l.b16 %v3415
    %v3551 = vunpack.c.l.b16 %v3416
    %v3552 = vunpack.c.l.b16 %v3417
    %v3553 = vunpack.c.l.b16 %v3418
    %v3554 = vunpack.c.l.b16 %v3419
    %v3555 = vunpack.c.l.b16 %v3420
    %v3556 = vunpack.c.l.b16 %v3421
    %v3557 = vpack.c.b16 %v3494, %v3493
    %v3558 = vpack.c.b16 %v3496, %v3495
    %v3559 = vpack.c.b16 %v3498, %v3497
    %v3560 = vpack.c.b16 %v3500, %v3499
    %v3561 = vpack.c.b16 %v3502, %v3501
    %v3562 = vpack.c.b16 %v3504, %v3503
    %v3563 = vpack.c.b16 %v3506, %v3505
    %v3564 = vpack.c.b16 %v3508, %v3507
    %v3565 = vpack.c.b16 %v3510, %v3509
    %v3566 = vpack.c.b16 %v3512, %v3511
    %v3567 = vpack.c.b16 %v3514, %v3513
    %v3568 = vpack.c.b16 %v3516, %v3515
    %v3569 = vpack.c.b16 %v3518, %v3517
    %v3570 = vpack.c.b16 %v3520, %v3519
    %v3571 = vpack.c.b16 %v3522, %v3521
    %v3572 = vpack.c.b16 %v3524, %v3523
    %v3573 = vpack.c.b16 %v3526, %v3525
    %v3574 = vpack.c.b16 %v3528, %v3527
    %v3575 = vpack.c.b16 %v3530, %v3529
    %v3576 = vpack.c.b16 %v3532, %v3531
    %v3577 = vpack.c.b16 %v3534, %v3533
    %v3578 = vpack.c.b16 %v3536, %v3535
    %v3579 = vpack.c.b16 %v3538, %v3537
    %v3580 = vpack.c.b16 %v3540, %v3539
    %v3581 = vpack.c.b16 %v3542, %v3541
    %v3582 = vpack.c.b16 %v3544, %v3543
    %v3583 = vpack.c.b16 %v3546, %v3545
    %v3584 = vpack.c.b16 %v3548, %v3547
    %v3585 = vpack.c.b16 %v3550, %v3549
    %v3586 = vpack.c.b16 %v3552, %v3551
    %v3587 = vpack.c.b16 %v3554, %v3553
    %v3588 = vpack.c.b16 %v3556, %v3555
    %3621 = vmatprep.subr.bf16.mxu0 0
    %3622 = vmatpush1.bf16.msra.mxu0 %v3557
    %3623 = vmatprep.subr.bf16.mxu0 0
    %3624 = vmatpush1.bf16.msra.mxu0 %v3558
    %3625 = vmatprep.subr.bf16.mxu0 0
    %3626 = vmatpush1.bf16.msra.mxu0 %v3559
    %3627 = vmatprep.subr.bf16.mxu0 0
    %3628 = vmatpush1.bf16.msra.mxu0 %v3560
    %3629 = vmatprep.subr.bf16.mxu0 0
    %3630 = vmatpush1.bf16.msra.mxu0 %v3561
    %3631 = vmatprep.subr.bf16.mxu0 0
    %3632 = vmatpush1.bf16.msra.mxu0 %v3562
    %3633 = vmatprep.subr.bf16.mxu0 0
    %3634 = vmatpush1.bf16.msra.mxu0 %v3563
    %3635 = vmatprep.subr.bf16.mxu0 0
    %3636 = vmatpush1.bf16.msra.mxu0 %v3564
    %3637 = vmatprep.subr.bf16.mxu0 0
    %3638 = vmatpush1.bf16.msra.mxu0 %v3565
    %3639 = vmatprep.subr.bf16.mxu0 0
    %3640 = vmatpush1.bf16.msra.mxu0 %v3566
    %3641 = vmatprep.subr.bf16.mxu0 0
    %3642 = vmatpush1.bf16.msra.mxu0 %v3567
    %3643 = vmatprep.subr.bf16.mxu0 0
    %3644 = vmatpush1.bf16.msra.mxu0 %v3568
    %3645 = vmatprep.subr.bf16.mxu0 0
    %3646 = vmatpush1.bf16.msra.mxu0 %v3569
    %3647 = vmatprep.subr.bf16.mxu0 0
    %3648 = vmatpush1.bf16.msra.mxu0 %v3570
    %3649 = vmatprep.subr.bf16.mxu0 0
    %3650 = vmatpush1.bf16.msra.mxu0 %v3571
    %3651 = vmatprep.subr.bf16.mxu0 0
    %3652 = vmatpush1.bf16.msra.mxu0 %v3572
    %3653 = vmatprep.mubr.bf16.mxu0 %v3355
    %3654 = vmatmul.mubr.bf16.gmra.mrb[0].mxu0 %v3354
    %v3655 = vpop.f32.mrb[0].mxu0
    %v3656 = vadd.f32 %v3427, %v3655
    %v3657 = vpop.f32.mrb[0].mxu0
    %v3658 = vpop.f32.mrb[0].mxu0
    %v3659 = vadd.f32 %v3427, %v3658
    %v3660 = vpop.f32.mrb[0].mxu0
    %3661 = vdwg.mxu0
    %3662 = vmatprep.subr.bf16.mxu0 0
    %3663 = vmatpush1.bf16.msra.mxu0 %v3573
    %3664 = vmatprep.subr.bf16.mxu0 0
    %3665 = vmatpush1.bf16.msra.mxu0 %v3574
    %3666 = vmatprep.subr.bf16.mxu0 0
    %3667 = vmatpush1.bf16.msra.mxu0 %v3575
    %3668 = vmatprep.subr.bf16.mxu0 0
    %3669 = vmatpush1.bf16.msra.mxu0 %v3576
    %3670 = vmatprep.subr.bf16.mxu0 0
    %3671 = vmatpush1.bf16.msra.mxu0 %v3577
    %3672 = vmatprep.subr.bf16.mxu0 0
    %3673 = vmatpush1.bf16.msra.mxu0 %v3578
    %3674 = vmatprep.subr.bf16.mxu0 0
    %3675 = vmatpush1.bf16.msra.mxu0 %v3579
    %3676 = vmatprep.subr.bf16.mxu0 0
    %3677 = vmatpush1.bf16.msra.mxu0 %v3580
    %3678 = vmatprep.subr.bf16.mxu0 0
    %3679 = vmatpush1.bf16.msra.mxu0 %v3581
    %3680 = vmatprep.subr.bf16.mxu0 0
    %3681 = vmatpush1.bf16.msra.mxu0 %v3582
    %3682 = vmatprep.subr.bf16.mxu0 0
    %3683 = vmatpush1.bf16.msra.mxu0 %v3583
    %3684 = vmatprep.subr.bf16.mxu0 0
    %3685 = vmatpush1.bf16.msra.mxu0 %v3584
    %3686 = vmatprep.subr.bf16.mxu0 0
    %3687 = vmatpush1.bf16.msra.mxu0 %v3585
    %3688 = vmatprep.subr.bf16.mxu0 0
    %3689 = vmatpush1.bf16.msra.mxu0 %v3586
    %3690 = vmatprep.subr.bf16.mxu0 0
    %3691 = vmatpush1.bf16.msra.mxu0 %v3587
    %3692 = vmatprep.subr.bf16.mxu0 0
    %3693 = vmatpush1.bf16.msra.mxu0 %v3588
    %3694 = vmatprep.mubr.bf16.mxu0 %v3357
    %3695 = vmatmul.mubr.bf16.gmra.mrb[0].mxu0 %v3356
    %v3696 = vpop.f32.mrb[0].mxu0
    %v3697 = vadd.f32 %v3656, %v3696
    %v3698 = vpop.f32.mrb[0].mxu0
    %v3699 = vpop.f32.mrb[0].mxu0
    %v3700 = vadd.f32 %v3659, %v3699
    %v3701 = vpop.f32.mrb[0].mxu0
    %3702 = vdwg.mxu0
    %v3703 = vtanh.pop %v3697
    %v3704 = vtanh.pop %v3700
    %v3705 = vld [vmem:[%s11] sm:$0x1]
    %v3706 = vld [vmem:[#allocation2] sm:$0x1]
    %3708 = vset.pattern.permute.xlu0 0
    %3709 = vperm.xlu0 %3708, %v3706
    %v3710 = vpop.permute.xlu0 %3709
    %v3712 = vlaneseq
    %v3713 = vshrl.u32 %v3712, 7
    %v3714 = vsub.s32 0, %v3713
    %v3715 = vrot.slane %v3710, %v3714
    %3716 = vmatprep.subr.mxu0 0.0
    %3717 = vmatpush1.xpose.msra.mxu0 %v3703
    %3718 = vmatprep.subr.mxu0 0.0
    %3719 = vmatpush1.xpose.msra.mxu0 %v3704
    %3720 = vmatprep.subr.mxu0 0.0
    %3721 = vmatpush1.xpose.msra.mxu0 0.0
    %3722 = vmatprep.subr.mxu0 0.0
    %3723 = vmatpush1.xpose.msra.mxu0 0.0
    %3724 = vmatprep.subr.mxu0 0.0
    %3725 = vmatpush1.xpose.msra.mxu0 0.0
    %3726 = vmatprep.subr.mxu0 0.0
    %3727 = vmatpush1.xpose.msra.mxu0 0.0
    %3728 = vmatprep.subr.mxu0 0.0
    %3729 = vmatpush1.xpose.msra.mxu0 0.0
    %3730 = vmatprep.subr.mxu0 0.0
    %3731 = vmatpush1.xpose.msra.mxu0 0.0
    %3732 = vmatprep.subr.mxu0 0.0
    %3733 = vmatpush1.xpose.msra.mxu0 0.0
    %3734 = vmatprep.subr.mxu0 0.0
    %3735 = vmatpush1.xpose.msra.mxu0 0.0
    %3736 = vmatprep.subr.mxu0 0.0
    %3737 = vmatpush1.xpose.msra.mxu0 0.0
    %3738 = vmatprep.subr.mxu0 0.0
    %3739 = vmatpush1.xpose.msra.mxu0 0.0
    %3740 = vmatprep.subr.mxu0 0.0
    %3741 = vmatpush1.xpose.msra.mxu0 0.0
    %3742 = vmatprep.subr.mxu0 0.0
    %3743 = vmatpush1.xpose.msra.mxu0 0.0
    %3744 = vmatprep.subr.mxu0 0.0
    %3745 = vmatpush1.xpose.msra.mxu0 0.0
    %3746 = vmatprep.subr.mxu0 0.0
    %3747 = vmatpush1.xpose.msra.mxu0 0.0
    %3748 = vmatprep.subr.mxu0 0.0
    %3749 = vmatpush1.xpose.msra.mxu0 0.0
    %3750 = vmatprep.subr.mxu0 0.0
    %3751 = vmatpush1.xpose.msra.mxu0 0.0
    %3752 = vmatprep.subr.mxu0 0.0
    %3753 = vmatpush1.xpose.msra.mxu0 0.0
    %3754 = vmatprep.subr.mxu0 0.0
    %3755 = vmatpush1.xpose.msra.mxu0 0.0
    %3756 = vmatprep.subr.mxu0 0.0
    %3757 = vmatpush1.xpose.msra.mxu0 0.0
    %3758 = vmatprep.subr.mxu0 0.0
    %3759 = vmatpush1.xpose.msra.mxu0 0.0
    %3760 = vmatprep.subr.mxu0 0.0
    %3761 = vmatpush1.xpose.msra.mxu0 0.0
    %3762 = vmatprep.subr.mxu0 0.0
    %3763 = vmatpush1.xpose.msra.mxu0 0.0
    %3764 = vmatprep.subr.mxu0 0.0
    %3765 = vmatpush1.xpose.msra.mxu0 0.0
    %3766 = vmatprep.subr.mxu0 0.0
    %3767 = vmatpush1.xpose.msra.mxu0 0.0
    %3768 = vmatprep.subr.mxu0 0.0
    %3769 = vmatpush1.xpose.msra.mxu0 0.0
    %3770 = vmatprep.subr.mxu0 0.0
    %3771 = vmatpush1.xpose.msra.mxu0 0.0
    %3772 = vmatprep.subr.mxu0 0.0
    %3773 = vmatpush1.xpose.msra.mxu0 0.0
    %3774 = vmatprep.subr.mxu0 0.0
    %3775 = vmatpush1.xpose.msra.mxu0 0.0
    %3776 = vmatprep.subr.mxu0 0.0
    %3777 = vmatpush1.xpose.msra.mxu0 0.0
    %3778 = vmatprep.subr.mxu0 0.0
    %3779 = vmatpush1.xpose.msra.mxu0 0.0
    %3780 = vmatprep.mubr.f32.mxu0 0.0
    %3781 = vmatmul.mubr.f32.gmra.mrb[0].mxu0 %v3705
    %v3782 = vpop.f32.mrb[0].mxu0
    %v3783 = vadd.f32 %v3715, %v3782
    %v3784 = vpop.f32.mrb[0].mxu0
    %3785 = vdwg.mxu0
    %v3786 = vxor.u32 %v3783, 2147483648
    %v3787 = vmul.f32 %v3786, 1.442695
    %v3788 = vpow.pop %v3787
    %v3789 = vadd.f32 %v3788, 1.0
    %v3790 = vrcp.pop %v3789
    %v3791 = vmul.f32 1.0, %v3790
    %vm3792 = vcmask 122880
    %3793 = vst.msk [vmem:[#allocation12] sm:$0x1] %vm3792, %v3791
    // Predicated region
    $region74: #{tpu_custom_call.1} parent=1 // pred_check
      _
    $region75: #{tpu_custom_call.1} parent=1 // pred_check_branch
      %3795 = sbr.rel (0) target = $region77
    $region76: #{tpu_custom_call.1} parent=1 // pred_region
      %s3797 = ssub.s32 16, 16
      %3798 = vsyncadd [#allocation5], %s3797
      %s3800 = sshll.u32 [#allocation12], 4
      %s3801 = int_to_ptr.vmem [resolvable:$true] %s3800
      %3803 = dma.vmem_to_hbm [thread:$0]  %s3801, 16, %s13, [#allocation5]
    $region77: #{tpu_custom_call.1} parent=1 // pred_fallthru
      _
    // Predicated region
    $region78: #{tpu_custom_call.1} parent=1 // pred_check
      _
    $region79: #{tpu_custom_call.1} parent=1 // pred_check_branch
      %3805 = sbr.rel (0) target = $region81
    $region80: #{tpu_custom_call.1} parent=1 // pred_region
      %3806 = dma.done [#allocation5], 16
    $region81: #{tpu_custom_call.1} parent=1 // pred_fallthru
      _
    %3807 = vsyncpa [#allocation4], 1
    %3808 = vsyncpa [#allocation7], 1
    %3809 = vsyncpa [#allocation10], 1
    %3810 = vsyncpa [#allocation5], 1

</llo_original>
